<compile_context>
chip_gen: v7x
topology: tpu7x:2x2x1
jax: 0.10.0
libtpu: 0.0.40
codegen_flags: <defaults>
</compile_context>

<pallas_src>
import functools

import jax
import jax.numpy as jnp
from jax.experimental import pallas as pl
from jax.experimental.pallas import tpu as pltpu


def _round_up(x, m):
    return ((x + m - 1) // m) * m


def make_lstm_kernel(num_layers, seq_len, B_pad, H_pad):
    """Kernel body: batched layer-0 projection + LSTM recurrence + fc1 + fc2."""
    L, S = num_layers, seq_len
    G = 4 * H_pad
    H3 = 3 * H_pad

    def kernel(x_ref, w_ih0_ref, w_ih_rest_ref, w_hh_ref, b_ref,
               fc1_w_ref, fc1_b_ref, fc2_w_ref, fc2_b_ref,
               out_ref, xproj_ref):
        # ---- Layer-0 input projection for ALL timesteps: one fat matmul
        #      ((S*B_pad, IN_PAD) @ (IN_PAD, G)) with the layer-0 bias folded
        #      in, written to VMEM scratch (keeps vreg live ranges short).
        xproj_ref[...] = (
            jnp.dot(x_ref[...], w_ih0_ref[...],
                    preferred_element_type=jnp.float32)
            + b_ref[0]  # (1, G) -> broadcast once, outside the loop
        )

        # Hidden / cell state carried as values (vregs), not VMEM scratch.
        h = [jnp.zeros((B_pad, H_pad), jnp.float32) for _ in range(L)]
        c = [jnp.zeros((B_pad, H_pad), jnp.float32) for _ in range(L)]

        # Per-layer bias broadcast hoisted out of the unrolled time loop
        # (layers >= 1 only; layer 0's bias is already inside xproj).
        b_bc = [jnp.broadcast_to(b_ref[l], (B_pad, G)) for l in range(1, L)]

        for t in range(S):                    # static unroll over time
            for l in range(L):                # static unroll over layers
                if l == 0:
                    # Only the recurrent term sits on the serial chain.
                    gates = xproj_ref[pl.ds(t * B_pad, B_pad), :] + jnp.dot(
                        h[0], w_hh_ref[0], preferred_element_type=jnp.float32)
                else:
                    # Split dots instead of concat-dot; weights streamed
                    # straight from the VMEM input refs each step.
                    gates = (
                        jnp.dot(h[l - 1], w_ih_rest_ref[l - 1],
                                preferred_element_type=jnp.float32)
                        + jnp.dot(h[l], w_hh_ref[l],
                                  preferred_element_type=jnp.float32)
                        + b_bc[l - 1])
                # Gate layout [i, f, o, g]: one sigmoid over 3 contiguous
                # 128-lane blocks, one tanh over the last block.
                sig = jax.nn.sigmoid(gates[:, :H3])
                g_t = jnp.tanh(gates[:, H3:G])
                i_g = sig[:, 0 * H_pad:1 * H_pad]
                f_g = sig[:, 1 * H_pad:2 * H_pad]
                o_g = sig[:, 2 * H_pad:3 * H_pad]
                c_new = f_g * c[l] + i_g * g_t
                h_new = o_g * jnp.tanh(c_new)
                c[l] = c_new
                h[l] = h_new

        # Fused head: fc2(fc1(h_last)).  Output slab is lane-dense.
        z = jnp.dot(h[L - 1], fc1_w_ref[...],
                    preferred_element_type=jnp.float32) + fc1_b_ref[...]
        y = jnp.dot(z, fc2_w_ref[...],
                    preferred_element_type=jnp.float32) + fc2_b_ref[...]
        out_ref[...] = y.astype(out_ref.dtype)

    return kernel


def _pack_gates(w, H, H_pad):
    """(rows, 4H) in PyTorch gate order [i, f, g, o] -> (rows, 4*H_pad) in
    kernel order [i, f, o, g], each gate in its own 128-lane-aligned block."""
    rows = w.shape[0]
    out = jnp.zeros((rows, 4 * H_pad), w.dtype)
    for dst, src in enumerate((0, 1, 3, 2)):  # i, f, o, g
        out = out.at[:, dst * H_pad:dst * H_pad + H].set(
            w[:, src * H:(src + 1) * H])
    return out


def init_params(key, input_size, hidden_size, output_size, num_layers):
    """Deterministic synthetic parameters (PyTorch-equivalent shapes,
    stored pre-transposed (in, out) for row-major matmuls)."""
    params = {"layers": []}
    scale = 0.1
    for l in range(num_layers):
        in_l = input_size if l == 0 else hidden_size
        key, k1, k2, k3, k4 = jax.random.split(key, 5)
        w_ih = jax.random.normal(k1, (in_l, 4 * hidden_size), jnp.float32) * scale
        w_hh = jax.random.normal(k2, (hidden_size, 4 * hidden_size), jnp.float32) * scale
        b_ih = jax.random.normal(k3, (4 * hidden_size,), jnp.float32) * scale
        b_hh = jax.random.normal(k4, (4 * hidden_size,), jnp.float32) * scale
        b = (b_ih + b_hh).reshape(1, 4 * hidden_size)
        params["layers"].append((w_ih, w_hh, b))
    key, k1, k2, k3, k4 = jax.random.split(key, 5)
    params["fc1_w"] = jax.random.normal(k1, (hidden_size, hidden_size), jnp.float32) * scale
    params["fc1_b"] = (jax.random.normal(k2, (hidden_size,), jnp.float32) * scale
                       ).reshape(1, hidden_size)
    params["fc2_w"] = jax.random.normal(k3, (hidden_size, output_size), jnp.float32) * scale
    params["fc2_b"] = (jax.random.normal(k4, (output_size,), jnp.float32) * scale
                       ).reshape(1, output_size)
    return params


@functools.partial(jax.jit, static_argnames=("hidden_size", "output_size", "num_layers"))
def estimation_lstm_forward(x, params, *, hidden_size, output_size, num_layers):
    """x: (B, seq_len, input_size), batch_first like PyTorch."""
    B, S, I = x.shape
    H, O, L = hidden_size, output_size, num_layers

    # TPU-friendly padded sizes: batch -> sublane (8), feature dims -> lane (128).
    B_pad = _round_up(B, 8)
    H_pad = _round_up(H, 128)
    O_pad = _round_up(O, 128)
    IN_PAD = _round_up(I, 128)
    G = 4 * H_pad

    # x: (B, S, I) -> (S*B_pad, IN_PAD); one small fused pad/transpose/reshape.
    x_pad = jnp.zeros((S, B_pad, IN_PAD), jnp.float32)
    x_pad = x_pad.at[:, :B, :I].set(jnp.transpose(x, (1, 0, 2)))
    x_flat = x_pad.reshape(S * B_pad, IN_PAD)

    # Weights, gate columns moved to 128-lane-aligned blocks in [i,f,o,g] order.
    w_ih0_raw, _, _ = params["layers"][0]
    w_ih0 = jnp.zeros((IN_PAD, G), jnp.float32).at[:I].set(
        _pack_gates(w_ih0_raw, H, H_pad))                      # (IN_PAD, G)

    w_hh_list, b_list, w_ih_rest_list = [], [], []
    for l in range(L):
        w_ih, w_hh, bias = params["layers"][l]
        w_hh_list.append(jnp.zeros((H_pad, G), jnp.float32).at[:H].set(
            _pack_gates(w_hh, H, H_pad)))
        b_list.append(_pack_gates(bias, H, H_pad))
        if l > 0:
            w_ih_rest_list.append(jnp.zeros((H_pad, G), jnp.float32).at[:H].set(
                _pack_gates(w_ih, H, H_pad)))
    w_hh_cat = jnp.stack(w_hh_list)                            # (L, H_pad, G)
    b_cat = jnp.stack(b_list)                                  # (L, 1, G)
    if L > 1:
        w_ih_rest = jnp.stack(w_ih_rest_list)                  # (L-1, H_pad, G)
    else:
        # Dummy (never read inside the kernel when L == 1).
        w_ih_rest = jnp.zeros((1, H_pad, G), jnp.float32)

    # FC head, padded to lane-dense shapes (zero pads keep math exact).
    fc1_w = jnp.zeros((H_pad, H_pad), jnp.float32).at[:H, :H].set(params["fc1_w"])
    fc1_b = jnp.zeros((1, H_pad), jnp.float32).at[:, :H].set(params["fc1_b"])
    fc2_w = jnp.zeros((H_pad, O_pad), jnp.float32).at[:H, :O].set(params["fc2_w"])
    fc2_b = jnp.zeros((1, O_pad), jnp.float32).at[:, :O].set(params["fc2_b"])

    kernel = make_lstm_kernel(L, S, B_pad, H_pad)

    # No grid, nothing to pipeline: plain whole-array VMEM refs (no second
    # pipeline buffer per input).
    vmem_spec = pl.BlockSpec(memory_space=pltpu.MemorySpace.VMEM)
    out_pad = pl.pallas_call(
        kernel,
        out_shape=jax.ShapeDtypeStruct((B_pad, O_pad), jnp.float32),
        in_specs=[vmem_spec] * 9,
        out_specs=vmem_spec,
        scratch_shapes=[pltpu.VMEM((S * B_pad, G), jnp.float32)],
    )(x_flat, w_ih0, w_ih_rest, w_hh_cat, b_cat, fc1_w, fc1_b, fc2_w, fc2_b)

    return out_pad[:B, :O]


def reference_forward(x, params, hidden_size, num_layers):
    """Pure-JAX reference matching PyTorch nn.LSTM + fc1 + fc2 semantics."""
    B, S, _ = x.shape
    H = hidden_size
    h = [jnp.zeros((B, H), jnp.float32) for _ in range(num_layers)]
    c = [jnp.zeros((B, H), jnp.float32) for _ in range(num_layers)]
    for t in range(S):
        inp = x[:, t, :]
        for l in range(num_layers):
            w_ih, w_hh, b = params["layers"][l]
            gates = inp @ w_ih + h[l] @ w_hh + b
            i_g = jax.nn.sigmoid(gates[:, 0 * H:1 * H])
            f_g = jax.nn.sigmoid(gates[:, 1 * H:2 * H])
            g_g = jnp.tanh(gates[:, 2 * H:3 * H])
            o_g = jax.nn.sigmoid(gates[:, 3 * H:4 * H])
            c[l] = f_g * c[l] + i_g * g_g
            h[l] = o_g * jnp.tanh(c[l])
            inp = h[l]
    z = h[-1] @ params["fc1_w"] + params["fc1_b"]
    return z @ params["fc2_w"] + params["fc2_b"]


if __name__ == "__main__":
    batch = 2
    seq_len = 8
    input_size = 8
    hidden_size = 32
    output_size = 4
    num_layers = 2

    key = jax.random.PRNGKey(0)
    key, xk, pk = jax.random.split(key, 3)
    x = jax.random.normal(xk, (batch, seq_len, input_size), jnp.float32)
    params = init_params(pk, input_size, hidden_size, output_size, num_layers)

    out = estimation_lstm_forward(
        x, params,
        hidden_size=hidden_size, output_size=output_size, num_layers=num_layers,
    )
    out = jax.block_until_ready(out)

    ref = reference_forward(x, params, hidden_size, num_layers)
    assert out.shape == (batch, output_size)
    assert jnp.allclose(out, ref, atol=1e-4, rtol=1e-4), (out, ref)

    print("KERNEL_OK")
</pallas_src>

<mosaic_0001>
module attributes {stable_mosaic.version = 11 : i64} {
  func.func @kernel(%arg0: memref<64x128xf32, #tpu.memory_space<vmem>>, %arg1: memref<128x512xf32, #tpu.memory_space<vmem>>, %arg2: memref<1x128x512xf32, #tpu.memory_space<vmem>>, %arg3: memref<2x128x512xf32, #tpu.memory_space<vmem>>, %arg4: memref<2x1x512xf32, #tpu.memory_space<vmem>>, %arg5: memref<128x128xf32, #tpu.memory_space<vmem>>, %arg6: memref<1x128xf32, #tpu.memory_space<vmem>>, %arg7: memref<128x128xf32, #tpu.memory_space<vmem>>, %arg8: memref<1x128xf32, #tpu.memory_space<vmem>>, %arg9: memref<8x128xf32, #tpu.memory_space<vmem>>, %arg10: memref<64x512xf32, #tpu.memory_space<vmem>>) attributes {dimension_semantics = [], scalar_prefetch = 0 : i64, scratch_operands = 1 : i64, tpu.core_type = #tpu.core_type<tc>} {
    %c0 = arith.constant 0 : index
    %c0_0 = arith.constant 0 : index
    %0 = vector.load %arg0[%c0, %c0_0] : memref<64x128xf32, #tpu.memory_space<vmem>>, vector<64x128xf32>
    %c0_1 = arith.constant 0 : index
    %c0_2 = arith.constant 0 : index
    %1 = vector.load %arg1[%c0_1, %c0_2] : memref<128x512xf32, #tpu.memory_space<vmem>>, vector<128x512xf32>
    %cst = arith.constant dense<0.000000e+00> : vector<64x512xf32>
    %2 = tpu.matmul %0, %1, %cst {dimension_numbers = #tpu.dot_dimension_numbers<[1], [0], [0], [1], [0, 0, 1, 1], [], []>} : vector<64x128xf32>, vector<128x512xf32>, vector<64x512xf32> -> vector<64x512xf32>
    %c0_3 = arith.constant 0 : index
    %c0_4 = arith.constant 0 : index
    %c0_5 = arith.constant 0 : index
    %3 = vector.load %arg4[%c0_3, %c0_4, %c0_5] : memref<2x1x512xf32, #tpu.memory_space<vmem>>, vector<1x1x512xf32>
    %4 = vector.shape_cast %3 : vector<1x1x512xf32> to vector<1x512xf32>
    %5 = vector.broadcast %4 : vector<1x512xf32> to vector<64x512xf32>
    %6 = arith.addf %2, %5 : vector<64x512xf32>
    %c0_6 = arith.constant 0 : index
    %c0_7 = arith.constant 0 : index
    %7 = vector.load %arg10[%c0_6, %c0_7] : memref<64x512xf32, #tpu.memory_space<vmem>>, vector<64x512xf32>
    tpu.vector_store %arg10[%c0_6, %c0_7], %6 {strides = array<i32>} : memref<64x512xf32, #tpu.memory_space<vmem>>, vector<64x512xf32>,
    %cst_8 = arith.constant 0.000000e+00 : f32
    %8 = vector.broadcast %cst_8 : f32 to vector<8x128xf32>
    %cst_9 = arith.constant 0.000000e+00 : f32
    %9 = vector.broadcast %cst_9 : f32 to vector<8x128xf32>
    %cst_10 = arith.constant 0.000000e+00 : f32
    %10 = vector.broadcast %cst_10 : f32 to vector<8x128xf32>
    %cst_11 = arith.constant 0.000000e+00 : f32
    %11 = vector.broadcast %cst_11 : f32 to vector<8x128xf32>
    %c1 = arith.constant 1 : index
    %c0_12 = arith.constant 0 : index
    %c0_13 = arith.constant 0 : index
    %12 = vector.load %arg4[%c1, %c0_12, %c0_13] : memref<2x1x512xf32, #tpu.memory_space<vmem>>, vector<1x1x512xf32>
    %13 = vector.shape_cast %12 : vector<1x1x512xf32> to vector<1x512xf32>
    %14 = vector.shape_cast %13 : vector<1x512xf32> to vector<1x512xf32>
    %15 = vector.broadcast %14 : vector<1x512xf32> to vector<8x512xf32>
    %c0_14 = arith.constant 0 : index
    %c0_15 = arith.constant 0 : index
    %16 = vector.load %arg10[%c0_14, %c0_15] : memref<64x512xf32, #tpu.memory_space<vmem>>, vector<8x512xf32>
    %c0_16 = arith.constant 0 : index
    %c0_17 = arith.constant 0 : index
    %c0_18 = arith.constant 0 : index
    %17 = vector.load %arg3[%c0_16, %c0_17, %c0_18] : memref<2x128x512xf32, #tpu.memory_space<vmem>>, vector<1x128x512xf32>
    %18 = vector.shape_cast %17 : vector<1x128x512xf32> to vector<128x512xf32>
    %cst_19 = arith.constant dense<0.000000e+00> : vector<8x512xf32>
    %19 = tpu.matmul %8, %18, %cst_19 {dimension_numbers = #tpu.dot_dimension_numbers<[1], [0], [0], [1], [0, 0, 1, 1], [], []>} : vector<8x128xf32>, vector<128x512xf32>, vector<8x512xf32> -> vector<8x512xf32>
    %20 = arith.addf %16, %19 : vector<8x512xf32>
    %21 = vector.extract_strided_slice %20 {offsets = [0, 0], sizes = [8, 384], strides = [1, 1]} : vector<8x512xf32> to vector<8x384xf32>
    %22 = arith.negf %21 : vector<8x384xf32>
    %23 = math.exp %22 : vector<8x384xf32>
    %cst_20 = arith.constant 1.000000e+00 : f32
    %24 = vector.broadcast %cst_20 : f32 to vector<8x384xf32>
    %25 = arith.addf %24, %23 : vector<8x384xf32>
    %26 = arith.divf %24, %25 : vector<8x384xf32>
    %27 = vector.extract_strided_slice %20 {offsets = [0, 384], sizes = [8, 128], strides = [1, 1]} : vector<8x512xf32> to vector<8x128xf32>
    %28 = math.tanh %27 : vector<8x128xf32>
    %29 = vector.extract_strided_slice %26 {offsets = [0, 0], sizes = [8, 128], strides = [1, 1]} : vector<8x384xf32> to vector<8x128xf32>
    %30 = vector.extract_strided_slice %26 {offsets = [0, 128], sizes = [8, 128], strides = [1, 1]} : vector<8x384xf32> to vector<8x128xf32>
    %31 = vector.extract_strided_slice %26 {offsets = [0, 256], sizes = [8, 128], strides = [1, 1]} : vector<8x384xf32> to vector<8x128xf32>
    %32 = arith.mulf %30, %10 : vector<8x128xf32>
    %33 = arith.mulf %29, %28 : vector<8x128xf32>
    %34 = arith.addf %32, %33 : vector<8x128xf32>
    %35 = math.tanh %34 : vector<8x128xf32>
    %36 = arith.mulf %31, %35 : vector<8x128xf32>
    %c0_21 = arith.constant 0 : index
    %c0_22 = arith.constant 0 : index
    %c0_23 = arith.constant 0 : index
    %37 = vector.load %arg2[%c0_21, %c0_22, %c0_23] : memref<1x128x512xf32, #tpu.memory_space<vmem>>, vector<1x128x512xf32>
    %38 = vector.shape_cast %37 : vector<1x128x512xf32> to vector<128x512xf32>
    %cst_24 = arith.constant dense<0.000000e+00> : vector<8x512xf32>
    %39 = tpu.matmul %36, %38, %cst_24 {dimension_numbers = #tpu.dot_dimension_numbers<[1], [0], [0], [1], [0, 0, 1, 1], [], []>} : vector<8x128xf32>, vector<128x512xf32>, vector<8x512xf32> -> vector<8x512xf32>
    %c1_25 = arith.constant 1 : index
    %c0_26 = arith.constant 0 : index
    %c0_27 = arith.constant 0 : index
    %40 = vector.load %arg3[%c1_25, %c0_26, %c0_27] : memref<2x128x512xf32, #tpu.memory_space<vmem>>, vector<1x128x512xf32>
    %41 = vector.shape_cast %40 : vector<1x128x512xf32> to vector<128x512xf32>
    %cst_28 = arith.constant dense<0.000000e+00> : vector<8x512xf32>
    %42 = tpu.matmul %9, %41, %cst_28 {dimension_numbers = #tpu.dot_dimension_numbers<[1], [0], [0], [1], [0, 0, 1, 1], [], []>} : vector<8x128xf32>, vector<128x512xf32>, vector<8x512xf32> -> vector<8x512xf32>
    %43 = arith.addf %39, %42 : vector<8x512xf32>
    %44 = arith.addf %43, %15 : vector<8x512xf32>
    %45 = vector.extract_strided_slice %44 {offsets = [0, 0], sizes = [8, 384], strides = [1, 1]} : vector<8x512xf32> to vector<8x384xf32>
    %46 = arith.negf %45 : vector<8x384xf32>
    %47 = math.exp %46 : vector<8x384xf32>
    %cst_29 = arith.constant 1.000000e+00 : f32
    %48 = vector.broadcast %cst_29 : f32 to vector<8x384xf32>
    %49 = arith.addf %48, %47 : vector<8x384xf32>
    %50 = arith.divf %48, %49 : vector<8x384xf32>
    %51 = vector.extract_strided_slice %44 {offsets = [0, 384], sizes = [8, 128], strides = [1, 1]} : vector<8x512xf32> to vector<8x128xf32>
    %52 = math.tanh %51 : vector<8x128xf32>
    %53 = vector.extract_strided_slice %50 {offsets = [0, 0], sizes = [8, 128], strides = [1, 1]} : vector<8x384xf32> to vector<8x128xf32>
    %54 = vector.extract_strided_slice %50 {offsets = [0, 128], sizes = [8, 128], strides = [1, 1]} : vector<8x384xf32> to vector<8x128xf32>
    %55 = vector.extract_strided_slice %50 {offsets = [0, 256], sizes = [8, 128], strides = [1, 1]} : vector<8x384xf32> to vector<8x128xf32>
    %56 = arith.mulf %54, %11 : vector<8x128xf32>
    %57 = arith.mulf %53, %52 : vector<8x128xf32>
    %58 = arith.addf %56, %57 : vector<8x128xf32>
    %59 = math.tanh %58 : vector<8x128xf32>
    %60 = arith.mulf %55, %59 : vector<8x128xf32>
    %c8 = arith.constant 8 : index
    %c0_30 = arith.constant 0 : index
    %61 = vector.load %arg10[%c8, %c0_30] : memref<64x512xf32, #tpu.memory_space<vmem>>, vector<8x512xf32>
    %c0_31 = arith.constant 0 : index
    %c0_32 = arith.constant 0 : index
    %c0_33 = arith.constant 0 : index
    %62 = vector.load %arg3[%c0_31, %c0_32, %c0_33] : memref<2x128x512xf32, #tpu.memory_space<vmem>>, vector<1x128x512xf32>
    %63 = vector.shape_cast %62 : vector<1x128x512xf32> to vector<128x512xf32>
    %cst_34 = arith.constant dense<0.000000e+00> : vector<8x512xf32>
    %64 = tpu.matmul %36, %63, %cst_34 {dimension_numbers = #tpu.dot_dimension_numbers<[1], [0], [0], [1], [0, 0, 1, 1], [], []>} : vector<8x128xf32>, vector<128x512xf32>, vector<8x512xf32> -> vector<8x512xf32>
    %65 = arith.addf %61, %64 : vector<8x512xf32>
    %66 = vector.extract_strided_slice %65 {offsets = [0, 0], sizes = [8, 384], strides = [1, 1]} : vector<8x512xf32> to vector<8x384xf32>
    %67 = arith.negf %66 : vector<8x384xf32>
    %68 = math.exp %67 : vector<8x384xf32>
    %cst_35 = arith.constant 1.000000e+00 : f32
    %69 = vector.broadcast %cst_35 : f32 to vector<8x384xf32>
    %70 = arith.addf %69, %68 : vector<8x384xf32>
    %71 = arith.divf %69, %70 : vector<8x384xf32>
    %72 = vector.extract_strided_slice %65 {offsets = [0, 384], sizes = [8, 128], strides = [1, 1]} : vector<8x512xf32> to vector<8x128xf32>
    %73 = math.tanh %72 : vector<8x128xf32>
    %74 = vector.extract_strided_slice %71 {offsets = [0, 0], sizes = [8, 128], strides = [1, 1]} : vector<8x384xf32> to vector<8x128xf32>
    %75 = vector.extract_strided_slice %71 {offsets = [0, 128], sizes = [8, 128], strides = [1, 1]} : vector<8x384xf32> to vector<8x128xf32>
    %76 = vector.extract_strided_slice %71 {offsets = [0, 256], sizes = [8, 128], strides = [1, 1]} : vector<8x384xf32> to vector<8x128xf32>
    %77 = arith.mulf %75, %34 : vector<8x128xf32>
    %78 = arith.mulf %74, %73 : vector<8x128xf32>
    %79 = arith.addf %77, %78 : vector<8x128xf32>
    %80 = math.tanh %79 : vector<8x128xf32>
    %81 = arith.mulf %76, %80 : vector<8x128xf32>
    %c0_36 = arith.constant 0 : index
    %c0_37 = arith.constant 0 : index
    %c0_38 = arith.constant 0 : index
    %82 = vector.load %arg2[%c0_36, %c0_37, %c0_38] : memref<1x128x512xf32, #tpu.memory_space<vmem>>, vector<1x128x512xf32>
    %83 = vector.shape_cast %82 : vector<1x128x512xf32> to vector<128x512xf32>
    %cst_39 = arith.constant dense<0.000000e+00> : vector<8x512xf32>
    %84 = tpu.matmul %81, %83, %cst_39 {dimension_numbers = #tpu.dot_dimension_numbers<[1], [0], [0], [1], [0, 0, 1, 1], [], []>} : vector<8x128xf32>, vector<128x512xf32>, vector<8x512xf32> -> vector<8x512xf32>
    %c1_40 = arith.constant 1 : index
    %c0_41 = arith.constant 0 : index
    %c0_42 = arith.constant 0 : index
    %85 = vector.load %arg3[%c1_40, %c0_41, %c0_42] : memref<2x128x512xf32, #tpu.memory_space<vmem>>, vector<1x128x512xf32>
    %86 = vector.shape_cast %85 : vector<1x128x512xf32> to vector<128x512xf32>
    %cst_43 = arith.constant dense<0.000000e+00> : vector<8x512xf32>
    %87 = tpu.matmul %60, %86, %cst_43 {dimension_numbers = #tpu.dot_dimension_numbers<[1], [0], [0], [1], [0, 0, 1, 1], [], []>} : vector<8x128xf32>, vector<128x512xf32>, vector<8x512xf32> -> vector<8x512xf32>
    %88 = arith.addf %84, %87 : vector<8x512xf32>
    %89 = arith.addf %88, %15 : vector<8x512xf32>
    %90 = vector.extract_strided_slice %89 {offsets = [0, 0], sizes = [8, 384], strides = [1, 1]} : vector<8x512xf32> to vector<8x384xf32>
    %91 = arith.negf %90 : vector<8x384xf32>
    %92 = math.exp %91 : vector<8x384xf32>
    %cst_44 = arith.constant 1.000000e+00 : f32
    %93 = vector.broadcast %cst_44 : f32 to vector<8x384xf32>
    %94 = arith.addf %93, %92 : vector<8x384xf32>
    %95 = arith.divf %93, %94 : vector<8x384xf32>
    %96 = vector.extract_strided_slice %89 {offsets = [0, 384], sizes = [8, 128], strides = [1, 1]} : vector<8x512xf32> to vector<8x128xf32>
    %97 = math.tanh %96 : vector<8x128xf32>
    %98 = vector.extract_strided_slice %95 {offsets = [0, 0], sizes = [8, 128], strides = [1, 1]} : vector<8x384xf32> to vector<8x128xf32>
    %99 = vector.extract_strided_slice %95 {offsets = [0, 128], sizes = [8, 128], strides = [1, 1]} : vector<8x384xf32> to vector<8x128xf32>
    %100 = vector.extract_strided_slice %95 {offsets = [0, 256], sizes = [8, 128], strides = [1, 1]} : vector<8x384xf32> to vector<8x128xf32>
    %101 = arith.mulf %99, %58 : vector<8x128xf32>
    %102 = arith.mulf %98, %97 : vector<8x128xf32>
    %103 = arith.addf %101, %102 : vector<8x128xf32>
    %104 = math.tanh %103 : vector<8x128xf32>
    %105 = arith.mulf %100, %104 : vector<8x128xf32>
    %c16 = arith.constant 16 : index
    %c0_45 = arith.constant 0 : index
    %106 = vector.load %arg10[%c16, %c0_45] : memref<64x512xf32, #tpu.memory_space<vmem>>, vector<8x512xf32>
    %c0_46 = arith.constant 0 : index
    %c0_47 = arith.constant 0 : index
    %c0_48 = arith.constant 0 : index
    %107 = vector.load %arg3[%c0_46, %c0_47, %c0_48] : memref<2x128x512xf32, #tpu.memory_space<vmem>>, vector<1x128x512xf32>
    %108 = vector.shape_cast %107 : vector<1x128x512xf32> to vector<128x512xf32>
    %cst_49 = arith.constant dense<0.000000e+00> : vector<8x512xf32>
    %109 = tpu.matmul %81, %108, %cst_49 {dimension_numbers = #tpu.dot_dimension_numbers<[1], [0], [0], [1], [0, 0, 1, 1], [], []>} : vector<8x128xf32>, vector<128x512xf32>, vector<8x512xf32> -> vector<8x512xf32>
    %110 = arith.addf %106, %109 : vector<8x512xf32>
    %111 = vector.extract_strided_slice %110 {offsets = [0, 0], sizes = [8, 384], strides = [1, 1]} : vector<8x512xf32> to vector<8x384xf32>
    %112 = arith.negf %111 : vector<8x384xf32>
    %113 = math.exp %112 : vector<8x384xf32>
    %cst_50 = arith.constant 1.000000e+00 : f32
    %114 = vector.broadcast %cst_50 : f32 to vector<8x384xf32>
    %115 = arith.addf %114, %113 : vector<8x384xf32>
    %116 = arith.divf %114, %115 : vector<8x384xf32>
    %117 = vector.extract_strided_slice %110 {offsets = [0, 384], sizes = [8, 128], strides = [1, 1]} : vector<8x512xf32> to vector<8x128xf32>
    %118 = math.tanh %117 : vector<8x128xf32>
    %119 = vector.extract_strided_slice %116 {offsets = [0, 0], sizes = [8, 128], strides = [1, 1]} : vector<8x384xf32> to vector<8x128xf32>
    %120 = vector.extract_strided_slice %116 {offsets = [0, 128], sizes = [8, 128], strides = [1, 1]} : vector<8x384xf32> to vector<8x128xf32>
    %121 = vector.extract_strided_slice %116 {offsets = [0, 256], sizes = [8, 128], strides = [1, 1]} : vector<8x384xf32> to vector<8x128xf32>
    %122 = arith.mulf %120, %79 : vector<8x128xf32>
    %123 = arith.mulf %119, %118 : vector<8x128xf32>
    %124 = arith.addf %122, %123 : vector<8x128xf32>
    %125 = math.tanh %124 : vector<8x128xf32>
    %126 = arith.mulf %121, %125 : vector<8x128xf32>
    %c0_51 = arith.constant 0 : index
    %c0_52 = arith.constant 0 : index
    %c0_53 = arith.constant 0 : index
    %127 = vector.load %arg2[%c0_51, %c0_52, %c0_53] : memref<1x128x512xf32, #tpu.memory_space<vmem>>, vector<1x128x512xf32>
    %128 = vector.shape_cast %127 : vector<1x128x512xf32> to vector<128x512xf32>
    %cst_54 = arith.constant dense<0.000000e+00> : vector<8x512xf32>
    %129 = tpu.matmul %126, %128, %cst_54 {dimension_numbers = #tpu.dot_dimension_numbers<[1], [0], [0], [1], [0, 0, 1, 1], [], []>} : vector<8x128xf32>, vector<128x512xf32>, vector<8x512xf32> -> vector<8x512xf32>
    %c1_55 = arith.constant 1 : index
    %c0_56 = arith.constant 0 : index
    %c0_57 = arith.constant 0 : index
    %130 = vector.load %arg3[%c1_55, %c0_56, %c0_57] : memref<2x128x512xf32, #tpu.memory_space<vmem>>, vector<1x128x512xf32>
    %131 = vector.shape_cast %130 : vector<1x128x512xf32> to vector<128x512xf32>
    %cst_58 = arith.constant dense<0.000000e+00> : vector<8x512xf32>
    %132 = tpu.matmul %105, %131, %cst_58 {dimension_numbers = #tpu.dot_dimension_numbers<[1], [0], [0], [1], [0, 0, 1, 1], [], []>} : vector<8x128xf32>, vector<128x512xf32>, vector<8x512xf32> -> vector<8x512xf32>
    %133 = arith.addf %129, %132 : vector<8x512xf32>
    %134 = arith.addf %133, %15 : vector<8x512xf32>
    %135 = vector.extract_strided_slice %134 {offsets = [0, 0], sizes = [8, 384], strides = [1, 1]} : vector<8x512xf32> to vector<8x384xf32>
    %136 = arith.negf %135 : vector<8x384xf32>
    %137 = math.exp %136 : vector<8x384xf32>
    %cst_59 = arith.constant 1.000000e+00 : f32
    %138 = vector.broadcast %cst_59 : f32 to vector<8x384xf32>
    %139 = arith.addf %138, %137 : vector<8x384xf32>
    %140 = arith.divf %138, %139 : vector<8x384xf32>
    %141 = vector.extract_strided_slice %134 {offsets = [0, 384], sizes = [8, 128], strides = [1, 1]} : vector<8x512xf32> to vector<8x128xf32>
    %142 = math.tanh %141 : vector<8x128xf32>
    %143 = vector.extract_strided_slice %140 {offsets = [0, 0], sizes = [8, 128], strides = [1, 1]} : vector<8x384xf32> to vector<8x128xf32>
    %144 = vector.extract_strided_slice %140 {offsets = [0, 128], sizes = [8, 128], strides = [1, 1]} : vector<8x384xf32> to vector<8x128xf32>
    %145 = vector.extract_strided_slice %140 {offsets = [0, 256], sizes = [8, 128], strides = [1, 1]} : vector<8x384xf32> to vector<8x128xf32>
    %146 = arith.mulf %144, %103 : vector<8x128xf32>
    %147 = arith.mulf %143, %142 : vector<8x128xf32>
    %148 = arith.addf %146, %147 : vector<8x128xf32>
    %149 = math.tanh %148 : vector<8x128xf32>
    %150 = arith.mulf %145, %149 : vector<8x128xf32>
    %c24 = arith.constant 24 : index
    %c0_60 = arith.constant 0 : index
    %151 = vector.load %arg10[%c24, %c0_60] : memref<64x512xf32, #tpu.memory_space<vmem>>, vector<8x512xf32>
    %c0_61 = arith.constant 0 : index
    %c0_62 = arith.constant 0 : index
    %c0_63 = arith.constant 0 : index
    %152 = vector.load %arg3[%c0_61, %c0_62, %c0_63] : memref<2x128x512xf32, #tpu.memory_space<vmem>>, vector<1x128x512xf32>
    %153 = vector.shape_cast %152 : vector<1x128x512xf32> to vector<128x512xf32>
    %cst_64 = arith.constant dense<0.000000e+00> : vector<8x512xf32>
    %154 = tpu.matmul %126, %153, %cst_64 {dimension_numbers = #tpu.dot_dimension_numbers<[1], [0], [0], [1], [0, 0, 1, 1], [], []>} : vector<8x128xf32>, vector<128x512xf32>, vector<8x512xf32> -> vector<8x512xf32>
    %155 = arith.addf %151, %154 : vector<8x512xf32>
    %156 = vector.extract_strided_slice %155 {offsets = [0, 0], sizes = [8, 384], strides = [1, 1]} : vector<8x512xf32> to vector<8x384xf32>
    %157 = arith.negf %156 : vector<8x384xf32>
    %158 = math.exp %157 : vector<8x384xf32>
    %cst_65 = arith.constant 1.000000e+00 : f32
    %159 = vector.broadcast %cst_65 : f32 to vector<8x384xf32>
    %160 = arith.addf %159, %158 : vector<8x384xf32>
    %161 = arith.divf %159, %160 : vector<8x384xf32>
    %162 = vector.extract_strided_slice %155 {offsets = [0, 384], sizes = [8, 128], strides = [1, 1]} : vector<8x512xf32> to vector<8x128xf32>
    %163 = math.tanh %162 : vector<8x128xf32>
    %164 = vector.extract_strided_slice %161 {offsets = [0, 0], sizes = [8, 128], strides = [1, 1]} : vector<8x384xf32> to vector<8x128xf32>
    %165 = vector.extract_strided_slice %161 {offsets = [0, 128], sizes = [8, 128], strides = [1, 1]} : vector<8x384xf32> to vector<8x128xf32>
    %166 = vector.extract_strided_slice %161 {offsets = [0, 256], sizes = [8, 128], strides = [1, 1]} : vector<8x384xf32> to vector<8x128xf32>
    %167 = arith.mulf %165, %124 : vector<8x128xf32>
    %168 = arith.mulf %164, %163 : vector<8x128xf32>
    %169 = arith.addf %167, %168 : vector<8x128xf32>
    %170 = math.tanh %169 : vector<8x128xf32>
    %171 = arith.mulf %166, %170 : vector<8x128xf32>
    %c0_66 = arith.constant 0 : index
    %c0_67 = arith.constant 0 : index
    %c0_68 = arith.constant 0 : index
    %172 = vector.load %arg2[%c0_66, %c0_67, %c0_68] : memref<1x128x512xf32, #tpu.memory_space<vmem>>, vector<1x128x512xf32>
    %173 = vector.shape_cast %172 : vector<1x128x512xf32> to vector<128x512xf32>
    %cst_69 = arith.constant dense<0.000000e+00> : vector<8x512xf32>
    %174 = tpu.matmul %171, %173, %cst_69 {dimension_numbers = #tpu.dot_dimension_numbers<[1], [0], [0], [1], [0, 0, 1, 1], [], []>} : vector<8x128xf32>, vector<128x512xf32>, vector<8x512xf32> -> vector<8x512xf32>
    %c1_70 = arith.constant 1 : index
    %c0_71 = arith.constant 0 : index
    %c0_72 = arith.constant 0 : index
    %175 = vector.load %arg3[%c1_70, %c0_71, %c0_72] : memref<2x128x512xf32, #tpu.memory_space<vmem>>, vector<1x128x512xf32>
    %176 = vector.shape_cast %175 : vector<1x128x512xf32> to vector<128x512xf32>
    %cst_73 = arith.constant dense<0.000000e+00> : vector<8x512xf32>
    %177 = tpu.matmul %150, %176, %cst_73 {dimension_numbers = #tpu.dot_dimension_numbers<[1], [0], [0], [1], [0, 0, 1, 1], [], []>} : vector<8x128xf32>, vector<128x512xf32>, vector<8x512xf32> -> vector<8x512xf32>
    %178 = arith.addf %174, %177 : vector<8x512xf32>
    %179 = arith.addf %178, %15 : vector<8x512xf32>
    %180 = vector.extract_strided_slice %179 {offsets = [0, 0], sizes = [8, 384], strides = [1, 1]} : vector<8x512xf32> to vector<8x384xf32>
    %181 = arith.negf %180 : vector<8x384xf32>
    %182 = math.exp %181 : vector<8x384xf32>
    %cst_74 = arith.constant 1.000000e+00 : f32
    %183 = vector.broadcast %cst_74 : f32 to vector<8x384xf32>
    %184 = arith.addf %183, %182 : vector<8x384xf32>
    %185 = arith.divf %183, %184 : vector<8x384xf32>
    %186 = vector.extract_strided_slice %179 {offsets = [0, 384], sizes = [8, 128], strides = [1, 1]} : vector<8x512xf32> to vector<8x128xf32>
    %187 = math.tanh %186 : vector<8x128xf32>
    %188 = vector.extract_strided_slice %185 {offsets = [0, 0], sizes = [8, 128], strides = [1, 1]} : vector<8x384xf32> to vector<8x128xf32>
    %189 = vector.extract_strided_slice %185 {offsets = [0, 128], sizes = [8, 128], strides = [1, 1]} : vector<8x384xf32> to vector<8x128xf32>
    %190 = vector.extract_strided_slice %185 {offsets = [0, 256], sizes = [8, 128], strides = [1, 1]} : vector<8x384xf32> to vector<8x128xf32>
    %191 = arith.mulf %189, %148 : vector<8x128xf32>
    %192 = arith.mulf %188, %187 : vector<8x128xf32>
    %193 = arith.addf %191, %192 : vector<8x128xf32>
    %194 = math.tanh %193 : vector<8x128xf32>
    %195 = arith.mulf %190, %194 : vector<8x128xf32>
    %c32 = arith.constant 32 : index
    %c0_75 = arith.constant 0 : index
    %196 = vector.load %arg10[%c32, %c0_75] : memref<64x512xf32, #tpu.memory_space<vmem>>, vector<8x512xf32>
    %c0_76 = arith.constant 0 : index
    %c0_77 = arith.constant 0 : index
    %c0_78 = arith.constant 0 : index
    %197 = vector.load %arg3[%c0_76, %c0_77, %c0_78] : memref<2x128x512xf32, #tpu.memory_space<vmem>>, vector<1x128x512xf32>
    %198 = vector.shape_cast %197 : vector<1x128x512xf32> to vector<128x512xf32>
    %cst_79 = arith.constant dense<0.000000e+00> : vector<8x512xf32>
    %199 = tpu.matmul %171, %198, %cst_79 {dimension_numbers = #tpu.dot_dimension_numbers<[1], [0], [0], [1], [0, 0, 1, 1], [], []>} : vector<8x128xf32>, vector<128x512xf32>, vector<8x512xf32> -> vector<8x512xf32>
    %200 = arith.addf %196, %199 : vector<8x512xf32>
    %201 = vector.extract_strided_slice %200 {offsets = [0, 0], sizes = [8, 384], strides = [1, 1]} : vector<8x512xf32> to vector<8x384xf32>
    %202 = arith.negf %201 : vector<8x384xf32>
    %203 = math.exp %202 : vector<8x384xf32>
    %cst_80 = arith.constant 1.000000e+00 : f32
    %204 = vector.broadcast %cst_80 : f32 to vector<8x384xf32>
    %205 = arith.addf %204, %203 : vector<8x384xf32>
    %206 = arith.divf %204, %205 : vector<8x384xf32>
    %207 = vector.extract_strided_slice %200 {offsets = [0, 384], sizes = [8, 128], strides = [1, 1]} : vector<8x512xf32> to vector<8x128xf32>
    %208 = math.tanh %207 : vector<8x128xf32>
    %209 = vector.extract_strided_slice %206 {offsets = [0, 0], sizes = [8, 128], strides = [1, 1]} : vector<8x384xf32> to vector<8x128xf32>
    %210 = vector.extract_strided_slice %206 {offsets = [0, 128], sizes = [8, 128], strides = [1, 1]} : vector<8x384xf32> to vector<8x128xf32>
    %211 = vector.extract_strided_slice %206 {offsets = [0, 256], sizes = [8, 128], strides = [1, 1]} : vector<8x384xf32> to vector<8x128xf32>
    %212 = arith.mulf %210, %169 : vector<8x128xf32>
    %213 = arith.mulf %209, %208 : vector<8x128xf32>
    %214 = arith.addf %212, %213 : vector<8x128xf32>
    %215 = math.tanh %214 : vector<8x128xf32>
    %216 = arith.mulf %211, %215 : vector<8x128xf32>
    %c0_81 = arith.constant 0 : index
    %c0_82 = arith.constant 0 : index
    %c0_83 = arith.constant 0 : index
    %217 = vector.load %arg2[%c0_81, %c0_82, %c0_83] : memref<1x128x512xf32, #tpu.memory_space<vmem>>, vector<1x128x512xf32>
    %218 = vector.shape_cast %217 : vector<1x128x512xf32> to vector<128x512xf32>
    %cst_84 = arith.constant dense<0.000000e+00> : vector<8x512xf32>
    %219 = tpu.matmul %216, %218, %cst_84 {dimension_numbers = #tpu.dot_dimension_numbers<[1], [0], [0], [1], [0, 0, 1, 1], [], []>} : vector<8x128xf32>, vector<128x512xf32>, vector<8x512xf32> -> vector<8x512xf32>
    %c1_85 = arith.constant 1 : index
    %c0_86 = arith.constant 0 : index
    %c0_87 = arith.constant 0 : index
    %220 = vector.load %arg3[%c1_85, %c0_86, %c0_87] : memref<2x128x512xf32, #tpu.memory_space<vmem>>, vector<1x128x512xf32>
    %221 = vector.shape_cast %220 : vector<1x128x512xf32> to vector<128x512xf32>
    %cst_88 = arith.constant dense<0.000000e+00> : vector<8x512xf32>
    %222 = tpu.matmul %195, %221, %cst_88 {dimension_numbers = #tpu.dot_dimension_numbers<[1], [0], [0], [1], [0, 0, 1, 1], [], []>} : vector<8x128xf32>, vector<128x512xf32>, vector<8x512xf32> -> vector<8x512xf32>
    %223 = arith.addf %219, %222 : vector<8x512xf32>
    %224 = arith.addf %223, %15 : vector<8x512xf32>
    %225 = vector.extract_strided_slice %224 {offsets = [0, 0], sizes = [8, 384], strides = [1, 1]} : vector<8x512xf32> to vector<8x384xf32>
    %226 = arith.negf %225 : vector<8x384xf32>
    %227 = math.exp %226 : vector<8x384xf32>
    %cst_89 = arith.constant 1.000000e+00 : f32
    %228 = vector.broadcast %cst_89 : f32 to vector<8x384xf32>
    %229 = arith.addf %228, %227 : vector<8x384xf32>
    %230 = arith.divf %228, %229 : vector<8x384xf32>
    %231 = vector.extract_strided_slice %224 {offsets = [0, 384], sizes = [8, 128], strides = [1, 1]} : vector<8x512xf32> to vector<8x128xf32>
    %232 = math.tanh %231 : vector<8x128xf32>
    %233 = vector.extract_strided_slice %230 {offsets = [0, 0], sizes = [8, 128], strides = [1, 1]} : vector<8x384xf32> to vector<8x128xf32>
    %234 = vector.extract_strided_slice %230 {offsets = [0, 128], sizes = [8, 128], strides = [1, 1]} : vector<8x384xf32> to vector<8x128xf32>
    %235 = vector.extract_strided_slice %230 {offsets = [0, 256], sizes = [8, 128], strides = [1, 1]} : vector<8x384xf32> to vector<8x128xf32>
    %236 = arith.mulf %234, %193 : vector<8x128xf32>
    %237 = arith.mulf %233, %232 : vector<8x128xf32>
    %238 = arith.addf %236, %237 : vector<8x128xf32>
    %239 = math.tanh %238 : vector<8x128xf32>
    %240 = arith.mulf %235, %239 : vector<8x128xf32>
    %c40 = arith.constant 40 : index
    %c0_90 = arith.constant 0 : index
    %241 = vector.load %arg10[%c40, %c0_90] : memref<64x512xf32, #tpu.memory_space<vmem>>, vector<8x512xf32>
    %c0_91 = arith.constant 0 : index
    %c0_92 = arith.constant 0 : index
    %c0_93 = arith.constant 0 : index
    %242 = vector.load %arg3[%c0_91, %c0_92, %c0_93] : memref<2x128x512xf32, #tpu.memory_space<vmem>>, vector<1x128x512xf32>
    %243 = vector.shape_cast %242 : vector<1x128x512xf32> to vector<128x512xf32>
    %cst_94 = arith.constant dense<0.000000e+00> : vector<8x512xf32>
    %244 = tpu.matmul %216, %243, %cst_94 {dimension_numbers = #tpu.dot_dimension_numbers<[1], [0], [0], [1], [0, 0, 1, 1], [], []>} : vector<8x128xf32>, vector<128x512xf32>, vector<8x512xf32> -> vector<8x512xf32>
    %245 = arith.addf %241, %244 : vector<8x512xf32>
    %246 = vector.extract_strided_slice %245 {offsets = [0, 0], sizes = [8, 384], strides = [1, 1]} : vector<8x512xf32> to vector<8x384xf32>
    %247 = arith.negf %246 : vector<8x384xf32>
    %248 = math.exp %247 : vector<8x384xf32>
    %cst_95 = arith.constant 1.000000e+00 : f32
    %249 = vector.broadcast %cst_95 : f32 to vector<8x384xf32>
    %250 = arith.addf %249, %248 : vector<8x384xf32>
    %251 = arith.divf %249, %250 : vector<8x384xf32>
    %252 = vector.extract_strided_slice %245 {offsets = [0, 384], sizes = [8, 128], strides = [1, 1]} : vector<8x512xf32> to vector<8x128xf32>
    %253 = math.tanh %252 : vector<8x128xf32>
    %254 = vector.extract_strided_slice %251 {offsets = [0, 0], sizes = [8, 128], strides = [1, 1]} : vector<8x384xf32> to vector<8x128xf32>
    %255 = vector.extract_strided_slice %251 {offsets = [0, 128], sizes = [8, 128], strides = [1, 1]} : vector<8x384xf32> to vector<8x128xf32>
    %256 = vector.extract_strided_slice %251 {offsets = [0, 256], sizes = [8, 128], strides = [1, 1]} : vector<8x384xf32> to vector<8x128xf32>
    %257 = arith.mulf %255, %214 : vector<8x128xf32>
    %258 = arith.mulf %254, %253 : vector<8x128xf32>
    %259 = arith.addf %257, %258 : vector<8x128xf32>
    %260 = math.tanh %259 : vector<8x128xf32>
    %261 = arith.mulf %256, %260 : vector<8x128xf32>
    %c0_96 = arith.constant 0 : index
    %c0_97 = arith.constant 0 : index
    %c0_98 = arith.constant 0 : index
    %262 = vector.load %arg2[%c0_96, %c0_97, %c0_98] : memref<1x128x512xf32, #tpu.memory_space<vmem>>, vector<1x128x512xf32>
    %263 = vector.shape_cast %262 : vector<1x128x512xf32> to vector<128x512xf32>
    %cst_99 = arith.constant dense<0.000000e+00> : vector<8x512xf32>
    %264 = tpu.matmul %261, %263, %cst_99 {dimension_numbers = #tpu.dot_dimension_numbers<[1], [0], [0], [1], [0, 0, 1, 1], [], []>} : vector<8x128xf32>, vector<128x512xf32>, vector<8x512xf32> -> vector<8x512xf32>
    %c1_100 = arith.constant 1 : index
    %c0_101 = arith.constant 0 : index
    %c0_102 = arith.constant 0 : index
    %265 = vector.load %arg3[%c1_100, %c0_101, %c0_102] : memref<2x128x512xf32, #tpu.memory_space<vmem>>, vector<1x128x512xf32>
    %266 = vector.shape_cast %265 : vector<1x128x512xf32> to vector<128x512xf32>
    %cst_103 = arith.constant dense<0.000000e+00> : vector<8x512xf32>
    %267 = tpu.matmul %240, %266, %cst_103 {dimension_numbers = #tpu.dot_dimension_numbers<[1], [0], [0], [1], [0, 0, 1, 1], [], []>} : vector<8x128xf32>, vector<128x512xf32>, vector<8x512xf32> -> vector<8x512xf32>
    %268 = arith.addf %264, %267 : vector<8x512xf32>
    %269 = arith.addf %268, %15 : vector<8x512xf32>
    %270 = vector.extract_strided_slice %269 {offsets = [0, 0], sizes = [8, 384], strides = [1, 1]} : vector<8x512xf32> to vector<8x384xf32>
    %271 = arith.negf %270 : vector<8x384xf32>
    %272 = math.exp %271 : vector<8x384xf32>
    %cst_104 = arith.constant 1.000000e+00 : f32
    %273 = vector.broadcast %cst_104 : f32 to vector<8x384xf32>
    %274 = arith.addf %273, %272 : vector<8x384xf32>
    %275 = arith.divf %273, %274 : vector<8x384xf32>
    %276 = vector.extract_strided_slice %269 {offsets = [0, 384], sizes = [8, 128], strides = [1, 1]} : vector<8x512xf32> to vector<8x128xf32>
    %277 = math.tanh %276 : vector<8x128xf32>
    %278 = vector.extract_strided_slice %275 {offsets = [0, 0], sizes = [8, 128], strides = [1, 1]} : vector<8x384xf32> to vector<8x128xf32>
    %279 = vector.extract_strided_slice %275 {offsets = [0, 128], sizes = [8, 128], strides = [1, 1]} : vector<8x384xf32> to vector<8x128xf32>
    %280 = vector.extract_strided_slice %275 {offsets = [0, 256], sizes = [8, 128], strides = [1, 1]} : vector<8x384xf32> to vector<8x128xf32>
    %281 = arith.mulf %279, %238 : vector<8x128xf32>
    %282 = arith.mulf %278, %277 : vector<8x128xf32>
    %283 = arith.addf %281, %282 : vector<8x128xf32>
    %284 = math.tanh %283 : vector<8x128xf32>
    %285 = arith.mulf %280, %284 : vector<8x128xf32>
    %c48 = arith.constant 48 : index
    %c0_105 = arith.constant 0 : index
    %286 = vector.load %arg10[%c48, %c0_105] : memref<64x512xf32, #tpu.memory_space<vmem>>, vector<8x512xf32>
    %c0_106 = arith.constant 0 : index
    %c0_107 = arith.constant 0 : index
    %c0_108 = arith.constant 0 : index
    %287 = vector.load %arg3[%c0_106, %c0_107, %c0_108] : memref<2x128x512xf32, #tpu.memory_space<vmem>>, vector<1x128x512xf32>
    %288 = vector.shape_cast %287 : vector<1x128x512xf32> to vector<128x512xf32>
    %cst_109 = arith.constant dense<0.000000e+00> : vector<8x512xf32>
    %289 = tpu.matmul %261, %288, %cst_109 {dimension_numbers = #tpu.dot_dimension_numbers<[1], [0], [0], [1], [0, 0, 1, 1], [], []>} : vector<8x128xf32>, vector<128x512xf32>, vector<8x512xf32> -> vector<8x512xf32>
    %290 = arith.addf %286, %289 : vector<8x512xf32>
    %291 = vector.extract_strided_slice %290 {offsets = [0, 0], sizes = [8, 384], strides = [1, 1]} : vector<8x512xf32> to vector<8x384xf32>
    %292 = arith.negf %291 : vector<8x384xf32>
    %293 = math.exp %292 : vector<8x384xf32>
    %cst_110 = arith.constant 1.000000e+00 : f32
    %294 = vector.broadcast %cst_110 : f32 to vector<8x384xf32>
    %295 = arith.addf %294, %293 : vector<8x384xf32>
    %296 = arith.divf %294, %295 : vector<8x384xf32>
    %297 = vector.extract_strided_slice %290 {offsets = [0, 384], sizes = [8, 128], strides = [1, 1]} : vector<8x512xf32> to vector<8x128xf32>
    %298 = math.tanh %297 : vector<8x128xf32>
    %299 = vector.extract_strided_slice %296 {offsets = [0, 0], sizes = [8, 128], strides = [1, 1]} : vector<8x384xf32> to vector<8x128xf32>
    %300 = vector.extract_strided_slice %296 {offsets = [0, 128], sizes = [8, 128], strides = [1, 1]} : vector<8x384xf32> to vector<8x128xf32>
    %301 = vector.extract_strided_slice %296 {offsets = [0, 256], sizes = [8, 128], strides = [1, 1]} : vector<8x384xf32> to vector<8x128xf32>
    %302 = arith.mulf %300, %259 : vector<8x128xf32>
    %303 = arith.mulf %299, %298 : vector<8x128xf32>
    %304 = arith.addf %302, %303 : vector<8x128xf32>
    %305 = math.tanh %304 : vector<8x128xf32>
    %306 = arith.mulf %301, %305 : vector<8x128xf32>
    %c0_111 = arith.constant 0 : index
    %c0_112 = arith.constant 0 : index
    %c0_113 = arith.constant 0 : index
    %307 = vector.load %arg2[%c0_111, %c0_112, %c0_113] : memref<1x128x512xf32, #tpu.memory_space<vmem>>, vector<1x128x512xf32>
    %308 = vector.shape_cast %307 : vector<1x128x512xf32> to vector<128x512xf32>
    %cst_114 = arith.constant dense<0.000000e+00> : vector<8x512xf32>
    %309 = tpu.matmul %306, %308, %cst_114 {dimension_numbers = #tpu.dot_dimension_numbers<[1], [0], [0], [1], [0, 0, 1, 1], [], []>} : vector<8x128xf32>, vector<128x512xf32>, vector<8x512xf32> -> vector<8x512xf32>
    %c1_115 = arith.constant 1 : index
    %c0_116 = arith.constant 0 : index
    %c0_117 = arith.constant 0 : index
    %310 = vector.load %arg3[%c1_115, %c0_116, %c0_117] : memref<2x128x512xf32, #tpu.memory_space<vmem>>, vector<1x128x512xf32>
    %311 = vector.shape_cast %310 : vector<1x128x512xf32> to vector<128x512xf32>
    %cst_118 = arith.constant dense<0.000000e+00> : vector<8x512xf32>
    %312 = tpu.matmul %285, %311, %cst_118 {dimension_numbers = #tpu.dot_dimension_numbers<[1], [0], [0], [1], [0, 0, 1, 1], [], []>} : vector<8x128xf32>, vector<128x512xf32>, vector<8x512xf32> -> vector<8x512xf32>
    %313 = arith.addf %309, %312 : vector<8x512xf32>
    %314 = arith.addf %313, %15 : vector<8x512xf32>
    %315 = vector.extract_strided_slice %314 {offsets = [0, 0], sizes = [8, 384], strides = [1, 1]} : vector<8x512xf32> to vector<8x384xf32>
    %316 = arith.negf %315 : vector<8x384xf32>
    %317 = math.exp %316 : vector<8x384xf32>
    %cst_119 = arith.constant 1.000000e+00 : f32
    %318 = vector.broadcast %cst_119 : f32 to vector<8x384xf32>
    %319 = arith.addf %318, %317 : vector<8x384xf32>
    %320 = arith.divf %318, %319 : vector<8x384xf32>
    %321 = vector.extract_strided_slice %314 {offsets = [0, 384], sizes = [8, 128], strides = [1, 1]} : vector<8x512xf32> to vector<8x128xf32>
    %322 = math.tanh %321 : vector<8x128xf32>
    %323 = vector.extract_strided_slice %320 {offsets = [0, 0], sizes = [8, 128], strides = [1, 1]} : vector<8x384xf32> to vector<8x128xf32>
    %324 = vector.extract_strided_slice %320 {offsets = [0, 128], sizes = [8, 128], strides = [1, 1]} : vector<8x384xf32> to vector<8x128xf32>
    %325 = vector.extract_strided_slice %320 {offsets = [0, 256], sizes = [8, 128], strides = [1, 1]} : vector<8x384xf32> to vector<8x128xf32>
    %326 = arith.mulf %324, %283 : vector<8x128xf32>
    %327 = arith.mulf %323, %322 : vector<8x128xf32>
    %328 = arith.addf %326, %327 : vector<8x128xf32>
    %329 = math.tanh %328 : vector<8x128xf32>
    %330 = arith.mulf %325, %329 : vector<8x128xf32>
    %c56 = arith.constant 56 : index
    %c0_120 = arith.constant 0 : index
    %331 = vector.load %arg10[%c56, %c0_120] : memref<64x512xf32, #tpu.memory_space<vmem>>, vector<8x512xf32>
    %c0_121 = arith.constant 0 : index
    %c0_122 = arith.constant 0 : index
    %c0_123 = arith.constant 0 : index
    %332 = vector.load %arg3[%c0_121, %c0_122, %c0_123] : memref<2x128x512xf32, #tpu.memory_space<vmem>>, vector<1x128x512xf32>
    %333 = vector.shape_cast %332 : vector<1x128x512xf32> to vector<128x512xf32>
    %cst_124 = arith.constant dense<0.000000e+00> : vector<8x512xf32>
    %334 = tpu.matmul %306, %333, %cst_124 {dimension_numbers = #tpu.dot_dimension_numbers<[1], [0], [0], [1], [0, 0, 1, 1], [], []>} : vector<8x128xf32>, vector<128x512xf32>, vector<8x512xf32> -> vector<8x512xf32>
    %335 = arith.addf %331, %334 : vector<8x512xf32>
    %336 = vector.extract_strided_slice %335 {offsets = [0, 0], sizes = [8, 384], strides = [1, 1]} : vector<8x512xf32> to vector<8x384xf32>
    %337 = arith.negf %336 : vector<8x384xf32>
    %338 = math.exp %337 : vector<8x384xf32>
    %cst_125 = arith.constant 1.000000e+00 : f32
    %339 = vector.broadcast %cst_125 : f32 to vector<8x384xf32>
    %340 = arith.addf %339, %338 : vector<8x384xf32>
    %341 = arith.divf %339, %340 : vector<8x384xf32>
    %342 = vector.extract_strided_slice %335 {offsets = [0, 384], sizes = [8, 128], strides = [1, 1]} : vector<8x512xf32> to vector<8x128xf32>
    %343 = math.tanh %342 : vector<8x128xf32>
    %344 = vector.extract_strided_slice %341 {offsets = [0, 0], sizes = [8, 128], strides = [1, 1]} : vector<8x384xf32> to vector<8x128xf32>
    %345 = vector.extract_strided_slice %341 {offsets = [0, 128], sizes = [8, 128], strides = [1, 1]} : vector<8x384xf32> to vector<8x128xf32>
    %346 = vector.extract_strided_slice %341 {offsets = [0, 256], sizes = [8, 128], strides = [1, 1]} : vector<8x384xf32> to vector<8x128xf32>
    %347 = arith.mulf %345, %304 : vector<8x128xf32>
    %348 = arith.mulf %344, %343 : vector<8x128xf32>
    %349 = arith.addf %347, %348 : vector<8x128xf32>
    %350 = math.tanh %349 : vector<8x128xf32>
    %351 = arith.mulf %346, %350 : vector<8x128xf32>
    %c0_126 = arith.constant 0 : index
    %c0_127 = arith.constant 0 : index
    %c0_128 = arith.constant 0 : index
    %352 = vector.load %arg2[%c0_126, %c0_127, %c0_128] : memref<1x128x512xf32, #tpu.memory_space<vmem>>, vector<1x128x512xf32>
    %353 = vector.shape_cast %352 : vector<1x128x512xf32> to vector<128x512xf32>
    %cst_129 = arith.constant dense<0.000000e+00> : vector<8x512xf32>
    %354 = tpu.matmul %351, %353, %cst_129 {dimension_numbers = #tpu.dot_dimension_numbers<[1], [0], [0], [1], [0, 0, 1, 1], [], []>} : vector<8x128xf32>, vector<128x512xf32>, vector<8x512xf32> -> vector<8x512xf32>
    %c1_130 = arith.constant 1 : index
    %c0_131 = arith.constant 0 : index
    %c0_132 = arith.constant 0 : index
    %355 = vector.load %arg3[%c1_130, %c0_131, %c0_132] : memref<2x128x512xf32, #tpu.memory_space<vmem>>, vector<1x128x512xf32>
    %356 = vector.shape_cast %355 : vector<1x128x512xf32> to vector<128x512xf32>
    %cst_133 = arith.constant dense<0.000000e+00> : vector<8x512xf32>
    %357 = tpu.matmul %330, %356, %cst_133 {dimension_numbers = #tpu.dot_dimension_numbers<[1], [0], [0], [1], [0, 0, 1, 1], [], []>} : vector<8x128xf32>, vector<128x512xf32>, vector<8x512xf32> -> vector<8x512xf32>
    %358 = arith.addf %354, %357 : vector<8x512xf32>
    %359 = arith.addf %358, %15 : vector<8x512xf32>
    %360 = vector.extract_strided_slice %359 {offsets = [0, 0], sizes = [8, 384], strides = [1, 1]} : vector<8x512xf32> to vector<8x384xf32>
    %361 = arith.negf %360 : vector<8x384xf32>
    %362 = math.exp %361 : vector<8x384xf32>
    %cst_134 = arith.constant 1.000000e+00 : f32
    %363 = vector.broadcast %cst_134 : f32 to vector<8x384xf32>
    %364 = arith.addf %363, %362 : vector<8x384xf32>
    %365 = arith.divf %363, %364 : vector<8x384xf32>
    %366 = vector.extract_strided_slice %359 {offsets = [0, 384], sizes = [8, 128], strides = [1, 1]} : vector<8x512xf32> to vector<8x128xf32>
    %367 = math.tanh %366 : vector<8x128xf32>
    %368 = vector.extract_strided_slice %365 {offsets = [0, 0], sizes = [8, 128], strides = [1, 1]} : vector<8x384xf32> to vector<8x128xf32>
    %369 = vector.extract_strided_slice %365 {offsets = [0, 128], sizes = [8, 128], strides = [1, 1]} : vector<8x384xf32> to vector<8x128xf32>
    %370 = vector.extract_strided_slice %365 {offsets = [0, 256], sizes = [8, 128], strides = [1, 1]} : vector<8x384xf32> to vector<8x128xf32>
    %371 = arith.mulf %369, %328 : vector<8x128xf32>
    %372 = arith.mulf %368, %367 : vector<8x128xf32>
    %373 = arith.addf %371, %372 : vector<8x128xf32>
    %374 = math.tanh %373 : vector<8x128xf32>
    %375 = arith.mulf %370, %374 : vector<8x128xf32>
    %c0_135 = arith.constant 0 : index
    %c0_136 = arith.constant 0 : index
    %376 = vector.load %arg5[%c0_135, %c0_136] : memref<128x128xf32, #tpu.memory_space<vmem>>, vector<128x128xf32>
    %cst_137 = arith.constant dense<0.000000e+00> : vector<8x128xf32>
    %377 = tpu.matmul %375, %376, %cst_137 {dimension_numbers = #tpu.dot_dimension_numbers<[1], [0], [0], [1], [0, 0, 1, 1], [], []>} : vector<8x128xf32>, vector<128x128xf32>, vector<8x128xf32> -> vector<8x128xf32>
    %c0_138 = arith.constant 0 : index
    %c0_139 = arith.constant 0 : index
    %378 = vector.load %arg6[%c0_138, %c0_139] : memref<1x128xf32, #tpu.memory_space<vmem>>, vector<1x128xf32>
    %379 = vector.broadcast %378 : vector<1x128xf32> to vector<8x128xf32>
    %380 = arith.addf %377, %379 : vector<8x128xf32>
    %c0_140 = arith.constant 0 : index
    %c0_141 = arith.constant 0 : index
    %381 = vector.load %arg7[%c0_140, %c0_141] : memref<128x128xf32, #tpu.memory_space<vmem>>, vector<128x128xf32>
    %cst_142 = arith.constant dense<0.000000e+00> : vector<8x128xf32>
    %382 = tpu.matmul %380, %381, %cst_142 {dimension_numbers = #tpu.dot_dimension_numbers<[1], [0], [0], [1], [0, 0, 1, 1], [], []>} : vector<8x128xf32>, vector<128x128xf32>, vector<8x128xf32> -> vector<8x128xf32>
    %c0_143 = arith.constant 0 : index
    %c0_144 = arith.constant 0 : index
    %383 = vector.load %arg8[%c0_143, %c0_144] : memref<1x128xf32, #tpu.memory_space<vmem>>, vector<1x128xf32>
    %384 = vector.broadcast %383 : vector<1x128xf32> to vector<8x128xf32>
    %385 = arith.addf %382, %384 : vector<8x128xf32>
    %c0_145 = arith.constant 0 : index
    %c0_146 = arith.constant 0 : index
    %386 = vector.load %arg9[%c0_145, %c0_146] : memref<8x128xf32, #tpu.memory_space<vmem>>, vector<8x128xf32>
    tpu.vector_store %arg9[%c0_145, %c0_146], %385 {strides = array<i32>} : memref<8x128xf32, #tpu.memory_space<vmem>>, vector<8x128xf32>,
    return
  }
}

</mosaic_0001>

<llo_original>
// kernel: estimation_lstm_forward.1
$region0: #{estimation_lstm_forward.1}
  #allocation0 [shape = 'u32[]', space=smem, size = 0x4, offset = 0x4, fixed_abs, tag = 'smem constant byte address 0x4 - core index']
  #allocation1 [shape = 'u32[144,128]{1,0:T(1,128)}', space=vmem, size = 0x12000, scoped, tag = 'internal scratch']
  #allocation2 [shape = 'f32[64,512]{1,0:T(8,128)}', space=vmem, size = 0x20000, scoped, tag = 'scratch operand']
  %s0 = inlined_call_operand.vmem [shape: f32[64,128], index: 0, kind: input, shape index: {}]
  %s1 = inlined_call_operand.vmem [shape: f32[128,512], index: 1, kind: input, shape index: {}]
  %s2 = inlined_call_operand.vmem [shape: f32[1,128,512], index: 2, kind: input, shape index: {}]
  %s3 = inlined_call_operand.vmem [shape: f32[2,128,512], index: 3, kind: input, shape index: {}]
  %s4 = inlined_call_operand.vmem [shape: f32[2,1,512], index: 4, kind: input, shape index: {}]
  %s5 = inlined_call_operand.vmem [shape: f32[128,128], index: 5, kind: input, shape index: {}]
  %s6 = inlined_call_operand.vmem [shape: f32[1,128], index: 6, kind: input, shape index: {}]
  %s7 = inlined_call_operand.vmem [shape: f32[128,128], index: 7, kind: input, shape index: {}]
  %s8 = inlined_call_operand.vmem [shape: f32[1,128], index: 8, kind: input, shape index: {}]
  %s9 = inlined_call_operand.vmem [shape: f32[8,128], index: 9, kind: output, shape index: {}]
  %s10 = sld [smem:[#allocation0]]
  $region46: #{estimation_lstm_forward.1} parent=0
    _
  %s12 = ssub.s32 1, %s10
  %s13 = scalar_select 0, %s12, %s10
  // Predicated region
  $region2: #{estimation_lstm_forward.1} parent=0 // pred_check
    _
  $region3: #{estimation_lstm_forward.1} parent=0 // pred_check_branch
    %15 = sbr.rel (0) target = $region5
  $region4: #{estimation_lstm_forward.1} parent=0 // pred_region
    _
  $region5: #{estimation_lstm_forward.1} parent=0 // pred_fallthru
    _
  // Predicated region
  $region6: #{estimation_lstm_forward.1} parent=0 // pred_check
    _
  $region7: #{estimation_lstm_forward.1} parent=0 // pred_check_branch
    %17 = sbr.rel (0) target = $region9
  $region8: #{estimation_lstm_forward.1} parent=0 // pred_region
    _
  $region9: #{estimation_lstm_forward.1} parent=0 // pred_fallthru
    _
  // Predicated region
  $region10: #{estimation_lstm_forward.1} parent=0 // pred_check
    _
  $region11: #{estimation_lstm_forward.1} parent=0 // pred_check_branch
    %19 = sbr.rel (0) target = $region13
  $region12: #{estimation_lstm_forward.1} parent=0 // pred_region
    _
  $region13: #{estimation_lstm_forward.1} parent=0 // pred_fallthru
    _
  // Predicated region
  $region14: #{estimation_lstm_forward.1} parent=0 // pred_check
    _
  $region15: #{estimation_lstm_forward.1} parent=0 // pred_check_branch
    %21 = sbr.rel (0) target = $region17
  $region16: #{estimation_lstm_forward.1} parent=0 // pred_region
    _
  $region17: #{estimation_lstm_forward.1} parent=0 // pred_fallthru
    _
  // Predicated region
  $region18: #{estimation_lstm_forward.1} parent=0 // pred_check
    _
  $region19: #{estimation_lstm_forward.1} parent=0 // pred_check_branch
    %23 = sbr.rel (0) target = $region21
  $region20: #{estimation_lstm_forward.1} parent=0 // pred_region
    _
  $region21: #{estimation_lstm_forward.1} parent=0 // pred_fallthru
    _
  // Predicated region
  $region22: #{estimation_lstm_forward.1} parent=0 // pred_check
    _
  $region23: #{estimation_lstm_forward.1} parent=0 // pred_check_branch
    %25 = sbr.rel (0) target = $region25
  $region24: #{estimation_lstm_forward.1} parent=0 // pred_region
    _
  $region25: #{estimation_lstm_forward.1} parent=0 // pred_fallthru
    _
  // Predicated region
  $region26: #{estimation_lstm_forward.1} parent=0 // pred_check
    _
  $region27: #{estimation_lstm_forward.1} parent=0 // pred_check_branch
    %27 = sbr.rel (0) target = $region29
  $region28: #{estimation_lstm_forward.1} parent=0 // pred_region
    _
  $region29: #{estimation_lstm_forward.1} parent=0 // pred_fallthru
    _
  // Predicated region
  $region30: #{estimation_lstm_forward.1} parent=0 // pred_check
    _
  $region31: #{estimation_lstm_forward.1} parent=0 // pred_check_branch
    %29 = sbr.rel (0) target = $region33
  $region32: #{estimation_lstm_forward.1} parent=0 // pred_region
    _
  $region33: #{estimation_lstm_forward.1} parent=0 // pred_fallthru
    _
  // Predicated region
  $region34: #{estimation_lstm_forward.1} parent=0 // pred_check
    _
  $region35: #{estimation_lstm_forward.1} parent=0 // pred_check_branch
    %31 = sbr.rel (0) target = $region37
  $region36: #{estimation_lstm_forward.1} parent=0 // pred_region
    _
  $region37: #{estimation_lstm_forward.1} parent=0 // pred_fallthru
    _
  %v32 = vld [vmem:[%s0] sm:$0xff]
  %v33 = vld [vmem:[%s0 + $0x8] sm:$0xff]
  %v34 = vld [vmem:[%s0 + $0x10] sm:$0xff]
  %v35 = vld [vmem:[%s0 + $0x18] sm:$0xff]
  %v36 = vld [vmem:[%s0 + $0x20] sm:$0xff]
  %v37 = vld [vmem:[%s0 + $0x28] sm:$0xff]
  %v38 = vld [vmem:[%s0 + $0x30] sm:$0xff]
  %v39 = vld [vmem:[%s0 + $0x38] sm:$0xff]
  %v40 = vld [vmem:[%s1] sm:$0xff]
  %v41 = vld [vmem:[%s1 + $0x8] sm:$0xff]
  %v42 = vld [vmem:[%s1 + $0x10] sm:$0xff]
  %v43 = vld [vmem:[%s1 + $0x18] sm:$0xff]
  %v44 = vld [vmem:[%s1 + $0x20] sm:$0xff]
  %v45 = vld [vmem:[%s1 + $0x28] sm:$0xff]
  %v46 = vld [vmem:[%s1 + $0x30] sm:$0xff]
  %v47 = vld [vmem:[%s1 + $0x38] sm:$0xff]
  %v48 = vld [vmem:[%s1 + $0x40] sm:$0xff]
  %v49 = vld [vmem:[%s1 + $0x48] sm:$0xff]
  %v50 = vld [vmem:[%s1 + $0x50] sm:$0xff]
  %v51 = vld [vmem:[%s1 + $0x58] sm:$0xff]
  %v52 = vld [vmem:[%s1 + $0x60] sm:$0xff]
  %v53 = vld [vmem:[%s1 + $0x68] sm:$0xff]
  %v54 = vld [vmem:[%s1 + $0x70] sm:$0xff]
  %v55 = vld [vmem:[%s1 + $0x78] sm:$0xff]
  %v56 = vld [vmem:[%s1 + $0x80] sm:$0xff]
  %v57 = vld [vmem:[%s1 + $0x88] sm:$0xff]
  %v58 = vld [vmem:[%s1 + $0x90] sm:$0xff]
  %v59 = vld [vmem:[%s1 + $0x98] sm:$0xff]
  %v60 = vld [vmem:[%s1 + $0xa0] sm:$0xff]
  %v61 = vld [vmem:[%s1 + $0xa8] sm:$0xff]
  %v62 = vld [vmem:[%s1 + $0xb0] sm:$0xff]
  %v63 = vld [vmem:[%s1 + $0xb8] sm:$0xff]
  %v64 = vld [vmem:[%s1 + $0xc0] sm:$0xff]
  %v65 = vld [vmem:[%s1 + $0xc8] sm:$0xff]
  %v66 = vld [vmem:[%s1 + $0xd0] sm:$0xff]
  %v67 = vld [vmem:[%s1 + $0xd8] sm:$0xff]
  %v68 = vld [vmem:[%s1 + $0xe0] sm:$0xff]
  %v69 = vld [vmem:[%s1 + $0xe8] sm:$0xff]
  %v70 = vld [vmem:[%s1 + $0xf0] sm:$0xff]
  %v71 = vld [vmem:[%s1 + $0xf8] sm:$0xff]
  %v72 = vld [vmem:[%s1 + $0x100] sm:$0xff]
  %v73 = vld [vmem:[%s1 + $0x108] sm:$0xff]
  %v74 = vld [vmem:[%s1 + $0x110] sm:$0xff]
  %v75 = vld [vmem:[%s1 + $0x118] sm:$0xff]
  %v76 = vld [vmem:[%s1 + $0x120] sm:$0xff]
  %v77 = vld [vmem:[%s1 + $0x128] sm:$0xff]
  %v78 = vld [vmem:[%s1 + $0x130] sm:$0xff]
  %v79 = vld [vmem:[%s1 + $0x138] sm:$0xff]
  %v80 = vld [vmem:[%s1 + $0x140] sm:$0xff]
  %v81 = vld [vmem:[%s1 + $0x148] sm:$0xff]
  %v82 = vld [vmem:[%s1 + $0x150] sm:$0xff]
  %v83 = vld [vmem:[%s1 + $0x158] sm:$0xff]
  %v84 = vld [vmem:[%s1 + $0x160] sm:$0xff]
  %v85 = vld [vmem:[%s1 + $0x168] sm:$0xff]
  %v86 = vld [vmem:[%s1 + $0x170] sm:$0xff]
  %v87 = vld [vmem:[%s1 + $0x178] sm:$0xff]
  %v88 = vld [vmem:[%s1 + $0x180] sm:$0xff]
  %v89 = vld [vmem:[%s1 + $0x188] sm:$0xff]
  %v90 = vld [vmem:[%s1 + $0x190] sm:$0xff]
  %v91 = vld [vmem:[%s1 + $0x198] sm:$0xff]
  %v92 = vld [vmem:[%s1 + $0x1a0] sm:$0xff]
  %v93 = vld [vmem:[%s1 + $0x1a8] sm:$0xff]
  %v94 = vld [vmem:[%s1 + $0x1b0] sm:$0xff]
  %v95 = vld [vmem:[%s1 + $0x1b8] sm:$0xff]
  %v96 = vld [vmem:[%s1 + $0x1c0] sm:$0xff]
  %v97 = vld [vmem:[%s1 + $0x1c8] sm:$0xff]
  %v98 = vld [vmem:[%s1 + $0x1d0] sm:$0xff]
  %v99 = vld [vmem:[%s1 + $0x1d8] sm:$0xff]
  %v100 = vld [vmem:[%s1 + $0x1e0] sm:$0xff]
  %v101 = vld [vmem:[%s1 + $0x1e8] sm:$0xff]
  %v102 = vld [vmem:[%s1 + $0x1f0] sm:$0xff]
  %v103 = vld [vmem:[%s1 + $0x1f8] sm:$0xff]
  %v104 = vld [vmem:[%s4] sm:$0xf]
  %v106 = vlaneseq
  %v107 = vshrl.u32 %v106, 7
  %v108 = vsub.s32 0, %v107
  %v109 = vrot.slane %v104, %v108
  %v110 = vlaneseq
  %v111 = vshrl.u32 %v110, 7
  %v112 = vsub.s32 1, %v111
  %v113 = vrot.slane %v104, %v112
  %v114 = vlaneseq
  %v115 = vshrl.u32 %v114, 7
  %v116 = vsub.s32 2, %v115
  %v117 = vrot.slane %v104, %v116
  %v118 = vlaneseq
  %v119 = vshrl.u32 %v118, 7
  %v120 = vsub.s32 3, %v119
  %v121 = vrot.slane %v104, %v120
  %126 = vmatprep.subr.mxu0 %v41
  %127 = vmatpush1.msra.mxu0 %v40
  %128 = vmatprep.subr.mxu0 %v45
  %129 = vmatpush1.msra.mxu0 %v44
  %130 = vmatprep.subr.mxu0 %v49
  %131 = vmatpush1.msra.mxu0 %v48
  %132 = vmatprep.subr.mxu0 %v53
  %133 = vmatpush1.msra.mxu0 %v52
  %134 = vmatprep.subr.mxu0 %v57
  %135 = vmatpush1.msra.mxu0 %v56
  %136 = vmatprep.subr.mxu0 %v61
  %137 = vmatpush1.msra.mxu0 %v60
  %138 = vmatprep.subr.mxu0 %v65
  %139 = vmatpush1.msra.mxu0 %v64
  %140 = vmatprep.subr.mxu0 %v69
  %141 = vmatpush1.msra.mxu0 %v68
  %142 = vmatprep.subr.mxu0 %v73
  %143 = vmatpush1.msra.mxu0 %v72
  %144 = vmatprep.subr.mxu0 %v77
  %145 = vmatpush1.msra.mxu0 %v76
  %146 = vmatprep.subr.mxu0 %v81
  %147 = vmatpush1.msra.mxu0 %v80
  %148 = vmatprep.subr.mxu0 %v85
  %149 = vmatpush1.msra.mxu0 %v84
  %150 = vmatprep.subr.mxu0 %v89
  %151 = vmatpush1.msra.mxu0 %v88
  %152 = vmatprep.subr.mxu0 %v93
  %153 = vmatpush1.msra.mxu0 %v92
  %154 = vmatprep.subr.mxu0 %v97
  %155 = vmatpush1.msra.mxu0 %v96
  %156 = vmatprep.subr.mxu0 %v101
  %157 = vmatpush1.msra.mxu0 %v100
  %158 = vmatprep.subr.mxu0 0.0
  %159 = vmatpush1.msra.mxu0 0.0
  %160 = vmatprep.subr.mxu0 0.0
  %161 = vmatpush1.msra.mxu0 0.0
  %162 = vmatprep.subr.mxu0 0.0
  %163 = vmatpush1.msra.mxu0 0.0
  %164 = vmatprep.subr.mxu0 0.0
  %165 = vmatpush1.msra.mxu0 0.0
  %166 = vmatprep.subr.mxu0 0.0
  %167 = vmatpush1.msra.mxu0 0.0
  %168 = vmatprep.subr.mxu0 0.0
  %169 = vmatpush1.msra.mxu0 0.0
  %170 = vmatprep.subr.mxu0 0.0
  %171 = vmatpush1.msra.mxu0 0.0
  %172 = vmatprep.subr.mxu0 0.0
  %173 = vmatpush1.msra.mxu0 0.0
  %174 = vmatprep.subr.mxu0 0.0
  %175 = vmatpush1.msra.mxu0 0.0
  %176 = vmatprep.subr.mxu0 0.0
  %177 = vmatpush1.msra.mxu0 0.0
  %178 = vmatprep.subr.mxu0 0.0
  %179 = vmatpush1.msra.mxu0 0.0
  %180 = vmatprep.subr.mxu0 0.0
  %181 = vmatpush1.msra.mxu0 0.0
  %182 = vmatprep.subr.mxu0 0.0
  %183 = vmatpush1.msra.mxu0 0.0
  %184 = vmatprep.subr.mxu0 0.0
  %185 = vmatpush1.msra.mxu0 0.0
  %186 = vmatprep.subr.mxu0 0.0
  %187 = vmatpush1.msra.mxu0 0.0
  %188 = vmatprep.subr.mxu0 0.0
  %189 = vmatpush1.msra.mxu0 0.0
  %190 = vmatprep.mubr.f32.mxu0 0.0
  %191 = vmatmul.mubr.f32.gmra.mrb[0].mxu0 %v32
  %v192 = vpop.f32.mrb[0].mxu0
  %v193 = vadd.f32 %v109, %v192
  %v194 = vpop.f32.mrb[0].mxu0
  %v195 = vadd.f32 %v113, %v194
  %196 = vmatprep.mubr.f32.mxu0 0.0
  %197 = vmatmul.mubr.f32.gmra.mrb[0].mxu0 %v33
  %v198 = vpop.f32.mrb[0].mxu0
  %v199 = vadd.f32 %v109, %v198
  %v200 = vpop.f32.mrb[0].mxu0
  %v201 = vadd.f32 %v113, %v200
  %202 = vmatprep.mubr.f32.mxu0 0.0
  %203 = vmatmul.mubr.f32.gmra.mrb[0].mxu0 %v34
  %v204 = vpop.f32.mrb[0].mxu0
  %v205 = vadd.f32 %v109, %v204
  %v206 = vpop.f32.mrb[0].mxu0
  %v207 = vadd.f32 %v113, %v206
  %208 = vmatprep.mubr.f32.mxu0 0.0
  %209 = vmatmul.mubr.f32.gmra.mrb[0].mxu0 %v35
  %v210 = vpop.f32.mrb[0].mxu0
  %v211 = vadd.f32 %v109, %v210
  %v212 = vpop.f32.mrb[0].mxu0
  %v213 = vadd.f32 %v113, %v212
  %214 = vmatprep.mubr.f32.mxu0 0.0
  %215 = vmatmul.mubr.f32.gmra.mrb[0].mxu0 %v36
  %v216 = vpop.f32.mrb[0].mxu0
  %v217 = vadd.f32 %v109, %v216
  %v218 = vpop.f32.mrb[0].mxu0
  %v219 = vadd.f32 %v113, %v218
  %220 = vmatprep.mubr.f32.mxu0 0.0
  %221 = vmatmul.mubr.f32.gmra.mrb[0].mxu0 %v37
  %v222 = vpop.f32.mrb[0].mxu0
  %v223 = vadd.f32 %v109, %v222
  %v224 = vpop.f32.mrb[0].mxu0
  %v225 = vadd.f32 %v113, %v224
  %226 = vmatprep.mubr.f32.mxu0 0.0
  %227 = vmatmul.mubr.f32.gmra.mrb[0].mxu0 %v38
  %v228 = vpop.f32.mrb[0].mxu0
  %v229 = vadd.f32 %v109, %v228
  %v230 = vpop.f32.mrb[0].mxu0
  %v231 = vadd.f32 %v113, %v230
  %232 = vmatprep.mubr.f32.mxu0 0.0
  %233 = vmatmul.mubr.f32.gmra.mrb[0].mxu0 %v39
  %v234 = vpop.f32.mrb[0].mxu0
  %v235 = vadd.f32 %v109, %v234
  %v236 = vpop.f32.mrb[0].mxu0
  %v237 = vadd.f32 %v113, %v236
  %238 = vdwg.mxu0
  %239 = vmatprep.subr.mxu0 %v43
  %240 = vmatpush1.msra.mxu0 %v42
  %241 = vmatprep.subr.mxu0 %v47
  %242 = vmatpush1.msra.mxu0 %v46
  %243 = vmatprep.subr.mxu0 %v51
  %244 = vmatpush1.msra.mxu0 %v50
  %245 = vmatprep.subr.mxu0 %v55
  %246 = vmatpush1.msra.mxu0 %v54
  %247 = vmatprep.subr.mxu0 %v59
  %248 = vmatpush1.msra.mxu0 %v58
  %249 = vmatprep.subr.mxu0 %v63
  %250 = vmatpush1.msra.mxu0 %v62
  %251 = vmatprep.subr.mxu0 %v67
  %252 = vmatpush1.msra.mxu0 %v66
  %253 = vmatprep.subr.mxu0 %v71
  %254 = vmatpush1.msra.mxu0 %v70
  %255 = vmatprep.subr.mxu0 %v75
  %256 = vmatpush1.msra.mxu0 %v74
  %257 = vmatprep.subr.mxu0 %v79
  %258 = vmatpush1.msra.mxu0 %v78
  %259 = vmatprep.subr.mxu0 %v83
  %260 = vmatpush1.msra.mxu0 %v82
  %261 = vmatprep.subr.mxu0 %v87
  %262 = vmatpush1.msra.mxu0 %v86
  %263 = vmatprep.subr.mxu0 %v91
  %264 = vmatpush1.msra.mxu0 %v90
  %265 = vmatprep.subr.mxu0 %v95
  %266 = vmatpush1.msra.mxu0 %v94
  %267 = vmatprep.subr.mxu0 %v99
  %268 = vmatpush1.msra.mxu0 %v98
  %269 = vmatprep.subr.mxu0 %v103
  %270 = vmatpush1.msra.mxu0 %v102
  %271 = vmatprep.subr.mxu0 0.0
  %272 = vmatpush1.msra.mxu0 0.0
  %273 = vmatprep.subr.mxu0 0.0
  %274 = vmatpush1.msra.mxu0 0.0
  %275 = vmatprep.subr.mxu0 0.0
  %276 = vmatpush1.msra.mxu0 0.0
  %277 = vmatprep.subr.mxu0 0.0
  %278 = vmatpush1.msra.mxu0 0.0
  %279 = vmatprep.subr.mxu0 0.0
  %280 = vmatpush1.msra.mxu0 0.0
  %281 = vmatprep.subr.mxu0 0.0
  %282 = vmatpush1.msra.mxu0 0.0
  %283 = vmatprep.subr.mxu0 0.0
  %284 = vmatpush1.msra.mxu0 0.0
  %285 = vmatprep.subr.mxu0 0.0
  %286 = vmatpush1.msra.mxu0 0.0
  %287 = vmatprep.subr.mxu0 0.0
  %288 = vmatpush1.msra.mxu0 0.0
  %289 = vmatprep.subr.mxu0 0.0
  %290 = vmatpush1.msra.mxu0 0.0
  %291 = vmatprep.subr.mxu0 0.0
  %292 = vmatpush1.msra.mxu0 0.0
  %293 = vmatprep.subr.mxu0 0.0
  %294 = vmatpush1.msra.mxu0 0.0
  %295 = vmatprep.subr.mxu0 0.0
  %296 = vmatpush1.msra.mxu0 0.0
  %297 = vmatprep.subr.mxu0 0.0
  %298 = vmatpush1.msra.mxu0 0.0
  %299 = vmatprep.subr.mxu0 0.0
  %300 = vmatpush1.msra.mxu0 0.0
  %301 = vmatprep.subr.mxu0 0.0
  %302 = vmatpush1.msra.mxu0 0.0
  %303 = vmatprep.mubr.f32.mxu0 0.0
  %304 = vmatmul.mubr.f32.gmra.mrb[0].mxu0 %v32
  %v305 = vpop.f32.mrb[0].mxu0
  %v306 = vadd.f32 %v117, %v305
  %v307 = vpop.f32.mrb[0].mxu0
  %v308 = vadd.f32 %v121, %v307
  %309 = vmatprep.mubr.f32.mxu0 0.0
  %310 = vmatmul.mubr.f32.gmra.mrb[0].mxu0 %v33
  %v311 = vpop.f32.mrb[0].mxu0
  %v312 = vadd.f32 %v117, %v311
  %v313 = vpop.f32.mrb[0].mxu0
  %v314 = vadd.f32 %v121, %v313
  %315 = vmatprep.mubr.f32.mxu0 0.0
  %316 = vmatmul.mubr.f32.gmra.mrb[0].mxu0 %v34
  %v317 = vpop.f32.mrb[0].mxu0
  %v318 = vadd.f32 %v117, %v317
  %v319 = vpop.f32.mrb[0].mxu0
  %v320 = vadd.f32 %v121, %v319
  %321 = vmatprep.mubr.f32.mxu0 0.0
  %322 = vmatmul.mubr.f32.gmra.mrb[0].mxu0 %v35
  %v323 = vpop.f32.mrb[0].mxu0
  %v324 = vadd.f32 %v117, %v323
  %v325 = vpop.f32.mrb[0].mxu0
  %v326 = vadd.f32 %v121, %v325
  %327 = vmatprep.mubr.f32.mxu0 0.0
  %328 = vmatmul.mubr.f32.gmra.mrb[0].mxu0 %v36
  %v329 = vpop.f32.mrb[0].mxu0
  %v330 = vadd.f32 %v117, %v329
  %v331 = vpop.f32.mrb[0].mxu0
  %v332 = vadd.f32 %v121, %v331
  %333 = vmatprep.mubr.f32.mxu0 0.0
  %334 = vmatmul.mubr.f32.gmra.mrb[0].mxu0 %v37
  %v335 = vpop.f32.mrb[0].mxu0
  %v336 = vadd.f32 %v117, %v335
  %v337 = vpop.f32.mrb[0].mxu0
  %v338 = vadd.f32 %v121, %v337
  %339 = vmatprep.mubr.f32.mxu0 0.0
  %340 = vmatmul.mubr.f32.gmra.mrb[0].mxu0 %v38
  %v341 = vpop.f32.mrb[0].mxu0
  %v342 = vadd.f32 %v117, %v341
  %v343 = vpop.f32.mrb[0].mxu0
  %v344 = vadd.f32 %v121, %v343
  %345 = vmatprep.mubr.f32.mxu0 0.0
  %346 = vmatmul.mubr.f32.gmra.mrb[0].mxu0 %v39
  %v347 = vpop.f32.mrb[0].mxu0
  %v348 = vadd.f32 %v117, %v347
  %v349 = vpop.f32.mrb[0].mxu0
  %v350 = vadd.f32 %v121, %v349
  %351 = vdwg.mxu0
  %352 = vst [vmem:[#allocation2] sm:$0xff] %v193
  %353 = vst [vmem:[#allocation2 + $0x8] sm:$0xff] %v195
  %354 = vst [vmem:[#allocation2 + $0x10] sm:$0xff] %v306
  %355 = vst [vmem:[#allocation2 + $0x18] sm:$0xff] %v308
  %356 = vst [vmem:[#allocation2 + $0x20] sm:$0xff] %v199
  %357 = vst [vmem:[#allocation2 + $0x28] sm:$0xff] %v201
  %358 = vst [vmem:[#allocation2 + $0x30] sm:$0xff] %v312
  %359 = vst [vmem:[#allocation2 + $0x38] sm:$0xff] %v314
  %360 = vst [vmem:[#allocation2 + $0x40] sm:$0xff] %v205
  %361 = vst [vmem:[#allocation2 + $0x48] sm:$0xff] %v207
  %362 = vst [vmem:[#allocation2 + $0x50] sm:$0xff] %v318
  %363 = vst [vmem:[#allocation2 + $0x58] sm:$0xff] %v320
  %364 = vst [vmem:[#allocation2 + $0x60] sm:$0xff] %v211
  %365 = vst [vmem:[#allocation2 + $0x68] sm:$0xff] %v213
  %366 = vst [vmem:[#allocation2 + $0x70] sm:$0xff] %v324
  %367 = vst [vmem:[#allocation2 + $0x78] sm:$0xff] %v326
  %368 = vst [vmem:[#allocation2 + $0x80] sm:$0xff] %v217
  %369 = vst [vmem:[#allocation2 + $0x88] sm:$0xff] %v219
  %370 = vst [vmem:[#allocation2 + $0x90] sm:$0xff] %v330
  %371 = vst [vmem:[#allocation2 + $0x98] sm:$0xff] %v332
  %372 = vst [vmem:[#allocation2 + $0xa0] sm:$0xff] %v223
  %373 = vst [vmem:[#allocation2 + $0xa8] sm:$0xff] %v225
  %374 = vst [vmem:[#allocation2 + $0xb0] sm:$0xff] %v336
  %375 = vst [vmem:[#allocation2 + $0xb8] sm:$0xff] %v338
  %376 = vst [vmem:[#allocation2 + $0xc0] sm:$0xff] %v229
  %377 = vst [vmem:[#allocation2 + $0xc8] sm:$0xff] %v231
  %378 = vst [vmem:[#allocation2 + $0xd0] sm:$0xff] %v342
  %379 = vst [vmem:[#allocation2 + $0xd8] sm:$0xff] %v344
  %380 = vst [vmem:[#allocation2 + $0xe0] sm:$0xff] %v235
  %381 = vst [vmem:[#allocation2 + $0xe8] sm:$0xff] %v237
  %382 = vst [vmem:[#allocation2 + $0xf0] sm:$0xff] %v348
  %383 = vst [vmem:[#allocation2 + $0xf8] sm:$0xff] %v350
  %s384 = scalar_lea.vmem %s4, 4
  %v385 = vld [vmem:[%s384] sm:$0xf]
  %v387 = vlaneseq
  %v388 = vshrl.u32 %v387, 7
  %v389 = vsub.s32 0, %v388
  %v390 = vrot.slane %v385, %v389
  %v391 = vlaneseq
  %v392 = vshrl.u32 %v391, 7
  %v393 = vsub.s32 1, %v392
  %v394 = vrot.slane %v385, %v393
  %v395 = vlaneseq
  %v396 = vshrl.u32 %v395, 7
  %v397 = vsub.s32 2, %v396
  %v398 = vrot.slane %v385, %v397
  %v399 = vlaneseq
  %v400 = vshrl.u32 %v399, 7
  %v401 = vsub.s32 3, %v400
  %v402 = vrot.slane %v385, %v401
  %v407 = vld [vmem:[#allocation2] sm:$0xff]
  %v408 = vld [vmem:[#allocation2 + $0x8] sm:$0xff]
  %v409 = vld [vmem:[#allocation2 + $0x10] sm:$0xff]
  %v410 = vld [vmem:[#allocation2 + $0x18] sm:$0xff]
  %v411 = vld [vmem:[%s3] sm:$0xff]
  %v412 = vld [vmem:[%s3 + $0x8] sm:$0xff]
  %v413 = vld [vmem:[%s3 + $0x10] sm:$0xff]
  %v414 = vld [vmem:[%s3 + $0x18] sm:$0xff]
  %v415 = vld [vmem:[%s3 + $0x20] sm:$0xff]
  %v416 = vld [vmem:[%s3 + $0x28] sm:$0xff]
  %v417 = vld [vmem:[%s3 + $0x30] sm:$0xff]
  %v418 = vld [vmem:[%s3 + $0x38] sm:$0xff]
  %v419 = vld [vmem:[%s3 + $0x40] sm:$0xff]
  %v420 = vld [vmem:[%s3 + $0x48] sm:$0xff]
  %v421 = vld [vmem:[%s3 + $0x50] sm:$0xff]
  %v422 = vld [vmem:[%s3 + $0x58] sm:$0xff]
  %v423 = vld [vmem:[%s3 + $0x60] sm:$0xff]
  %v424 = vld [vmem:[%s3 + $0x68] sm:$0xff]
  %v425 = vld [vmem:[%s3 + $0x70] sm:$0xff]
  %v426 = vld [vmem:[%s3 + $0x78] sm:$0xff]
  %v427 = vld [vmem:[%s3 + $0x80] sm:$0xff]
  %v428 = vld [vmem:[%s3 + $0x88] sm:$0xff]
  %v429 = vld [vmem:[%s3 + $0x90] sm:$0xff]
  %v430 = vld [vmem:[%s3 + $0x98] sm:$0xff]
  %v431 = vld [vmem:[%s3 + $0xa0] sm:$0xff]
  %v432 = vld [vmem:[%s3 + $0xa8] sm:$0xff]
  %v433 = vld [vmem:[%s3 + $0xb0] sm:$0xff]
  %v434 = vld [vmem:[%s3 + $0xb8] sm:$0xff]
  %v435 = vld [vmem:[%s3 + $0xc0] sm:$0xff]
  %v436 = vld [vmem:[%s3 + $0xc8] sm:$0xff]
  %v437 = vld [vmem:[%s3 + $0xd0] sm:$0xff]
  %v438 = vld [vmem:[%s3 + $0xd8] sm:$0xff]
  %v439 = vld [vmem:[%s3 + $0xe0] sm:$0xff]
  %v440 = vld [vmem:[%s3 + $0xe8] sm:$0xff]
  %v441 = vld [vmem:[%s3 + $0xf0] sm:$0xff]
  %v442 = vld [vmem:[%s3 + $0xf8] sm:$0xff]
  %v443 = vld [vmem:[%s3 + $0x100] sm:$0xff]
  %v444 = vld [vmem:[%s3 + $0x108] sm:$0xff]
  %v445 = vld [vmem:[%s3 + $0x110] sm:$0xff]
  %v446 = vld [vmem:[%s3 + $0x118] sm:$0xff]
  %v447 = vld [vmem:[%s3 + $0x120] sm:$0xff]
  %v448 = vld [vmem:[%s3 + $0x128] sm:$0xff]
  %v449 = vld [vmem:[%s3 + $0x130] sm:$0xff]
  %v450 = vld [vmem:[%s3 + $0x138] sm:$0xff]
  %v451 = vld [vmem:[%s3 + $0x140] sm:$0xff]
  %v452 = vld [vmem:[%s3 + $0x148] sm:$0xff]
  %v453 = vld [vmem:[%s3 + $0x150] sm:$0xff]
  %v454 = vld [vmem:[%s3 + $0x158] sm:$0xff]
  %v455 = vld [vmem:[%s3 + $0x160] sm:$0xff]
  %v456 = vld [vmem:[%s3 + $0x168] sm:$0xff]
  %v457 = vld [vmem:[%s3 + $0x170] sm:$0xff]
  %v458 = vld [vmem:[%s3 + $0x178] sm:$0xff]
  %v459 = vld [vmem:[%s3 + $0x180] sm:$0xff]
  %v460 = vld [vmem:[%s3 + $0x188] sm:$0xff]
  %v461 = vld [vmem:[%s3 + $0x190] sm:$0xff]
  %v462 = vld [vmem:[%s3 + $0x198] sm:$0xff]
  %v463 = vld [vmem:[%s3 + $0x1a0] sm:$0xff]
  %v464 = vld [vmem:[%s3 + $0x1a8] sm:$0xff]
  %v465 = vld [vmem:[%s3 + $0x1b0] sm:$0xff]
  %v466 = vld [vmem:[%s3 + $0x1b8] sm:$0xff]
  %v467 = vld [vmem:[%s3 + $0x1c0] sm:$0xff]
  %v468 = vld [vmem:[%s3 + $0x1c8] sm:$0xff]
  %v469 = vld [vmem:[%s3 + $0x1d0] sm:$0xff]
  %v470 = vld [vmem:[%s3 + $0x1d8] sm:$0xff]
  %v471 = vld [vmem:[%s3 + $0x1e0] sm:$0xff]
  %v472 = vld [vmem:[%s3 + $0x1e8] sm:$0xff]
  %v473 = vld [vmem:[%s3 + $0x1f0] sm:$0xff]
  %v474 = vld [vmem:[%s3 + $0x1f8] sm:$0xff]
  %475 = vmatprep.subr.mxu0 %v412
  %476 = vmatpush1.msra.mxu0 %v411
  %477 = vmatprep.subr.mxu0 %v416
  %478 = vmatpush1.msra.mxu0 %v415
  %479 = vmatprep.subr.mxu0 %v420
  %480 = vmatpush1.msra.mxu0 %v419
  %481 = vmatprep.subr.mxu0 %v424
  %482 = vmatpush1.msra.mxu0 %v423
  %483 = vmatprep.subr.mxu0 %v428
  %484 = vmatpush1.msra.mxu0 %v427
  %485 = vmatprep.subr.mxu0 %v432
  %486 = vmatpush1.msra.mxu0 %v431
  %487 = vmatprep.subr.mxu0 %v436
  %488 = vmatpush1.msra.mxu0 %v435
  %489 = vmatprep.subr.mxu0 %v440
  %490 = vmatpush1.msra.mxu0 %v439
  %491 = vmatprep.subr.mxu0 %v444
  %492 = vmatpush1.msra.mxu0 %v443
  %493 = vmatprep.subr.mxu0 %v448
  %494 = vmatpush1.msra.mxu0 %v447
  %495 = vmatprep.subr.mxu0 %v452
  %496 = vmatpush1.msra.mxu0 %v451
  %497 = vmatprep.subr.mxu0 %v456
  %498 = vmatpush1.msra.mxu0 %v455
  %499 = vmatprep.subr.mxu0 %v460
  %500 = vmatpush1.msra.mxu0 %v459
  %501 = vmatprep.subr.mxu0 %v464
  %502 = vmatpush1.msra.mxu0 %v463
  %503 = vmatprep.subr.mxu0 %v468
  %504 = vmatpush1.msra.mxu0 %v467
  %505 = vmatprep.subr.mxu0 %v472
  %506 = vmatpush1.msra.mxu0 %v471
  %507 = vmatprep.subr.mxu0 0.0
  %508 = vmatpush1.msra.mxu0 0.0
  %509 = vmatprep.subr.mxu0 0.0
  %510 = vmatpush1.msra.mxu0 0.0
  %511 = vmatprep.subr.mxu0 0.0
  %512 = vmatpush1.msra.mxu0 0.0
  %513 = vmatprep.subr.mxu0 0.0
  %514 = vmatpush1.msra.mxu0 0.0
  %515 = vmatprep.subr.mxu0 0.0
  %516 = vmatpush1.msra.mxu0 0.0
  %517 = vmatprep.subr.mxu0 0.0
  %518 = vmatpush1.msra.mxu0 0.0
  %519 = vmatprep.subr.mxu0 0.0
  %520 = vmatpush1.msra.mxu0 0.0
  %521 = vmatprep.subr.mxu0 0.0
  %522 = vmatpush1.msra.mxu0 0.0
  %523 = vmatprep.subr.mxu0 0.0
  %524 = vmatpush1.msra.mxu0 0.0
  %525 = vmatprep.subr.mxu0 0.0
  %526 = vmatpush1.msra.mxu0 0.0
  %527 = vmatprep.subr.mxu0 0.0
  %528 = vmatpush1.msra.mxu0 0.0
  %529 = vmatprep.subr.mxu0 0.0
  %530 = vmatpush1.msra.mxu0 0.0
  %531 = vmatprep.subr.mxu0 0.0
  %532 = vmatpush1.msra.mxu0 0.0
  %533 = vmatprep.subr.mxu0 0.0
  %534 = vmatpush1.msra.mxu0 0.0
  %535 = vmatprep.subr.mxu0 0.0
  %536 = vmatpush1.msra.mxu0 0.0
  %537 = vmatprep.subr.mxu0 0.0
  %538 = vmatpush1.msra.mxu0 0.0
  %539 = vmatprep.mubr.f32.mxu0 0.0
  %540 = vmatmul.mubr.f32.gmra.mrb[0].mxu0 0.0
  %v541 = vpop.f32.mrb[0].mxu0
  %v542 = vadd.f32 0.0, %v541
  %v543 = vpop.f32.mrb[0].mxu0
  %v544 = vadd.f32 0.0, %v543
  %545 = vdwg.mxu0
  %546 = vmatprep.subr.mxu0 %v414
  %547 = vmatpush1.msra.mxu0 %v413
  %548 = vmatprep.subr.mxu0 %v418
  %549 = vmatpush1.msra.mxu0 %v417
  %550 = vmatprep.subr.mxu0 %v422
  %551 = vmatpush1.msra.mxu0 %v421
  %552 = vmatprep.subr.mxu0 %v426
  %553 = vmatpush1.msra.mxu0 %v425
  %554 = vmatprep.subr.mxu0 %v430
  %555 = vmatpush1.msra.mxu0 %v429
  %556 = vmatprep.subr.mxu0 %v434
  %557 = vmatpush1.msra.mxu0 %v433
  %558 = vmatprep.subr.mxu0 %v438
  %559 = vmatpush1.msra.mxu0 %v437
  %560 = vmatprep.subr.mxu0 %v442
  %561 = vmatpush1.msra.mxu0 %v441
  %562 = vmatprep.subr.mxu0 %v446
  %563 = vmatpush1.msra.mxu0 %v445
  %564 = vmatprep.subr.mxu0 %v450
  %565 = vmatpush1.msra.mxu0 %v449
  %566 = vmatprep.subr.mxu0 %v454
  %567 = vmatpush1.msra.mxu0 %v453
  %568 = vmatprep.subr.mxu0 %v458
  %569 = vmatpush1.msra.mxu0 %v457
  %570 = vmatprep.subr.mxu0 %v462
  %571 = vmatpush1.msra.mxu0 %v461
  %572 = vmatprep.subr.mxu0 %v466
  %573 = vmatpush1.msra.mxu0 %v465
  %574 = vmatprep.subr.mxu0 %v470
  %575 = vmatpush1.msra.mxu0 %v469
  %576 = vmatprep.subr.mxu0 %v474
  %577 = vmatpush1.msra.mxu0 %v473
  %578 = vmatprep.subr.mxu0 0.0
  %579 = vmatpush1.msra.mxu0 0.0
  %580 = vmatprep.subr.mxu0 0.0
  %581 = vmatpush1.msra.mxu0 0.0
  %582 = vmatprep.subr.mxu0 0.0
  %583 = vmatpush1.msra.mxu0 0.0
  %584 = vmatprep.subr.mxu0 0.0
  %585 = vmatpush1.msra.mxu0 0.0
  %586 = vmatprep.subr.mxu0 0.0
  %587 = vmatpush1.msra.mxu0 0.0
  %588 = vmatprep.subr.mxu0 0.0
  %589 = vmatpush1.msra.mxu0 0.0
  %590 = vmatprep.subr.mxu0 0.0
  %591 = vmatpush1.msra.mxu0 0.0
  %592 = vmatprep.subr.mxu0 0.0
  %593 = vmatpush1.msra.mxu0 0.0
  %594 = vmatprep.subr.mxu0 0.0
  %595 = vmatpush1.msra.mxu0 0.0
  %596 = vmatprep.subr.mxu0 0.0
  %597 = vmatpush1.msra.mxu0 0.0
  %598 = vmatprep.subr.mxu0 0.0
  %599 = vmatpush1.msra.mxu0 0.0
  %600 = vmatprep.subr.mxu0 0.0
  %601 = vmatpush1.msra.mxu0 0.0
  %602 = vmatprep.subr.mxu0 0.0
  %603 = vmatpush1.msra.mxu0 0.0
  %604 = vmatprep.subr.mxu0 0.0
  %605 = vmatpush1.msra.mxu0 0.0
  %606 = vmatprep.subr.mxu0 0.0
  %607 = vmatpush1.msra.mxu0 0.0
  %608 = vmatprep.subr.mxu0 0.0
  %609 = vmatpush1.msra.mxu0 0.0
  %610 = vmatprep.mubr.f32.mxu0 0.0
  %611 = vmatmul.mubr.f32.gmra.mrb[0].mxu0 0.0
  %v612 = vpop.f32.mrb[0].mxu0
  %v613 = vadd.f32 0.0, %v612
  %v614 = vpop.f32.mrb[0].mxu0
  %v615 = vadd.f32 0.0, %v614
  %616 = vdwg.mxu0
  %v617 = vadd.f32 %v407, %v542
  %v618 = vadd.f32 %v408, %v544
  %v619 = vadd.f32 %v409, %v613
  %v620 = vadd.f32 %v410, %v615
  %v621 = vxor.u32 %v617, 2147483648
  %v622 = vxor.u32 %v618, 2147483648
  %v623 = vxor.u32 %v619, 2147483648
  %v624 = vmul.f32 %v621, 1.442695
  %v625 = vpow.pop %v624
  %v626 = vmul.f32 %v622, 1.442695
  %v627 = vpow.pop %v626
  %v628 = vmul.f32 %v623, 1.442695
  %v629 = vpow.pop %v628
  %v630 = vadd.f32 %v625, 1.0
  %v631 = vadd.f32 %v627, 1.0
  %v632 = vadd.f32 %v629, 1.0
  %v633 = vrcp.pop %v630
  %v634 = vmul.f32 1.0, %v633
  %v635 = vrcp.pop %v631
  %v636 = vmul.f32 1.0, %v635
  %v637 = vrcp.pop %v632
  %v638 = vmul.f32 1.0, %v637
  %v639 = vtanh.pop %v620
  %v640 = vmul.f32 %v636, 0.0
  %v641 = vmul.f32 %v634, %v639
  %v642 = vadd.f32 %v640, %v641
  %v643 = vtanh.pop %v642
  %v644 = vmul.f32 %v638, %v643
  %v645 = vld [vmem:[%s2] sm:$0xff]
  %v646 = vld [vmem:[%s2 + $0x8] sm:$0xff]
  %v647 = vld [vmem:[%s2 + $0x10] sm:$0xff]
  %v648 = vld [vmem:[%s2 + $0x18] sm:$0xff]
  %v649 = vld [vmem:[%s2 + $0x20] sm:$0xff]
  %v650 = vld [vmem:[%s2 + $0x28] sm:$0xff]
  %v651 = vld [vmem:[%s2 + $0x30] sm:$0xff]
  %v652 = vld [vmem:[%s2 + $0x38] sm:$0xff]
  %v653 = vld [vmem:[%s2 + $0x40] sm:$0xff]
  %v654 = vld [vmem:[%s2 + $0x48] sm:$0xff]
  %v655 = vld [vmem:[%s2 + $0x50] sm:$0xff]
  %v656 = vld [vmem:[%s2 + $0x58] sm:$0xff]
  %v657 = vld [vmem:[%s2 + $0x60] sm:$0xff]
  %v658 = vld [vmem:[%s2 + $0x68] sm:$0xff]
  %v659 = vld [vmem:[%s2 + $0x70] sm:$0xff]
  %v660 = vld [vmem:[%s2 + $0x78] sm:$0xff]
  %v661 = vld [vmem:[%s2 + $0x80] sm:$0xff]
  %v662 = vld [vmem:[%s2 + $0x88] sm:$0xff]
  %v663 = vld [vmem:[%s2 + $0x90] sm:$0xff]
  %v664 = vld [vmem:[%s2 + $0x98] sm:$0xff]
  %v665 = vld [vmem:[%s2 + $0xa0] sm:$0xff]
  %v666 = vld [vmem:[%s2 + $0xa8] sm:$0xff]
  %v667 = vld [vmem:[%s2 + $0xb0] sm:$0xff]
  %v668 = vld [vmem:[%s2 + $0xb8] sm:$0xff]
  %v669 = vld [vmem:[%s2 + $0xc0] sm:$0xff]
  %v670 = vld [vmem:[%s2 + $0xc8] sm:$0xff]
  %v671 = vld [vmem:[%s2 + $0xd0] sm:$0xff]
  %v672 = vld [vmem:[%s2 + $0xd8] sm:$0xff]
  %v673 = vld [vmem:[%s2 + $0xe0] sm:$0xff]
  %v674 = vld [vmem:[%s2 + $0xe8] sm:$0xff]
  %v675 = vld [vmem:[%s2 + $0xf0] sm:$0xff]
  %v676 = vld [vmem:[%s2 + $0xf8] sm:$0xff]
  %v677 = vld [vmem:[%s2 + $0x100] sm:$0xff]
  %v678 = vld [vmem:[%s2 + $0x108] sm:$0xff]
  %v679 = vld [vmem:[%s2 + $0x110] sm:$0xff]
  %v680 = vld [vmem:[%s2 + $0x118] sm:$0xff]
  %v681 = vld [vmem:[%s2 + $0x120] sm:$0xff]
  %v682 = vld [vmem:[%s2 + $0x128] sm:$0xff]
  %v683 = vld [vmem:[%s2 + $0x130] sm:$0xff]
  %v684 = vld [vmem:[%s2 + $0x138] sm:$0xff]
  %v685 = vld [vmem:[%s2 + $0x140] sm:$0xff]
  %v686 = vld [vmem:[%s2 + $0x148] sm:$0xff]
  %v687 = vld [vmem:[%s2 + $0x150] sm:$0xff]
  %v688 = vld [vmem:[%s2 + $0x158] sm:$0xff]
  %v689 = vld [vmem:[%s2 + $0x160] sm:$0xff]
  %v690 = vld [vmem:[%s2 + $0x168] sm:$0xff]
  %v691 = vld [vmem:[%s2 + $0x170] sm:$0xff]
  %v692 = vld [vmem:[%s2 + $0x178] sm:$0xff]
  %v693 = vld [vmem:[%s2 + $0x180] sm:$0xff]
  %v694 = vld [vmem:[%s2 + $0x188] sm:$0xff]
  %v695 = vld [vmem:[%s2 + $0x190] sm:$0xff]
  %v696 = vld [vmem:[%s2 + $0x198] sm:$0xff]
  %v697 = vld [vmem:[%s2 + $0x1a0] sm:$0xff]
  %v698 = vld [vmem:[%s2 + $0x1a8] sm:$0xff]
  %v699 = vld [vmem:[%s2 + $0x1b0] sm:$0xff]
  %v700 = vld [vmem:[%s2 + $0x1b8] sm:$0xff]
  %v701 = vld [vmem:[%s2 + $0x1c0] sm:$0xff]
  %v702 = vld [vmem:[%s2 + $0x1c8] sm:$0xff]
  %v703 = vld [vmem:[%s2 + $0x1d0] sm:$0xff]
  %v704 = vld [vmem:[%s2 + $0x1d8] sm:$0xff]
  %v705 = vld [vmem:[%s2 + $0x1e0] sm:$0xff]
  %v706 = vld [vmem:[%s2 + $0x1e8] sm:$0xff]
  %v707 = vld [vmem:[%s2 + $0x1f0] sm:$0xff]
  %v708 = vld [vmem:[%s2 + $0x1f8] sm:$0xff]
  %s709 = scalar_lea.vmem %s3, 512
  %v710 = vld [vmem:[%s709] sm:$0xff]
  %v711 = vld [vmem:[%s709 + $0x8] sm:$0xff]
  %v712 = vld [vmem:[%s709 + $0x10] sm:$0xff]
  %v713 = vld [vmem:[%s709 + $0x18] sm:$0xff]
  %v714 = vld [vmem:[%s709 + $0x20] sm:$0xff]
  %v715 = vld [vmem:[%s709 + $0x28] sm:$0xff]
  %v716 = vld [vmem:[%s709 + $0x30] sm:$0xff]
  %v717 = vld [vmem:[%s709 + $0x38] sm:$0xff]
  %v718 = vld [vmem:[%s709 + $0x40] sm:$0xff]
  %v719 = vld [vmem:[%s709 + $0x48] sm:$0xff]
  %v720 = vld [vmem:[%s709 + $0x50] sm:$0xff]
  %v721 = vld [vmem:[%s709 + $0x58] sm:$0xff]
  %v722 = vld [vmem:[%s709 + $0x60] sm:$0xff]
  %v723 = vld [vmem:[%s709 + $0x68] sm:$0xff]
  %v724 = vld [vmem:[%s709 + $0x70] sm:$0xff]
  %v725 = vld [vmem:[%s709 + $0x78] sm:$0xff]
  %v726 = vld [vmem:[%s709 + $0x80] sm:$0xff]
  %v727 = vld [vmem:[%s709 + $0x88] sm:$0xff]
  %v728 = vld [vmem:[%s709 + $0x90] sm:$0xff]
  %v729 = vld [vmem:[%s709 + $0x98] sm:$0xff]
  %v730 = vld [vmem:[%s709 + $0xa0] sm:$0xff]
  %v731 = vld [vmem:[%s709 + $0xa8] sm:$0xff]
  %v732 = vld [vmem:[%s709 + $0xb0] sm:$0xff]
  %v733 = vld [vmem:[%s709 + $0xb8] sm:$0xff]
  %v734 = vld [vmem:[%s709 + $0xc0] sm:$0xff]
  %v735 = vld [vmem:[%s709 + $0xc8] sm:$0xff]
  %v736 = vld [vmem:[%s709 + $0xd0] sm:$0xff]
  %v737 = vld [vmem:[%s709 + $0xd8] sm:$0xff]
  %v738 = vld [vmem:[%s709 + $0xe0] sm:$0xff]
  %v739 = vld [vmem:[%s709 + $0xe8] sm:$0xff]
  %v740 = vld [vmem:[%s709 + $0xf0] sm:$0xff]
  %v741 = vld [vmem:[%s709 + $0xf8] sm:$0xff]
  %v742 = vld [vmem:[%s709 + $0x100] sm:$0xff]
  %v743 = vld [vmem:[%s709 + $0x108] sm:$0xff]
  %v744 = vld [vmem:[%s709 + $0x110] sm:$0xff]
  %v745 = vld [vmem:[%s709 + $0x118] sm:$0xff]
  %v746 = vld [vmem:[%s709 + $0x120] sm:$0xff]
  %v747 = vld [vmem:[%s709 + $0x128] sm:$0xff]
  %v748 = vld [vmem:[%s709 + $0x130] sm:$0xff]
  %v749 = vld [vmem:[%s709 + $0x138] sm:$0xff]
  %v750 = vld [vmem:[%s709 + $0x140] sm:$0xff]
  %v751 = vld [vmem:[%s709 + $0x148] sm:$0xff]
  %v752 = vld [vmem:[%s709 + $0x150] sm:$0xff]
  %v753 = vld [vmem:[%s709 + $0x158] sm:$0xff]
  %v754 = vld [vmem:[%s709 + $0x160] sm:$0xff]
  %v755 = vld [vmem:[%s709 + $0x168] sm:$0xff]
  %v756 = vld [vmem:[%s709 + $0x170] sm:$0xff]
  %v757 = vld [vmem:[%s709 + $0x178] sm:$0xff]
  %v758 = vld [vmem:[%s709 + $0x180] sm:$0xff]
  %v759 = vld [vmem:[%s709 + $0x188] sm:$0xff]
  %v760 = vld [vmem:[%s709 + $0x190] sm:$0xff]
  %v761 = vld [vmem:[%s709 + $0x198] sm:$0xff]
  %v762 = vld [vmem:[%s709 + $0x1a0] sm:$0xff]
  %v763 = vld [vmem:[%s709 + $0x1a8] sm:$0xff]
  %v764 = vld [vmem:[%s709 + $0x1b0] sm:$0xff]
  %v765 = vld [vmem:[%s709 + $0x1b8] sm:$0xff]
  %v766 = vld [vmem:[%s709 + $0x1c0] sm:$0xff]
  %v767 = vld [vmem:[%s709 + $0x1c8] sm:$0xff]
  %v768 = vld [vmem:[%s709 + $0x1d0] sm:$0xff]
  %v769 = vld [vmem:[%s709 + $0x1d8] sm:$0xff]
  %v770 = vld [vmem:[%s709 + $0x1e0] sm:$0xff]
  %v771 = vld [vmem:[%s709 + $0x1e8] sm:$0xff]
  %v772 = vld [vmem:[%s709 + $0x1f0] sm:$0xff]
  %v773 = vld [vmem:[%s709 + $0x1f8] sm:$0xff]
  %774 = vmatprep.subr.mxu0 %v711
  %775 = vmatpush1.msra.mxu0 %v710
  %776 = vmatprep.subr.mxu0 %v715
  %777 = vmatpush1.msra.mxu0 %v714
  %778 = vmatprep.subr.mxu0 %v719
  %779 = vmatpush1.msra.mxu0 %v718
  %780 = vmatprep.subr.mxu0 %v723
  %781 = vmatpush1.msra.mxu0 %v722
  %782 = vmatprep.subr.mxu0 %v727
  %783 = vmatpush1.msra.mxu0 %v726
  %784 = vmatprep.subr.mxu0 %v731
  %785 = vmatpush1.msra.mxu0 %v730
  %786 = vmatprep.subr.mxu0 %v735
  %787 = vmatpush1.msra.mxu0 %v734
  %788 = vmatprep.subr.mxu0 %v739
  %789 = vmatpush1.msra.mxu0 %v738
  %790 = vmatprep.subr.mxu0 %v743
  %791 = vmatpush1.msra.mxu0 %v742
  %792 = vmatprep.subr.mxu0 %v747
  %793 = vmatpush1.msra.mxu0 %v746
  %794 = vmatprep.subr.mxu0 %v751
  %795 = vmatpush1.msra.mxu0 %v750
  %796 = vmatprep.subr.mxu0 %v755
  %797 = vmatpush1.msra.mxu0 %v754
  %798 = vmatprep.subr.mxu0 %v759
  %799 = vmatpush1.msra.mxu0 %v758
  %800 = vmatprep.subr.mxu0 %v763
  %801 = vmatpush1.msra.mxu0 %v762
  %802 = vmatprep.subr.mxu0 %v767
  %803 = vmatpush1.msra.mxu0 %v766
  %804 = vmatprep.subr.mxu0 %v771
  %805 = vmatpush1.msra.mxu0 %v770
  %806 = vmatprep.subr.mxu0 0.0
  %807 = vmatpush1.msra.mxu0 0.0
  %808 = vmatprep.subr.mxu0 0.0
  %809 = vmatpush1.msra.mxu0 0.0
  %810 = vmatprep.subr.mxu0 0.0
  %811 = vmatpush1.msra.mxu0 0.0
  %812 = vmatprep.subr.mxu0 0.0
  %813 = vmatpush1.msra.mxu0 0.0
  %814 = vmatprep.subr.mxu0 0.0
  %815 = vmatpush1.msra.mxu0 0.0
  %816 = vmatprep.subr.mxu0 0.0
  %817 = vmatpush1.msra.mxu0 0.0
  %818 = vmatprep.subr.mxu0 0.0
  %819 = vmatpush1.msra.mxu0 0.0
  %820 = vmatprep.subr.mxu0 0.0
  %821 = vmatpush1.msra.mxu0 0.0
  %822 = vmatprep.subr.mxu0 0.0
  %823 = vmatpush1.msra.mxu0 0.0
  %824 = vmatprep.subr.mxu0 0.0
  %825 = vmatpush1.msra.mxu0 0.0
  %826 = vmatprep.subr.mxu0 0.0
  %827 = vmatpush1.msra.mxu0 0.0
  %828 = vmatprep.subr.mxu0 0.0
  %829 = vmatpush1.msra.mxu0 0.0
  %830 = vmatprep.subr.mxu0 0.0
  %831 = vmatpush1.msra.mxu0 0.0
  %832 = vmatprep.subr.mxu0 0.0
  %833 = vmatpush1.msra.mxu0 0.0
  %834 = vmatprep.subr.mxu0 0.0
  %835 = vmatpush1.msra.mxu0 0.0
  %836 = vmatprep.subr.mxu0 0.0
  %837 = vmatpush1.msra.mxu0 0.0
  %838 = vmatprep.mubr.f32.mxu0 0.0
  %839 = vmatmul.mubr.f32.gmra.mrb[0].mxu0 0.0
  %v840 = vpop.f32.mrb[0].mxu0
  %v841 = vadd.f32 0.0, %v840
  %v842 = vpop.f32.mrb[0].mxu0
  %v843 = vadd.f32 0.0, %v842
  %844 = vdwg.mxu0
  %845 = vmatprep.subr.mxu0 %v713
  %846 = vmatpush1.msra.mxu0 %v712
  %847 = vmatprep.subr.mxu0 %v717
  %848 = vmatpush1.msra.mxu0 %v716
  %849 = vmatprep.subr.mxu0 %v721
  %850 = vmatpush1.msra.mxu0 %v720
  %851 = vmatprep.subr.mxu0 %v725
  %852 = vmatpush1.msra.mxu0 %v724
  %853 = vmatprep.subr.mxu0 %v729
  %854 = vmatpush1.msra.mxu0 %v728
  %855 = vmatprep.subr.mxu0 %v733
  %856 = vmatpush1.msra.mxu0 %v732
  %857 = vmatprep.subr.mxu0 %v737
  %858 = vmatpush1.msra.mxu0 %v736
  %859 = vmatprep.subr.mxu0 %v741
  %860 = vmatpush1.msra.mxu0 %v740
  %861 = vmatprep.subr.mxu0 %v745
  %862 = vmatpush1.msra.mxu0 %v744
  %863 = vmatprep.subr.mxu0 %v749
  %864 = vmatpush1.msra.mxu0 %v748
  %865 = vmatprep.subr.mxu0 %v753
  %866 = vmatpush1.msra.mxu0 %v752
  %867 = vmatprep.subr.mxu0 %v757
  %868 = vmatpush1.msra.mxu0 %v756
  %869 = vmatprep.subr.mxu0 %v761
  %870 = vmatpush1.msra.mxu0 %v760
  %871 = vmatprep.subr.mxu0 %v765
  %872 = vmatpush1.msra.mxu0 %v764
  %873 = vmatprep.subr.mxu0 %v769
  %874 = vmatpush1.msra.mxu0 %v768
  %875 = vmatprep.subr.mxu0 %v773
  %876 = vmatpush1.msra.mxu0 %v772
  %877 = vmatprep.subr.mxu0 0.0
  %878 = vmatpush1.msra.mxu0 0.0
  %879 = vmatprep.subr.mxu0 0.0
  %880 = vmatpush1.msra.mxu0 0.0
  %881 = vmatprep.subr.mxu0 0.0
  %882 = vmatpush1.msra.mxu0 0.0
  %883 = vmatprep.subr.mxu0 0.0
  %884 = vmatpush1.msra.mxu0 0.0
  %885 = vmatprep.subr.mxu0 0.0
  %886 = vmatpush1.msra.mxu0 0.0
  %887 = vmatprep.subr.mxu0 0.0
  %888 = vmatpush1.msra.mxu0 0.0
  %889 = vmatprep.subr.mxu0 0.0
  %890 = vmatpush1.msra.mxu0 0.0
  %891 = vmatprep.subr.mxu0 0.0
  %892 = vmatpush1.msra.mxu0 0.0
  %893 = vmatprep.subr.mxu0 0.0
  %894 = vmatpush1.msra.mxu0 0.0
  %895 = vmatprep.subr.mxu0 0.0
  %896 = vmatpush1.msra.mxu0 0.0
  %897 = vmatprep.subr.mxu0 0.0
  %898 = vmatpush1.msra.mxu0 0.0
  %899 = vmatprep.subr.mxu0 0.0
  %900 = vmatpush1.msra.mxu0 0.0
  %901 = vmatprep.subr.mxu0 0.0
  %902 = vmatpush1.msra.mxu0 0.0
  %903 = vmatprep.subr.mxu0 0.0
  %904 = vmatpush1.msra.mxu0 0.0
  %905 = vmatprep.subr.mxu0 0.0
  %906 = vmatpush1.msra.mxu0 0.0
  %907 = vmatprep.subr.mxu0 0.0
  %908 = vmatpush1.msra.mxu0 0.0
  %909 = vmatprep.mubr.f32.mxu0 0.0
  %910 = vmatmul.mubr.f32.gmra.mrb[0].mxu0 0.0
  %v911 = vpop.f32.mrb[0].mxu0
  %v912 = vadd.f32 0.0, %v911
  %v913 = vpop.f32.mrb[0].mxu0
  %v914 = vadd.f32 0.0, %v913
  %915 = vdwg.mxu0
  %916 = vmatprep.subr.mxu0 %v646
  %917 = vmatpush1.msra.mxu0 %v645
  %918 = vmatprep.subr.mxu0 %v650
  %919 = vmatpush1.msra.mxu0 %v649
  %920 = vmatprep.subr.mxu0 %v654
  %921 = vmatpush1.msra.mxu0 %v653
  %922 = vmatprep.subr.mxu0 %v658
  %923 = vmatpush1.msra.mxu0 %v657
  %924 = vmatprep.subr.mxu0 %v662
  %925 = vmatpush1.msra.mxu0 %v661
  %926 = vmatprep.subr.mxu0 %v666
  %927 = vmatpush1.msra.mxu0 %v665
  %928 = vmatprep.subr.mxu0 %v670
  %929 = vmatpush1.msra.mxu0 %v669
  %930 = vmatprep.subr.mxu0 %v674
  %931 = vmatpush1.msra.mxu0 %v673
  %932 = vmatprep.subr.mxu0 %v678
  %933 = vmatpush1.msra.mxu0 %v677
  %934 = vmatprep.subr.mxu0 %v682
  %935 = vmatpush1.msra.mxu0 %v681
  %936 = vmatprep.subr.mxu0 %v686
  %937 = vmatpush1.msra.mxu0 %v685
  %938 = vmatprep.subr.mxu0 %v690
  %939 = vmatpush1.msra.mxu0 %v689
  %940 = vmatprep.subr.mxu0 %v694
  %941 = vmatpush1.msra.mxu0 %v693
  %942 = vmatprep.subr.mxu0 %v698
  %943 = vmatpush1.msra.mxu0 %v697
  %944 = vmatprep.subr.mxu0 %v702
  %945 = vmatpush1.msra.mxu0 %v701
  %946 = vmatprep.subr.mxu0 %v706
  %947 = vmatpush1.msra.mxu0 %v705
  %948 = vmatprep.subr.mxu0 0.0
  %949 = vmatpush1.msra.mxu0 0.0
  %950 = vmatprep.subr.mxu0 0.0
  %951 = vmatpush1.msra.mxu0 0.0
  %952 = vmatprep.subr.mxu0 0.0
  %953 = vmatpush1.msra.mxu0 0.0
  %954 = vmatprep.subr.mxu0 0.0
  %955 = vmatpush1.msra.mxu0 0.0
  %956 = vmatprep.subr.mxu0 0.0
  %957 = vmatpush1.msra.mxu0 0.0
  %958 = vmatprep.subr.mxu0 0.0
  %959 = vmatpush1.msra.mxu0 0.0
  %960 = vmatprep.subr.mxu0 0.0
  %961 = vmatpush1.msra.mxu0 0.0
  %962 = vmatprep.subr.mxu0 0.0
  %963 = vmatpush1.msra.mxu0 0.0
  %964 = vmatprep.subr.mxu0 0.0
  %965 = vmatpush1.msra.mxu0 0.0
  %966 = vmatprep.subr.mxu0 0.0
  %967 = vmatpush1.msra.mxu0 0.0
  %968 = vmatprep.subr.mxu0 0.0
  %969 = vmatpush1.msra.mxu0 0.0
  %970 = vmatprep.subr.mxu0 0.0
  %971 = vmatpush1.msra.mxu0 0.0
  %972 = vmatprep.subr.mxu0 0.0
  %973 = vmatpush1.msra.mxu0 0.0
  %974 = vmatprep.subr.mxu0 0.0
  %975 = vmatpush1.msra.mxu0 0.0
  %976 = vmatprep.subr.mxu0 0.0
  %977 = vmatpush1.msra.mxu0 0.0
  %978 = vmatprep.subr.mxu0 0.0
  %979 = vmatpush1.msra.mxu0 0.0
  %980 = vmatprep.mubr.f32.mxu0 0.0
  %981 = vmatmul.mubr.f32.gmra.mrb[0].mxu0 %v644
  %v982 = vpop.f32.mrb[0].mxu0
  %v983 = vadd.f32 %v841, %v982
  %v984 = vpop.f32.mrb[0].mxu0
  %v985 = vadd.f32 %v843, %v984
  %986 = vdwg.mxu0
  %987 = vmatprep.subr.mxu0 %v648
  %988 = vmatpush1.msra.mxu0 %v647
  %989 = vmatprep.subr.mxu0 %v652
  %990 = vmatpush1.msra.mxu0 %v651
  %991 = vmatprep.subr.mxu0 %v656
  %992 = vmatpush1.msra.mxu0 %v655
  %993 = vmatprep.subr.mxu0 %v660
  %994 = vmatpush1.msra.mxu0 %v659
  %995 = vmatprep.subr.mxu0 %v664
  %996 = vmatpush1.msra.mxu0 %v663
  %997 = vmatprep.subr.mxu0 %v668
  %998 = vmatpush1.msra.mxu0 %v667
  %999 = vmatprep.subr.mxu0 %v672
  %1000 = vmatpush1.msra.mxu0 %v671
  %1001 = vmatprep.subr.mxu0 %v676
  %1002 = vmatpush1.msra.mxu0 %v675
  %1003 = vmatprep.subr.mxu0 %v680
  %1004 = vmatpush1.msra.mxu0 %v679
  %1005 = vmatprep.subr.mxu0 %v684
  %1006 = vmatpush1.msra.mxu0 %v683
  %1007 = vmatprep.subr.mxu0 %v688
  %1008 = vmatpush1.msra.mxu0 %v687
  %1009 = vmatprep.subr.mxu0 %v692
  %1010 = vmatpush1.msra.mxu0 %v691
  %1011 = vmatprep.subr.mxu0 %v696
  %1012 = vmatpush1.msra.mxu0 %v695
  %1013 = vmatprep.subr.mxu0 %v700
  %1014 = vmatpush1.msra.mxu0 %v699
  %1015 = vmatprep.subr.mxu0 %v704
  %1016 = vmatpush1.msra.mxu0 %v703
  %1017 = vmatprep.subr.mxu0 %v708
  %1018 = vmatpush1.msra.mxu0 %v707
  %1019 = vmatprep.subr.mxu0 0.0
  %1020 = vmatpush1.msra.mxu0 0.0
  %1021 = vmatprep.subr.mxu0 0.0
  %1022 = vmatpush1.msra.mxu0 0.0
  %1023 = vmatprep.subr.mxu0 0.0
  %1024 = vmatpush1.msra.mxu0 0.0
  %1025 = vmatprep.subr.mxu0 0.0
  %1026 = vmatpush1.msra.mxu0 0.0
  %1027 = vmatprep.subr.mxu0 0.0
  %1028 = vmatpush1.msra.mxu0 0.0
  %1029 = vmatprep.subr.mxu0 0.0
  %1030 = vmatpush1.msra.mxu0 0.0
  %1031 = vmatprep.subr.mxu0 0.0
  %1032 = vmatpush1.msra.mxu0 0.0
  %1033 = vmatprep.subr.mxu0 0.0
  %1034 = vmatpush1.msra.mxu0 0.0
  %1035 = vmatprep.subr.mxu0 0.0
  %1036 = vmatpush1.msra.mxu0 0.0
  %1037 = vmatprep.subr.mxu0 0.0
  %1038 = vmatpush1.msra.mxu0 0.0
  %1039 = vmatprep.subr.mxu0 0.0
  %1040 = vmatpush1.msra.mxu0 0.0
  %1041 = vmatprep.subr.mxu0 0.0
  %1042 = vmatpush1.msra.mxu0 0.0
  %1043 = vmatprep.subr.mxu0 0.0
  %1044 = vmatpush1.msra.mxu0 0.0
  %1045 = vmatprep.subr.mxu0 0.0
  %1046 = vmatpush1.msra.mxu0 0.0
  %1047 = vmatprep.subr.mxu0 0.0
  %1048 = vmatpush1.msra.mxu0 0.0
  %1049 = vmatprep.subr.mxu0 0.0
  %1050 = vmatpush1.msra.mxu0 0.0
  %1051 = vmatprep.mubr.f32.mxu0 0.0
  %1052 = vmatmul.mubr.f32.gmra.mrb[0].mxu0 %v644
  %v1053 = vpop.f32.mrb[0].mxu0
  %v1054 = vadd.f32 %v912, %v1053
  %v1055 = vpop.f32.mrb[0].mxu0
  %v1056 = vadd.f32 %v914, %v1055
  %1057 = vdwg.mxu0
  %v1058 = vadd.f32 %v983, %v390
  %v1059 = vadd.f32 %v985, %v394
  %v1060 = vadd.f32 %v1054, %v398
  %v1061 = vadd.f32 %v1056, %v402
  %v1062 = vxor.u32 %v1058, 2147483648
  %v1063 = vxor.u32 %v1059, 2147483648
  %v1064 = vxor.u32 %v1060, 2147483648
  %v1065 = vmul.f32 %v1062, 1.442695
  %v1066 = vpow.pop %v1065
  %v1067 = vmul.f32 %v1063, 1.442695
  %v1068 = vpow.pop %v1067
  %v1069 = vmul.f32 %v1064, 1.442695
  %v1070 = vpow.pop %v1069
  %v1071 = vadd.f32 %v1066, 1.0
  %v1072 = vadd.f32 %v1068, 1.0
  %v1073 = vadd.f32 %v1070, 1.0
  %v1074 = vrcp.pop %v1071
  %v1075 = vmul.f32 1.0, %v1074
  %v1076 = vrcp.pop %v1072
  %v1077 = vmul.f32 1.0, %v1076
  %v1078 = vrcp.pop %v1073
  %v1079 = vmul.f32 1.0, %v1078
  %v1080 = vtanh.pop %v1061
  %v1081 = vmul.f32 %v1077, 0.0
  %v1082 = vmul.f32 %v1075, %v1080
  %v1083 = vadd.f32 %v1081, %v1082
  %v1084 = vtanh.pop %v1083
  %v1085 = vmul.f32 %v1079, %v1084
  %v1086 = vld [vmem:[#allocation2 + $0x20] sm:$0xff]
  %v1087 = vld [vmem:[#allocation2 + $0x28] sm:$0xff]
  %v1088 = vld [vmem:[#allocation2 + $0x30] sm:$0xff]
  %v1089 = vld [vmem:[#allocation2 + $0x38] sm:$0xff]
  %1090 = vmatprep.subr.mxu0 %v412
  %1091 = vmatpush1.msra.mxu0 %v411
  %1092 = vmatprep.subr.mxu0 %v416
  %1093 = vmatpush1.msra.mxu0 %v415
  %1094 = vmatprep.subr.mxu0 %v420
  %1095 = vmatpush1.msra.mxu0 %v419
  %1096 = vmatprep.subr.mxu0 %v424
  %1097 = vmatpush1.msra.mxu0 %v423
  %1098 = vmatprep.subr.mxu0 %v428
  %1099 = vmatpush1.msra.mxu0 %v427
  %1100 = vmatprep.subr.mxu0 %v432
  %1101 = vmatpush1.msra.mxu0 %v431
  %1102 = vmatprep.subr.mxu0 %v436
  %1103 = vmatpush1.msra.mxu0 %v435
  %1104 = vmatprep.subr.mxu0 %v440
  %1105 = vmatpush1.msra.mxu0 %v439
  %1106 = vmatprep.subr.mxu0 %v444
  %1107 = vmatpush1.msra.mxu0 %v443
  %1108 = vmatprep.subr.mxu0 %v448
  %1109 = vmatpush1.msra.mxu0 %v447
  %1110 = vmatprep.subr.mxu0 %v452
  %1111 = vmatpush1.msra.mxu0 %v451
  %1112 = vmatprep.subr.mxu0 %v456
  %1113 = vmatpush1.msra.mxu0 %v455
  %1114 = vmatprep.subr.mxu0 %v460
  %1115 = vmatpush1.msra.mxu0 %v459
  %1116 = vmatprep.subr.mxu0 %v464
  %1117 = vmatpush1.msra.mxu0 %v463
  %1118 = vmatprep.subr.mxu0 %v468
  %1119 = vmatpush1.msra.mxu0 %v467
  %1120 = vmatprep.subr.mxu0 %v472
  %1121 = vmatpush1.msra.mxu0 %v471
  %1122 = vmatprep.subr.mxu0 0.0
  %1123 = vmatpush1.msra.mxu0 0.0
  %1124 = vmatprep.subr.mxu0 0.0
  %1125 = vmatpush1.msra.mxu0 0.0
  %1126 = vmatprep.subr.mxu0 0.0
  %1127 = vmatpush1.msra.mxu0 0.0
  %1128 = vmatprep.subr.mxu0 0.0
  %1129 = vmatpush1.msra.mxu0 0.0
  %1130 = vmatprep.subr.mxu0 0.0
  %1131 = vmatpush1.msra.mxu0 0.0
  %1132 = vmatprep.subr.mxu0 0.0
  %1133 = vmatpush1.msra.mxu0 0.0
  %1134 = vmatprep.subr.mxu0 0.0
  %1135 = vmatpush1.msra.mxu0 0.0
  %1136 = vmatprep.subr.mxu0 0.0
  %1137 = vmatpush1.msra.mxu0 0.0
  %1138 = vmatprep.subr.mxu0 0.0
  %1139 = vmatpush1.msra.mxu0 0.0
  %1140 = vmatprep.subr.mxu0 0.0
  %1141 = vmatpush1.msra.mxu0 0.0
  %1142 = vmatprep.subr.mxu0 0.0
  %1143 = vmatpush1.msra.mxu0 0.0
  %1144 = vmatprep.subr.mxu0 0.0
  %1145 = vmatpush1.msra.mxu0 0.0
  %1146 = vmatprep.subr.mxu0 0.0
  %1147 = vmatpush1.msra.mxu0 0.0
  %1148 = vmatprep.subr.mxu0 0.0
  %1149 = vmatpush1.msra.mxu0 0.0
  %1150 = vmatprep.subr.mxu0 0.0
  %1151 = vmatpush1.msra.mxu0 0.0
  %1152 = vmatprep.subr.mxu0 0.0
  %1153 = vmatpush1.msra.mxu0 0.0
  %1154 = vmatprep.mubr.f32.mxu0 0.0
  %1155 = vmatmul.mubr.f32.gmra.mrb[0].mxu0 %v644
  %v1156 = vpop.f32.mrb[0].mxu0
  %v1157 = vadd.f32 0.0, %v1156
  %v1158 = vpop.f32.mrb[0].mxu0
  %v1159 = vadd.f32 0.0, %v1158
  %1160 = vdwg.mxu0
  %1161 = vmatprep.subr.mxu0 %v414
  %1162 = vmatpush1.msra.mxu0 %v413
  %1163 = vmatprep.subr.mxu0 %v418
  %1164 = vmatpush1.msra.mxu0 %v417
  %1165 = vmatprep.subr.mxu0 %v422
  %1166 = vmatpush1.msra.mxu0 %v421
  %1167 = vmatprep.subr.mxu0 %v426
  %1168 = vmatpush1.msra.mxu0 %v425
  %1169 = vmatprep.subr.mxu0 %v430
  %1170 = vmatpush1.msra.mxu0 %v429
  %1171 = vmatprep.subr.mxu0 %v434
  %1172 = vmatpush1.msra.mxu0 %v433
  %1173 = vmatprep.subr.mxu0 %v438
  %1174 = vmatpush1.msra.mxu0 %v437
  %1175 = vmatprep.subr.mxu0 %v442
  %1176 = vmatpush1.msra.mxu0 %v441
  %1177 = vmatprep.subr.mxu0 %v446
  %1178 = vmatpush1.msra.mxu0 %v445
  %1179 = vmatprep.subr.mxu0 %v450
  %1180 = vmatpush1.msra.mxu0 %v449
  %1181 = vmatprep.subr.mxu0 %v454
  %1182 = vmatpush1.msra.mxu0 %v453
  %1183 = vmatprep.subr.mxu0 %v458
  %1184 = vmatpush1.msra.mxu0 %v457
  %1185 = vmatprep.subr.mxu0 %v462
  %1186 = vmatpush1.msra.mxu0 %v461
  %1187 = vmatprep.subr.mxu0 %v466
  %1188 = vmatpush1.msra.mxu0 %v465
  %1189 = vmatprep.subr.mxu0 %v470
  %1190 = vmatpush1.msra.mxu0 %v469
  %1191 = vmatprep.subr.mxu0 %v474
  %1192 = vmatpush1.msra.mxu0 %v473
  %1193 = vmatprep.subr.mxu0 0.0
  %1194 = vmatpush1.msra.mxu0 0.0
  %1195 = vmatprep.subr.mxu0 0.0
  %1196 = vmatpush1.msra.mxu0 0.0
  %1197 = vmatprep.subr.mxu0 0.0
  %1198 = vmatpush1.msra.mxu0 0.0
  %1199 = vmatprep.subr.mxu0 0.0
  %1200 = vmatpush1.msra.mxu0 0.0
  %1201 = vmatprep.subr.mxu0 0.0
  %1202 = vmatpush1.msra.mxu0 0.0
  %1203 = vmatprep.subr.mxu0 0.0
  %1204 = vmatpush1.msra.mxu0 0.0
  %1205 = vmatprep.subr.mxu0 0.0
  %1206 = vmatpush1.msra.mxu0 0.0
  %1207 = vmatprep.subr.mxu0 0.0
  %1208 = vmatpush1.msra.mxu0 0.0
  %1209 = vmatprep.subr.mxu0 0.0
  %1210 = vmatpush1.msra.mxu0 0.0
  %1211 = vmatprep.subr.mxu0 0.0
  %1212 = vmatpush1.msra.mxu0 0.0
  %1213 = vmatprep.subr.mxu0 0.0
  %1214 = vmatpush1.msra.mxu0 0.0
  %1215 = vmatprep.subr.mxu0 0.0
  %1216 = vmatpush1.msra.mxu0 0.0
  %1217 = vmatprep.subr.mxu0 0.0
  %1218 = vmatpush1.msra.mxu0 0.0
  %1219 = vmatprep.subr.mxu0 0.0
  %1220 = vmatpush1.msra.mxu0 0.0
  %1221 = vmatprep.subr.mxu0 0.0
  %1222 = vmatpush1.msra.mxu0 0.0
  %1223 = vmatprep.subr.mxu0 0.0
  %1224 = vmatpush1.msra.mxu0 0.0
  %1225 = vmatprep.mubr.f32.mxu0 0.0
  %1226 = vmatmul.mubr.f32.gmra.mrb[0].mxu0 %v644
  %v1227 = vpop.f32.mrb[0].mxu0
  %v1228 = vadd.f32 0.0, %v1227
  %v1229 = vpop.f32.mrb[0].mxu0
  %v1230 = vadd.f32 0.0, %v1229
  %1231 = vdwg.mxu0
  %v1232 = vadd.f32 %v1086, %v1157
  %v1233 = vadd.f32 %v1087, %v1159
  %v1234 = vadd.f32 %v1088, %v1228
  %v1235 = vadd.f32 %v1089, %v1230
  %v1236 = vxor.u32 %v1232, 2147483648
  %v1237 = vxor.u32 %v1233, 2147483648
  %v1238 = vxor.u32 %v1234, 2147483648
  %v1239 = vmul.f32 %v1236, 1.442695
  %v1240 = vpow.pop %v1239
  %v1241 = vmul.f32 %v1237, 1.442695
  %v1242 = vpow.pop %v1241
  %v1243 = vmul.f32 %v1238, 1.442695
  %v1244 = vpow.pop %v1243
  %v1245 = vadd.f32 %v1240, 1.0
  %v1246 = vadd.f32 %v1242, 1.0
  %v1247 = vadd.f32 %v1244, 1.0
  %v1248 = vrcp.pop %v1245
  %v1249 = vmul.f32 1.0, %v1248
  %v1250 = vrcp.pop %v1246
  %v1251 = vmul.f32 1.0, %v1250
  %v1252 = vrcp.pop %v1247
  %v1253 = vmul.f32 1.0, %v1252
  %v1254 = vtanh.pop %v1235
  %v1255 = vmul.f32 %v1251, %v642
  %v1256 = vmul.f32 %v1249, %v1254
  %v1257 = vadd.f32 %v1255, %v1256
  %v1258 = vtanh.pop %v1257
  %v1259 = vmul.f32 %v1253, %v1258
  %1260 = vmatprep.subr.mxu0 %v711
  %1261 = vmatpush1.msra.mxu0 %v710
  %1262 = vmatprep.subr.mxu0 %v715
  %1263 = vmatpush1.msra.mxu0 %v714
  %1264 = vmatprep.subr.mxu0 %v719
  %1265 = vmatpush1.msra.mxu0 %v718
  %1266 = vmatprep.subr.mxu0 %v723
  %1267 = vmatpush1.msra.mxu0 %v722
  %1268 = vmatprep.subr.mxu0 %v727
  %1269 = vmatpush1.msra.mxu0 %v726
  %1270 = vmatprep.subr.mxu0 %v731
  %1271 = vmatpush1.msra.mxu0 %v730
  %1272 = vmatprep.subr.mxu0 %v735
  %1273 = vmatpush1.msra.mxu0 %v734
  %1274 = vmatprep.subr.mxu0 %v739
  %1275 = vmatpush1.msra.mxu0 %v738
  %1276 = vmatprep.subr.mxu0 %v743
  %1277 = vmatpush1.msra.mxu0 %v742
  %1278 = vmatprep.subr.mxu0 %v747
  %1279 = vmatpush1.msra.mxu0 %v746
  %1280 = vmatprep.subr.mxu0 %v751
  %1281 = vmatpush1.msra.mxu0 %v750
  %1282 = vmatprep.subr.mxu0 %v755
  %1283 = vmatpush1.msra.mxu0 %v754
  %1284 = vmatprep.subr.mxu0 %v759
  %1285 = vmatpush1.msra.mxu0 %v758
  %1286 = vmatprep.subr.mxu0 %v763
  %1287 = vmatpush1.msra.mxu0 %v762
  %1288 = vmatprep.subr.mxu0 %v767
  %1289 = vmatpush1.msra.mxu0 %v766
  %1290 = vmatprep.subr.mxu0 %v771
  %1291 = vmatpush1.msra.mxu0 %v770
  %1292 = vmatprep.subr.mxu0 0.0
  %1293 = vmatpush1.msra.mxu0 0.0
  %1294 = vmatprep.subr.mxu0 0.0
  %1295 = vmatpush1.msra.mxu0 0.0
  %1296 = vmatprep.subr.mxu0 0.0
  %1297 = vmatpush1.msra.mxu0 0.0
  %1298 = vmatprep.subr.mxu0 0.0
  %1299 = vmatpush1.msra.mxu0 0.0
  %1300 = vmatprep.subr.mxu0 0.0
  %1301 = vmatpush1.msra.mxu0 0.0
  %1302 = vmatprep.subr.mxu0 0.0
  %1303 = vmatpush1.msra.mxu0 0.0
  %1304 = vmatprep.subr.mxu0 0.0
  %1305 = vmatpush1.msra.mxu0 0.0
  %1306 = vmatprep.subr.mxu0 0.0
  %1307 = vmatpush1.msra.mxu0 0.0
  %1308 = vmatprep.subr.mxu0 0.0
  %1309 = vmatpush1.msra.mxu0 0.0
  %1310 = vmatprep.subr.mxu0 0.0
  %1311 = vmatpush1.msra.mxu0 0.0
  %1312 = vmatprep.subr.mxu0 0.0
  %1313 = vmatpush1.msra.mxu0 0.0
  %1314 = vmatprep.subr.mxu0 0.0
  %1315 = vmatpush1.msra.mxu0 0.0
  %1316 = vmatprep.subr.mxu0 0.0
  %1317 = vmatpush1.msra.mxu0 0.0
  %1318 = vmatprep.subr.mxu0 0.0
  %1319 = vmatpush1.msra.mxu0 0.0
  %1320 = vmatprep.subr.mxu0 0.0
  %1321 = vmatpush1.msra.mxu0 0.0
  %1322 = vmatprep.subr.mxu0 0.0
  %1323 = vmatpush1.msra.mxu0 0.0
  %1324 = vmatprep.mubr.f32.mxu0 0.0
  %1325 = vmatmul.mubr.f32.gmra.mrb[0].mxu0 %v1085
  %v1326 = vpop.f32.mrb[0].mxu0
  %v1327 = vadd.f32 0.0, %v1326
  %v1328 = vpop.f32.mrb[0].mxu0
  %v1329 = vadd.f32 0.0, %v1328
  %1330 = vdwg.mxu0
  %1331 = vmatprep.subr.mxu0 %v713
  %1332 = vmatpush1.msra.mxu0 %v712
  %1333 = vmatprep.subr.mxu0 %v717
  %1334 = vmatpush1.msra.mxu0 %v716
  %1335 = vmatprep.subr.mxu0 %v721
  %1336 = vmatpush1.msra.mxu0 %v720
  %1337 = vmatprep.subr.mxu0 %v725
  %1338 = vmatpush1.msra.mxu0 %v724
  %1339 = vmatprep.subr.mxu0 %v729
  %1340 = vmatpush1.msra.mxu0 %v728
  %1341 = vmatprep.subr.mxu0 %v733
  %1342 = vmatpush1.msra.mxu0 %v732
  %1343 = vmatprep.subr.mxu0 %v737
  %1344 = vmatpush1.msra.mxu0 %v736
  %1345 = vmatprep.subr.mxu0 %v741
  %1346 = vmatpush1.msra.mxu0 %v740
  %1347 = vmatprep.subr.mxu0 %v745
  %1348 = vmatpush1.msra.mxu0 %v744
  %1349 = vmatprep.subr.mxu0 %v749
  %1350 = vmatpush1.msra.mxu0 %v748
  %1351 = vmatprep.subr.mxu0 %v753
  %1352 = vmatpush1.msra.mxu0 %v752
  %1353 = vmatprep.subr.mxu0 %v757
  %1354 = vmatpush1.msra.mxu0 %v756
  %1355 = vmatprep.subr.mxu0 %v761
  %1356 = vmatpush1.msra.mxu0 %v760
  %1357 = vmatprep.subr.mxu0 %v765
  %1358 = vmatpush1.msra.mxu0 %v764
  %1359 = vmatprep.subr.mxu0 %v769
  %1360 = vmatpush1.msra.mxu0 %v768
  %1361 = vmatprep.subr.mxu0 %v773
  %1362 = vmatpush1.msra.mxu0 %v772
  %1363 = vmatprep.subr.mxu0 0.0
  %1364 = vmatpush1.msra.mxu0 0.0
  %1365 = vmatprep.subr.mxu0 0.0
  %1366 = vmatpush1.msra.mxu0 0.0
  %1367 = vmatprep.subr.mxu0 0.0
  %1368 = vmatpush1.msra.mxu0 0.0
  %1369 = vmatprep.subr.mxu0 0.0
  %1370 = vmatpush1.msra.mxu0 0.0
  %1371 = vmatprep.subr.mxu0 0.0
  %1372 = vmatpush1.msra.mxu0 0.0
  %1373 = vmatprep.subr.mxu0 0.0
  %1374 = vmatpush1.msra.mxu0 0.0
  %1375 = vmatprep.subr.mxu0 0.0
  %1376 = vmatpush1.msra.mxu0 0.0
  %1377 = vmatprep.subr.mxu0 0.0
  %1378 = vmatpush1.msra.mxu0 0.0
  %1379 = vmatprep.subr.mxu0 0.0
  %1380 = vmatpush1.msra.mxu0 0.0
  %1381 = vmatprep.subr.mxu0 0.0
  %1382 = vmatpush1.msra.mxu0 0.0
  %1383 = vmatprep.subr.mxu0 0.0
  %1384 = vmatpush1.msra.mxu0 0.0
  %1385 = vmatprep.subr.mxu0 0.0
  %1386 = vmatpush1.msra.mxu0 0.0
  %1387 = vmatprep.subr.mxu0 0.0
  %1388 = vmatpush1.msra.mxu0 0.0
  %1389 = vmatprep.subr.mxu0 0.0
  %1390 = vmatpush1.msra.mxu0 0.0
  %1391 = vmatprep.subr.mxu0 0.0
  %1392 = vmatpush1.msra.mxu0 0.0
  %1393 = vmatprep.subr.mxu0 0.0
  %1394 = vmatpush1.msra.mxu0 0.0
  %1395 = vmatprep.mubr.f32.mxu0 0.0
  %1396 = vmatmul.mubr.f32.gmra.mrb[0].mxu0 %v1085
  %v1397 = vpop.f32.mrb[0].mxu0
  %v1398 = vadd.f32 0.0, %v1397
  %v1399 = vpop.f32.mrb[0].mxu0
  %v1400 = vadd.f32 0.0, %v1399
  %1401 = vdwg.mxu0
  %1402 = vmatprep.subr.mxu0 %v646
  %1403 = vmatpush1.msra.mxu0 %v645
  %1404 = vmatprep.subr.mxu0 %v650
  %1405 = vmatpush1.msra.mxu0 %v649
  %1406 = vmatprep.subr.mxu0 %v654
  %1407 = vmatpush1.msra.mxu0 %v653
  %1408 = vmatprep.subr.mxu0 %v658
  %1409 = vmatpush1.msra.mxu0 %v657
  %1410 = vmatprep.subr.mxu0 %v662
  %1411 = vmatpush1.msra.mxu0 %v661
  %1412 = vmatprep.subr.mxu0 %v666
  %1413 = vmatpush1.msra.mxu0 %v665
  %1414 = vmatprep.subr.mxu0 %v670
  %1415 = vmatpush1.msra.mxu0 %v669
  %1416 = vmatprep.subr.mxu0 %v674
  %1417 = vmatpush1.msra.mxu0 %v673
  %1418 = vmatprep.subr.mxu0 %v678
  %1419 = vmatpush1.msra.mxu0 %v677
  %1420 = vmatprep.subr.mxu0 %v682
  %1421 = vmatpush1.msra.mxu0 %v681
  %1422 = vmatprep.subr.mxu0 %v686
  %1423 = vmatpush1.msra.mxu0 %v685
  %1424 = vmatprep.subr.mxu0 %v690
  %1425 = vmatpush1.msra.mxu0 %v689
  %1426 = vmatprep.subr.mxu0 %v694
  %1427 = vmatpush1.msra.mxu0 %v693
  %1428 = vmatprep.subr.mxu0 %v698
  %1429 = vmatpush1.msra.mxu0 %v697
  %1430 = vmatprep.subr.mxu0 %v702
  %1431 = vmatpush1.msra.mxu0 %v701
  %1432 = vmatprep.subr.mxu0 %v706
  %1433 = vmatpush1.msra.mxu0 %v705
  %1434 = vmatprep.subr.mxu0 0.0
  %1435 = vmatpush1.msra.mxu0 0.0
  %1436 = vmatprep.subr.mxu0 0.0
  %1437 = vmatpush1.msra.mxu0 0.0
  %1438 = vmatprep.subr.mxu0 0.0
  %1439 = vmatpush1.msra.mxu0 0.0
  %1440 = vmatprep.subr.mxu0 0.0
  %1441 = vmatpush1.msra.mxu0 0.0
  %1442 = vmatprep.subr.mxu0 0.0
  %1443 = vmatpush1.msra.mxu0 0.0
  %1444 = vmatprep.subr.mxu0 0.0
  %1445 = vmatpush1.msra.mxu0 0.0
  %1446 = vmatprep.subr.mxu0 0.0
  %1447 = vmatpush1.msra.mxu0 0.0
  %1448 = vmatprep.subr.mxu0 0.0
  %1449 = vmatpush1.msra.mxu0 0.0
  %1450 = vmatprep.subr.mxu0 0.0
  %1451 = vmatpush1.msra.mxu0 0.0
  %1452 = vmatprep.subr.mxu0 0.0
  %1453 = vmatpush1.msra.mxu0 0.0
  %1454 = vmatprep.subr.mxu0 0.0
  %1455 = vmatpush1.msra.mxu0 0.0
  %1456 = vmatprep.subr.mxu0 0.0
  %1457 = vmatpush1.msra.mxu0 0.0
  %1458 = vmatprep.subr.mxu0 0.0
  %1459 = vmatpush1.msra.mxu0 0.0
  %1460 = vmatprep.subr.mxu0 0.0
  %1461 = vmatpush1.msra.mxu0 0.0
  %1462 = vmatprep.subr.mxu0 0.0
  %1463 = vmatpush1.msra.mxu0 0.0
  %1464 = vmatprep.subr.mxu0 0.0
  %1465 = vmatpush1.msra.mxu0 0.0
  %1466 = vmatprep.mubr.f32.mxu0 0.0
  %1467 = vmatmul.mubr.f32.gmra.mrb[0].mxu0 %v1259
  %v1468 = vpop.f32.mrb[0].mxu0
  %v1469 = vadd.f32 %v1327, %v1468
  %v1470 = vpop.f32.mrb[0].mxu0
  %v1471 = vadd.f32 %v1329, %v1470
  %1472 = vdwg.mxu0
  %1473 = vmatprep.subr.mxu0 %v648
  %1474 = vmatpush1.msra.mxu0 %v647
  %1475 = vmatprep.subr.mxu0 %v652
  %1476 = vmatpush1.msra.mxu0 %v651
  %1477 = vmatprep.subr.mxu0 %v656
  %1478 = vmatpush1.msra.mxu0 %v655
  %1479 = vmatprep.subr.mxu0 %v660
  %1480 = vmatpush1.msra.mxu0 %v659
  %1481 = vmatprep.subr.mxu0 %v664
  %1482 = vmatpush1.msra.mxu0 %v663
  %1483 = vmatprep.subr.mxu0 %v668
  %1484 = vmatpush1.msra.mxu0 %v667
  %1485 = vmatprep.subr.mxu0 %v672
  %1486 = vmatpush1.msra.mxu0 %v671
  %1487 = vmatprep.subr.mxu0 %v676
  %1488 = vmatpush1.msra.mxu0 %v675
  %1489 = vmatprep.subr.mxu0 %v680
  %1490 = vmatpush1.msra.mxu0 %v679
  %1491 = vmatprep.subr.mxu0 %v684
  %1492 = vmatpush1.msra.mxu0 %v683
  %1493 = vmatprep.subr.mxu0 %v688
  %1494 = vmatpush1.msra.mxu0 %v687
  %1495 = vmatprep.subr.mxu0 %v692
  %1496 = vmatpush1.msra.mxu0 %v691
  %1497 = vmatprep.subr.mxu0 %v696
  %1498 = vmatpush1.msra.mxu0 %v695
  %1499 = vmatprep.subr.mxu0 %v700
  %1500 = vmatpush1.msra.mxu0 %v699
  %1501 = vmatprep.subr.mxu0 %v704
  %1502 = vmatpush1.msra.mxu0 %v703
  %1503 = vmatprep.subr.mxu0 %v708
  %1504 = vmatpush1.msra.mxu0 %v707
  %1505 = vmatprep.subr.mxu0 0.0
  %1506 = vmatpush1.msra.mxu0 0.0
  %1507 = vmatprep.subr.mxu0 0.0
  %1508 = vmatpush1.msra.mxu0 0.0
  %1509 = vmatprep.subr.mxu0 0.0
  %1510 = vmatpush1.msra.mxu0 0.0
  %1511 = vmatprep.subr.mxu0 0.0
  %1512 = vmatpush1.msra.mxu0 0.0
  %1513 = vmatprep.subr.mxu0 0.0
  %1514 = vmatpush1.msra.mxu0 0.0
  %1515 = vmatprep.subr.mxu0 0.0
  %1516 = vmatpush1.msra.mxu0 0.0
  %1517 = vmatprep.subr.mxu0 0.0
  %1518 = vmatpush1.msra.mxu0 0.0
  %1519 = vmatprep.subr.mxu0 0.0
  %1520 = vmatpush1.msra.mxu0 0.0
  %1521 = vmatprep.subr.mxu0 0.0
  %1522 = vmatpush1.msra.mxu0 0.0
  %1523 = vmatprep.subr.mxu0 0.0
  %1524 = vmatpush1.msra.mxu0 0.0
  %1525 = vmatprep.subr.mxu0 0.0
  %1526 = vmatpush1.msra.mxu0 0.0
  %1527 = vmatprep.subr.mxu0 0.0
  %1528 = vmatpush1.msra.mxu0 0.0
  %1529 = vmatprep.subr.mxu0 0.0
  %1530 = vmatpush1.msra.mxu0 0.0
  %1531 = vmatprep.subr.mxu0 0.0
  %1532 = vmatpush1.msra.mxu0 0.0
  %1533 = vmatprep.subr.mxu0 0.0
  %1534 = vmatpush1.msra.mxu0 0.0
  %1535 = vmatprep.subr.mxu0 0.0
  %1536 = vmatpush1.msra.mxu0 0.0
  %1537 = vmatprep.mubr.f32.mxu0 0.0
  %1538 = vmatmul.mubr.f32.gmra.mrb[0].mxu0 %v1259
  %v1539 = vpop.f32.mrb[0].mxu0
  %v1540 = vadd.f32 %v1398, %v1539
  %v1541 = vpop.f32.mrb[0].mxu0
  %v1542 = vadd.f32 %v1400, %v1541
  %1543 = vdwg.mxu0
  %v1544 = vadd.f32 %v1469, %v390
  %v1545 = vadd.f32 %v1471, %v394
  %v1546 = vadd.f32 %v1540, %v398
  %v1547 = vadd.f32 %v1542, %v402
  %v1548 = vxor.u32 %v1544, 2147483648
  %v1549 = vxor.u32 %v1545, 2147483648
  %v1550 = vxor.u32 %v1546, 2147483648
  %v1551 = vmul.f32 %v1548, 1.442695
  %v1552 = vpow.pop %v1551
  %v1553 = vmul.f32 %v1549, 1.442695
  %v1554 = vpow.pop %v1553
  %v1555 = vmul.f32 %v1550, 1.442695
  %v1556 = vpow.pop %v1555
  %v1557 = vadd.f32 %v1552, 1.0
  %v1558 = vadd.f32 %v1554, 1.0
  %v1559 = vadd.f32 %v1556, 1.0
  %v1560 = vrcp.pop %v1557
  %v1561 = vmul.f32 1.0, %v1560
  %v1562 = vrcp.pop %v1558
  %v1563 = vmul.f32 1.0, %v1562
  %v1564 = vrcp.pop %v1559
  %v1565 = vmul.f32 1.0, %v1564
  %v1566 = vtanh.pop %v1547
  %v1567 = vmul.f32 %v1563, %v1083
  %v1568 = vmul.f32 %v1561, %v1566
  %v1569 = vadd.f32 %v1567, %v1568
  %v1570 = vtanh.pop %v1569
  %v1571 = vmul.f32 %v1565, %v1570
  %v1572 = vld [vmem:[#allocation2 + $0x40] sm:$0xff]
  %v1573 = vld [vmem:[#allocation2 + $0x48] sm:$0xff]
  %v1574 = vld [vmem:[#allocation2 + $0x50] sm:$0xff]
  %v1575 = vld [vmem:[#allocation2 + $0x58] sm:$0xff]
  %1576 = vmatprep.subr.mxu0 %v412
  %1577 = vmatpush1.msra.mxu0 %v411
  %1578 = vmatprep.subr.mxu0 %v416
  %1579 = vmatpush1.msra.mxu0 %v415
  %1580 = vmatprep.subr.mxu0 %v420
  %1581 = vmatpush1.msra.mxu0 %v419
  %1582 = vmatprep.subr.mxu0 %v424
  %1583 = vmatpush1.msra.mxu0 %v423
  %1584 = vmatprep.subr.mxu0 %v428
  %1585 = vmatpush1.msra.mxu0 %v427
  %1586 = vmatprep.subr.mxu0 %v432
  %1587 = vmatpush1.msra.mxu0 %v431
  %1588 = vmatprep.subr.mxu0 %v436
  %1589 = vmatpush1.msra.mxu0 %v435
  %1590 = vmatprep.subr.mxu0 %v440
  %1591 = vmatpush1.msra.mxu0 %v439
  %1592 = vmatprep.subr.mxu0 %v444
  %1593 = vmatpush1.msra.mxu0 %v443
  %1594 = vmatprep.subr.mxu0 %v448
  %1595 = vmatpush1.msra.mxu0 %v447
  %1596 = vmatprep.subr.mxu0 %v452
  %1597 = vmatpush1.msra.mxu0 %v451
  %1598 = vmatprep.subr.mxu0 %v456
  %1599 = vmatpush1.msra.mxu0 %v455
  %1600 = vmatprep.subr.mxu0 %v460
  %1601 = vmatpush1.msra.mxu0 %v459
  %1602 = vmatprep.subr.mxu0 %v464
  %1603 = vmatpush1.msra.mxu0 %v463
  %1604 = vmatprep.subr.mxu0 %v468
  %1605 = vmatpush1.msra.mxu0 %v467
  %1606 = vmatprep.subr.mxu0 %v472
  %1607 = vmatpush1.msra.mxu0 %v471
  %1608 = vmatprep.subr.mxu0 0.0
  %1609 = vmatpush1.msra.mxu0 0.0
  %1610 = vmatprep.subr.mxu0 0.0
  %1611 = vmatpush1.msra.mxu0 0.0
  %1612 = vmatprep.subr.mxu0 0.0
  %1613 = vmatpush1.msra.mxu0 0.0
  %1614 = vmatprep.subr.mxu0 0.0
  %1615 = vmatpush1.msra.mxu0 0.0
  %1616 = vmatprep.subr.mxu0 0.0
  %1617 = vmatpush1.msra.mxu0 0.0
  %1618 = vmatprep.subr.mxu0 0.0
  %1619 = vmatpush1.msra.mxu0 0.0
  %1620 = vmatprep.subr.mxu0 0.0
  %1621 = vmatpush1.msra.mxu0 0.0
  %1622 = vmatprep.subr.mxu0 0.0
  %1623 = vmatpush1.msra.mxu0 0.0
  %1624 = vmatprep.subr.mxu0 0.0
  %1625 = vmatpush1.msra.mxu0 0.0
  %1626 = vmatprep.subr.mxu0 0.0
  %1627 = vmatpush1.msra.mxu0 0.0
  %1628 = vmatprep.subr.mxu0 0.0
  %1629 = vmatpush1.msra.mxu0 0.0
  %1630 = vmatprep.subr.mxu0 0.0
  %1631 = vmatpush1.msra.mxu0 0.0
  %1632 = vmatprep.subr.mxu0 0.0
  %1633 = vmatpush1.msra.mxu0 0.0
  %1634 = vmatprep.subr.mxu0 0.0
  %1635 = vmatpush1.msra.mxu0 0.0
  %1636 = vmatprep.subr.mxu0 0.0
  %1637 = vmatpush1.msra.mxu0 0.0
  %1638 = vmatprep.subr.mxu0 0.0
  %1639 = vmatpush1.msra.mxu0 0.0
  %1640 = vmatprep.mubr.f32.mxu0 0.0
  %1641 = vmatmul.mubr.f32.gmra.mrb[0].mxu0 %v1259
  %v1642 = vpop.f32.mrb[0].mxu0
  %v1643 = vadd.f32 0.0, %v1642
  %v1644 = vpop.f32.mrb[0].mxu0
  %v1645 = vadd.f32 0.0, %v1644
  %1646 = vdwg.mxu0
  %1647 = vmatprep.subr.mxu0 %v414
  %1648 = vmatpush1.msra.mxu0 %v413
  %1649 = vmatprep.subr.mxu0 %v418
  %1650 = vmatpush1.msra.mxu0 %v417
  %1651 = vmatprep.subr.mxu0 %v422
  %1652 = vmatpush1.msra.mxu0 %v421
  %1653 = vmatprep.subr.mxu0 %v426
  %1654 = vmatpush1.msra.mxu0 %v425
  %1655 = vmatprep.subr.mxu0 %v430
  %1656 = vmatpush1.msra.mxu0 %v429
  %1657 = vmatprep.subr.mxu0 %v434
  %1658 = vmatpush1.msra.mxu0 %v433
  %1659 = vmatprep.subr.mxu0 %v438
  %1660 = vmatpush1.msra.mxu0 %v437
  %1661 = vmatprep.subr.mxu0 %v442
  %1662 = vmatpush1.msra.mxu0 %v441
  %1663 = vmatprep.subr.mxu0 %v446
  %1664 = vmatpush1.msra.mxu0 %v445
  %1665 = vmatprep.subr.mxu0 %v450
  %1666 = vmatpush1.msra.mxu0 %v449
  %1667 = vmatprep.subr.mxu0 %v454
  %1668 = vmatpush1.msra.mxu0 %v453
  %1669 = vmatprep.subr.mxu0 %v458
  %1670 = vmatpush1.msra.mxu0 %v457
  %1671 = vmatprep.subr.mxu0 %v462
  %1672 = vmatpush1.msra.mxu0 %v461
  %1673 = vmatprep.subr.mxu0 %v466
  %1674 = vmatpush1.msra.mxu0 %v465
  %1675 = vmatprep.subr.mxu0 %v470
  %1676 = vmatpush1.msra.mxu0 %v469
  %1677 = vmatprep.subr.mxu0 %v474
  %1678 = vmatpush1.msra.mxu0 %v473
  %1679 = vmatprep.subr.mxu0 0.0
  %1680 = vmatpush1.msra.mxu0 0.0
  %1681 = vmatprep.subr.mxu0 0.0
  %1682 = vmatpush1.msra.mxu0 0.0
  %1683 = vmatprep.subr.mxu0 0.0
  %1684 = vmatpush1.msra.mxu0 0.0
  %1685 = vmatprep.subr.mxu0 0.0
  %1686 = vmatpush1.msra.mxu0 0.0
  %1687 = vmatprep.subr.mxu0 0.0
  %1688 = vmatpush1.msra.mxu0 0.0
  %1689 = vmatprep.subr.mxu0 0.0
  %1690 = vmatpush1.msra.mxu0 0.0
  %1691 = vmatprep.subr.mxu0 0.0
  %1692 = vmatpush1.msra.mxu0 0.0
  %1693 = vmatprep.subr.mxu0 0.0
  %1694 = vmatpush1.msra.mxu0 0.0
  %1695 = vmatprep.subr.mxu0 0.0
  %1696 = vmatpush1.msra.mxu0 0.0
  %1697 = vmatprep.subr.mxu0 0.0
  %1698 = vmatpush1.msra.mxu0 0.0
  %1699 = vmatprep.subr.mxu0 0.0
  %1700 = vmatpush1.msra.mxu0 0.0
  %1701 = vmatprep.subr.mxu0 0.0
  %1702 = vmatpush1.msra.mxu0 0.0
  %1703 = vmatprep.subr.mxu0 0.0
  %1704 = vmatpush1.msra.mxu0 0.0
  %1705 = vmatprep.subr.mxu0 0.0
  %1706 = vmatpush1.msra.mxu0 0.0
  %1707 = vmatprep.subr.mxu0 0.0
  %1708 = vmatpush1.msra.mxu0 0.0
  %1709 = vmatprep.subr.mxu0 0.0
  %1710 = vmatpush1.msra.mxu0 0.0
  %1711 = vmatprep.mubr.f32.mxu0 0.0
  %1712 = vmatmul.mubr.f32.gmra.mrb[0].mxu0 %v1259
  %v1713 = vpop.f32.mrb[0].mxu0
  %v1714 = vadd.f32 0.0, %v1713
  %v1715 = vpop.f32.mrb[0].mxu0
  %v1716 = vadd.f32 0.0, %v1715
  %1717 = vdwg.mxu0
  %v1718 = vadd.f32 %v1572, %v1643
  %v1719 = vadd.f32 %v1573, %v1645
  %v1720 = vadd.f32 %v1574, %v1714
  %v1721 = vadd.f32 %v1575, %v1716
  %v1722 = vxor.u32 %v1718, 2147483648
  %v1723 = vxor.u32 %v1719, 2147483648
  %v1724 = vxor.u32 %v1720, 2147483648
  %v1725 = vmul.f32 %v1722, 1.442695
  %v1726 = vpow.pop %v1725
  %v1727 = vmul.f32 %v1723, 1.442695
  %v1728 = vpow.pop %v1727
  %v1729 = vmul.f32 %v1724, 1.442695
  %v1730 = vpow.pop %v1729
  %v1731 = vadd.f32 %v1726, 1.0
  %v1732 = vadd.f32 %v1728, 1.0
  %v1733 = vadd.f32 %v1730, 1.0
  %v1734 = vrcp.pop %v1731
  %v1735 = vmul.f32 1.0, %v1734
  %v1736 = vrcp.pop %v1732
  %v1737 = vmul.f32 1.0, %v1736
  %v1738 = vrcp.pop %v1733
  %v1739 = vmul.f32 1.0, %v1738
  %v1740 = vtanh.pop %v1721
  %v1741 = vmul.f32 %v1737, %v1257
  %v1742 = vmul.f32 %v1735, %v1740
  %v1743 = vadd.f32 %v1741, %v1742
  %v1744 = vtanh.pop %v1743
  %v1745 = vmul.f32 %v1739, %v1744
  %1746 = vmatprep.subr.mxu0 %v711
  %1747 = vmatpush1.msra.mxu0 %v710
  %1748 = vmatprep.subr.mxu0 %v715
  %1749 = vmatpush1.msra.mxu0 %v714
  %1750 = vmatprep.subr.mxu0 %v719
  %1751 = vmatpush1.msra.mxu0 %v718
  %1752 = vmatprep.subr.mxu0 %v723
  %1753 = vmatpush1.msra.mxu0 %v722
  %1754 = vmatprep.subr.mxu0 %v727
  %1755 = vmatpush1.msra.mxu0 %v726
  %1756 = vmatprep.subr.mxu0 %v731
  %1757 = vmatpush1.msra.mxu0 %v730
  %1758 = vmatprep.subr.mxu0 %v735
  %1759 = vmatpush1.msra.mxu0 %v734
  %1760 = vmatprep.subr.mxu0 %v739
  %1761 = vmatpush1.msra.mxu0 %v738
  %1762 = vmatprep.subr.mxu0 %v743
  %1763 = vmatpush1.msra.mxu0 %v742
  %1764 = vmatprep.subr.mxu0 %v747
  %1765 = vmatpush1.msra.mxu0 %v746
  %1766 = vmatprep.subr.mxu0 %v751
  %1767 = vmatpush1.msra.mxu0 %v750
  %1768 = vmatprep.subr.mxu0 %v755
  %1769 = vmatpush1.msra.mxu0 %v754
  %1770 = vmatprep.subr.mxu0 %v759
  %1771 = vmatpush1.msra.mxu0 %v758
  %1772 = vmatprep.subr.mxu0 %v763
  %1773 = vmatpush1.msra.mxu0 %v762
  %1774 = vmatprep.subr.mxu0 %v767
  %1775 = vmatpush1.msra.mxu0 %v766
  %1776 = vmatprep.subr.mxu0 %v771
  %1777 = vmatpush1.msra.mxu0 %v770
  %1778 = vmatprep.subr.mxu0 0.0
  %1779 = vmatpush1.msra.mxu0 0.0
  %1780 = vmatprep.subr.mxu0 0.0
  %1781 = vmatpush1.msra.mxu0 0.0
  %1782 = vmatprep.subr.mxu0 0.0
  %1783 = vmatpush1.msra.mxu0 0.0
  %1784 = vmatprep.subr.mxu0 0.0
  %1785 = vmatpush1.msra.mxu0 0.0
  %1786 = vmatprep.subr.mxu0 0.0
  %1787 = vmatpush1.msra.mxu0 0.0
  %1788 = vmatprep.subr.mxu0 0.0
  %1789 = vmatpush1.msra.mxu0 0.0
  %1790 = vmatprep.subr.mxu0 0.0
  %1791 = vmatpush1.msra.mxu0 0.0
  %1792 = vmatprep.subr.mxu0 0.0
  %1793 = vmatpush1.msra.mxu0 0.0
  %1794 = vmatprep.subr.mxu0 0.0
  %1795 = vmatpush1.msra.mxu0 0.0
  %1796 = vmatprep.subr.mxu0 0.0
  %1797 = vmatpush1.msra.mxu0 0.0
  %1798 = vmatprep.subr.mxu0 0.0
  %1799 = vmatpush1.msra.mxu0 0.0
  %1800 = vmatprep.subr.mxu0 0.0
  %1801 = vmatpush1.msra.mxu0 0.0
  %1802 = vmatprep.subr.mxu0 0.0
  %1803 = vmatpush1.msra.mxu0 0.0
  %1804 = vmatprep.subr.mxu0 0.0
  %1805 = vmatpush1.msra.mxu0 0.0
  %1806 = vmatprep.subr.mxu0 0.0
  %1807 = vmatpush1.msra.mxu0 0.0
  %1808 = vmatprep.subr.mxu0 0.0
  %1809 = vmatpush1.msra.mxu0 0.0
  %1810 = vmatprep.mubr.f32.mxu0 0.0
  %1811 = vmatmul.mubr.f32.gmra.mrb[0].mxu0 %v1571
  %v1812 = vpop.f32.mrb[0].mxu0
  %v1813 = vadd.f32 0.0, %v1812
  %v1814 = vpop.f32.mrb[0].mxu0
  %v1815 = vadd.f32 0.0, %v1814
  %1816 = vdwg.mxu0
  %1817 = vmatprep.subr.mxu0 %v713
  %1818 = vmatpush1.msra.mxu0 %v712
  %1819 = vmatprep.subr.mxu0 %v717
  %1820 = vmatpush1.msra.mxu0 %v716
  %1821 = vmatprep.subr.mxu0 %v721
  %1822 = vmatpush1.msra.mxu0 %v720
  %1823 = vmatprep.subr.mxu0 %v725
  %1824 = vmatpush1.msra.mxu0 %v724
  %1825 = vmatprep.subr.mxu0 %v729
  %1826 = vmatpush1.msra.mxu0 %v728
  %1827 = vmatprep.subr.mxu0 %v733
  %1828 = vmatpush1.msra.mxu0 %v732
  %1829 = vmatprep.subr.mxu0 %v737
  %1830 = vmatpush1.msra.mxu0 %v736
  %1831 = vmatprep.subr.mxu0 %v741
  %1832 = vmatpush1.msra.mxu0 %v740
  %1833 = vmatprep.subr.mxu0 %v745
  %1834 = vmatpush1.msra.mxu0 %v744
  %1835 = vmatprep.subr.mxu0 %v749
  %1836 = vmatpush1.msra.mxu0 %v748
  %1837 = vmatprep.subr.mxu0 %v753
  %1838 = vmatpush1.msra.mxu0 %v752
  %1839 = vmatprep.subr.mxu0 %v757
  %1840 = vmatpush1.msra.mxu0 %v756
  %1841 = vmatprep.subr.mxu0 %v761
  %1842 = vmatpush1.msra.mxu0 %v760
  %1843 = vmatprep.subr.mxu0 %v765
  %1844 = vmatpush1.msra.mxu0 %v764
  %1845 = vmatprep.subr.mxu0 %v769
  %1846 = vmatpush1.msra.mxu0 %v768
  %1847 = vmatprep.subr.mxu0 %v773
  %1848 = vmatpush1.msra.mxu0 %v772
  %1849 = vmatprep.subr.mxu0 0.0
  %1850 = vmatpush1.msra.mxu0 0.0
  %1851 = vmatprep.subr.mxu0 0.0
  %1852 = vmatpush1.msra.mxu0 0.0
  %1853 = vmatprep.subr.mxu0 0.0
  %1854 = vmatpush1.msra.mxu0 0.0
  %1855 = vmatprep.subr.mxu0 0.0
  %1856 = vmatpush1.msra.mxu0 0.0
  %1857 = vmatprep.subr.mxu0 0.0
  %1858 = vmatpush1.msra.mxu0 0.0
  %1859 = vmatprep.subr.mxu0 0.0
  %1860 = vmatpush1.msra.mxu0 0.0
  %1861 = vmatprep.subr.mxu0 0.0
  %1862 = vmatpush1.msra.mxu0 0.0
  %1863 = vmatprep.subr.mxu0 0.0
  %1864 = vmatpush1.msra.mxu0 0.0
  %1865 = vmatprep.subr.mxu0 0.0
  %1866 = vmatpush1.msra.mxu0 0.0
  %1867 = vmatprep.subr.mxu0 0.0
  %1868 = vmatpush1.msra.mxu0 0.0
  %1869 = vmatprep.subr.mxu0 0.0
  %1870 = vmatpush1.msra.mxu0 0.0
  %1871 = vmatprep.subr.mxu0 0.0
  %1872 = vmatpush1.msra.mxu0 0.0
  %1873 = vmatprep.subr.mxu0 0.0
  %1874 = vmatpush1.msra.mxu0 0.0
  %1875 = vmatprep.subr.mxu0 0.0
  %1876 = vmatpush1.msra.mxu0 0.0
  %1877 = vmatprep.subr.mxu0 0.0
  %1878 = vmatpush1.msra.mxu0 0.0
  %1879 = vmatprep.subr.mxu0 0.0
  %1880 = vmatpush1.msra.mxu0 0.0
  %1881 = vmatprep.mubr.f32.mxu0 0.0
  %1882 = vmatmul.mubr.f32.gmra.mrb[0].mxu0 %v1571
  %v1883 = vpop.f32.mrb[0].mxu0
  %v1884 = vadd.f32 0.0, %v1883
  %v1885 = vpop.f32.mrb[0].mxu0
  %v1886 = vadd.f32 0.0, %v1885
  %1887 = vdwg.mxu0
  %1888 = vmatprep.subr.mxu0 %v646
  %1889 = vmatpush1.msra.mxu0 %v645
  %1890 = vmatprep.subr.mxu0 %v650
  %1891 = vmatpush1.msra.mxu0 %v649
  %1892 = vmatprep.subr.mxu0 %v654
  %1893 = vmatpush1.msra.mxu0 %v653
  %1894 = vmatprep.subr.mxu0 %v658
  %1895 = vmatpush1.msra.mxu0 %v657
  %1896 = vmatprep.subr.mxu0 %v662
  %1897 = vmatpush1.msra.mxu0 %v661
  %1898 = vmatprep.subr.mxu0 %v666
  %1899 = vmatpush1.msra.mxu0 %v665
  %1900 = vmatprep.subr.mxu0 %v670
  %1901 = vmatpush1.msra.mxu0 %v669
  %1902 = vmatprep.subr.mxu0 %v674
  %1903 = vmatpush1.msra.mxu0 %v673
  %1904 = vmatprep.subr.mxu0 %v678
  %1905 = vmatpush1.msra.mxu0 %v677
  %1906 = vmatprep.subr.mxu0 %v682
  %1907 = vmatpush1.msra.mxu0 %v681
  %1908 = vmatprep.subr.mxu0 %v686
  %1909 = vmatpush1.msra.mxu0 %v685
  %1910 = vmatprep.subr.mxu0 %v690
  %1911 = vmatpush1.msra.mxu0 %v689
  %1912 = vmatprep.subr.mxu0 %v694
  %1913 = vmatpush1.msra.mxu0 %v693
  %1914 = vmatprep.subr.mxu0 %v698
  %1915 = vmatpush1.msra.mxu0 %v697
  %1916 = vmatprep.subr.mxu0 %v702
  %1917 = vmatpush1.msra.mxu0 %v701
  %1918 = vmatprep.subr.mxu0 %v706
  %1919 = vmatpush1.msra.mxu0 %v705
  %1920 = vmatprep.subr.mxu0 0.0
  %1921 = vmatpush1.msra.mxu0 0.0
  %1922 = vmatprep.subr.mxu0 0.0
  %1923 = vmatpush1.msra.mxu0 0.0
  %1924 = vmatprep.subr.mxu0 0.0
  %1925 = vmatpush1.msra.mxu0 0.0
  %1926 = vmatprep.subr.mxu0 0.0
  %1927 = vmatpush1.msra.mxu0 0.0
  %1928 = vmatprep.subr.mxu0 0.0
  %1929 = vmatpush1.msra.mxu0 0.0
  %1930 = vmatprep.subr.mxu0 0.0
  %1931 = vmatpush1.msra.mxu0 0.0
  %1932 = vmatprep.subr.mxu0 0.0
  %1933 = vmatpush1.msra.mxu0 0.0
  %1934 = vmatprep.subr.mxu0 0.0
  %1935 = vmatpush1.msra.mxu0 0.0
  %1936 = vmatprep.subr.mxu0 0.0
  %1937 = vmatpush1.msra.mxu0 0.0
  %1938 = vmatprep.subr.mxu0 0.0
  %1939 = vmatpush1.msra.mxu0 0.0
  %1940 = vmatprep.subr.mxu0 0.0
  %1941 = vmatpush1.msra.mxu0 0.0
  %1942 = vmatprep.subr.mxu0 0.0
  %1943 = vmatpush1.msra.mxu0 0.0
  %1944 = vmatprep.subr.mxu0 0.0
  %1945 = vmatpush1.msra.mxu0 0.0
  %1946 = vmatprep.subr.mxu0 0.0
  %1947 = vmatpush1.msra.mxu0 0.0
  %1948 = vmatprep.subr.mxu0 0.0
  %1949 = vmatpush1.msra.mxu0 0.0
  %1950 = vmatprep.subr.mxu0 0.0
  %1951 = vmatpush1.msra.mxu0 0.0
  %1952 = vmatprep.mubr.f32.mxu0 0.0
  %1953 = vmatmul.mubr.f32.gmra.mrb[0].mxu0 %v1745
  %v1954 = vpop.f32.mrb[0].mxu0
  %v1955 = vadd.f32 %v1813, %v1954
  %v1956 = vpop.f32.mrb[0].mxu0
  %v1957 = vadd.f32 %v1815, %v1956
  %1958 = vdwg.mxu0
  %1959 = vmatprep.subr.mxu0 %v648
  %1960 = vmatpush1.msra.mxu0 %v647
  %1961 = vmatprep.subr.mxu0 %v652
  %1962 = vmatpush1.msra.mxu0 %v651
  %1963 = vmatprep.subr.mxu0 %v656
  %1964 = vmatpush1.msra.mxu0 %v655
  %1965 = vmatprep.subr.mxu0 %v660
  %1966 = vmatpush1.msra.mxu0 %v659
  %1967 = vmatprep.subr.mxu0 %v664
  %1968 = vmatpush1.msra.mxu0 %v663
  %1969 = vmatprep.subr.mxu0 %v668
  %1970 = vmatpush1.msra.mxu0 %v667
  %1971 = vmatprep.subr.mxu0 %v672
  %1972 = vmatpush1.msra.mxu0 %v671
  %1973 = vmatprep.subr.mxu0 %v676
  %1974 = vmatpush1.msra.mxu0 %v675
  %1975 = vmatprep.subr.mxu0 %v680
  %1976 = vmatpush1.msra.mxu0 %v679
  %1977 = vmatprep.subr.mxu0 %v684
  %1978 = vmatpush1.msra.mxu0 %v683
  %1979 = vmatprep.subr.mxu0 %v688
  %1980 = vmatpush1.msra.mxu0 %v687
  %1981 = vmatprep.subr.mxu0 %v692
  %1982 = vmatpush1.msra.mxu0 %v691
  %1983 = vmatprep.subr.mxu0 %v696
  %1984 = vmatpush1.msra.mxu0 %v695
  %1985 = vmatprep.subr.mxu0 %v700
  %1986 = vmatpush1.msra.mxu0 %v699
  %1987 = vmatprep.subr.mxu0 %v704
  %1988 = vmatpush1.msra.mxu0 %v703
  %1989 = vmatprep.subr.mxu0 %v708
  %1990 = vmatpush1.msra.mxu0 %v707
  %1991 = vmatprep.subr.mxu0 0.0
  %1992 = vmatpush1.msra.mxu0 0.0
  %1993 = vmatprep.subr.mxu0 0.0
  %1994 = vmatpush1.msra.mxu0 0.0
  %1995 = vmatprep.subr.mxu0 0.0
  %1996 = vmatpush1.msra.mxu0 0.0
  %1997 = vmatprep.subr.mxu0 0.0
  %1998 = vmatpush1.msra.mxu0 0.0
  %1999 = vmatprep.subr.mxu0 0.0
  %2000 = vmatpush1.msra.mxu0 0.0
  %2001 = vmatprep.subr.mxu0 0.0
  %2002 = vmatpush1.msra.mxu0 0.0
  %2003 = vmatprep.subr.mxu0 0.0
  %2004 = vmatpush1.msra.mxu0 0.0
  %2005 = vmatprep.subr.mxu0 0.0
  %2006 = vmatpush1.msra.mxu0 0.0
  %2007 = vmatprep.subr.mxu0 0.0
  %2008 = vmatpush1.msra.mxu0 0.0
  %2009 = vmatprep.subr.mxu0 0.0
  %2010 = vmatpush1.msra.mxu0 0.0
  %2011 = vmatprep.subr.mxu0 0.0
  %2012 = vmatpush1.msra.mxu0 0.0
  %2013 = vmatprep.subr.mxu0 0.0
  %2014 = vmatpush1.msra.mxu0 0.0
  %2015 = vmatprep.subr.mxu0 0.0
  %2016 = vmatpush1.msra.mxu0 0.0
  %2017 = vmatprep.subr.mxu0 0.0
  %2018 = vmatpush1.msra.mxu0 0.0
  %2019 = vmatprep.subr.mxu0 0.0
  %2020 = vmatpush1.msra.mxu0 0.0
  %2021 = vmatprep.subr.mxu0 0.0
  %2022 = vmatpush1.msra.mxu0 0.0
  %2023 = vmatprep.mubr.f32.mxu0 0.0
  %2024 = vmatmul.mubr.f32.gmra.mrb[0].mxu0 %v1745
  %v2025 = vpop.f32.mrb[0].mxu0
  %v2026 = vadd.f32 %v1884, %v2025
  %v2027 = vpop.f32.mrb[0].mxu0
  %v2028 = vadd.f32 %v1886, %v2027
  %2029 = vdwg.mxu0
  %v2030 = vadd.f32 %v1955, %v390
  %v2031 = vadd.f32 %v1957, %v394
  %v2032 = vadd.f32 %v2026, %v398
  %v2033 = vadd.f32 %v2028, %v402
  %v2034 = vxor.u32 %v2030, 2147483648
  %v2035 = vxor.u32 %v2031, 2147483648
  %v2036 = vxor.u32 %v2032, 2147483648
  %v2037 = vmul.f32 %v2034, 1.442695
  %v2038 = vpow.pop %v2037
  %v2039 = vmul.f32 %v2035, 1.442695
  %v2040 = vpow.pop %v2039
  %v2041 = vmul.f32 %v2036, 1.442695
  %v2042 = vpow.pop %v2041
  %v2043 = vadd.f32 %v2038, 1.0
  %v2044 = vadd.f32 %v2040, 1.0
  %v2045 = vadd.f32 %v2042, 1.0
  %v2046 = vrcp.pop %v2043
  %v2047 = vmul.f32 1.0, %v2046
  %v2048 = vrcp.pop %v2044
  %v2049 = vmul.f32 1.0, %v2048
  %v2050 = vrcp.pop %v2045
  %v2051 = vmul.f32 1.0, %v2050
  %v2052 = vtanh.pop %v2033
  %v2053 = vmul.f32 %v2049, %v1569
  %v2054 = vmul.f32 %v2047, %v2052
  %v2055 = vadd.f32 %v2053, %v2054
  %v2056 = vtanh.pop %v2055
  %v2057 = vmul.f32 %v2051, %v2056
  %v2058 = vld [vmem:[#allocation2 + $0x60] sm:$0xff]
  %v2059 = vld [vmem:[#allocation2 + $0x68] sm:$0xff]
  %v2060 = vld [vmem:[#allocation2 + $0x70] sm:$0xff]
  %v2061 = vld [vmem:[#allocation2 + $0x78] sm:$0xff]
  %2062 = vmatprep.subr.mxu0 %v412
  %2063 = vmatpush1.msra.mxu0 %v411
  %2064 = vmatprep.subr.mxu0 %v416
  %2065 = vmatpush1.msra.mxu0 %v415
  %2066 = vmatprep.subr.mxu0 %v420
  %2067 = vmatpush1.msra.mxu0 %v419
  %2068 = vmatprep.subr.mxu0 %v424
  %2069 = vmatpush1.msra.mxu0 %v423
  %2070 = vmatprep.subr.mxu0 %v428
  %2071 = vmatpush1.msra.mxu0 %v427
  %2072 = vmatprep.subr.mxu0 %v432
  %2073 = vmatpush1.msra.mxu0 %v431
  %2074 = vmatprep.subr.mxu0 %v436
  %2075 = vmatpush1.msra.mxu0 %v435
  %2076 = vmatprep.subr.mxu0 %v440
  %2077 = vmatpush1.msra.mxu0 %v439
  %2078 = vmatprep.subr.mxu0 %v444
  %2079 = vmatpush1.msra.mxu0 %v443
  %2080 = vmatprep.subr.mxu0 %v448
  %2081 = vmatpush1.msra.mxu0 %v447
  %2082 = vmatprep.subr.mxu0 %v452
  %2083 = vmatpush1.msra.mxu0 %v451
  %2084 = vmatprep.subr.mxu0 %v456
  %2085 = vmatpush1.msra.mxu0 %v455
  %2086 = vmatprep.subr.mxu0 %v460
  %2087 = vmatpush1.msra.mxu0 %v459
  %2088 = vmatprep.subr.mxu0 %v464
  %2089 = vmatpush1.msra.mxu0 %v463
  %2090 = vmatprep.subr.mxu0 %v468
  %2091 = vmatpush1.msra.mxu0 %v467
  %2092 = vmatprep.subr.mxu0 %v472
  %2093 = vmatpush1.msra.mxu0 %v471
  %2094 = vmatprep.subr.mxu0 0.0
  %2095 = vmatpush1.msra.mxu0 0.0
  %2096 = vmatprep.subr.mxu0 0.0
  %2097 = vmatpush1.msra.mxu0 0.0
  %2098 = vmatprep.subr.mxu0 0.0
  %2099 = vmatpush1.msra.mxu0 0.0
  %2100 = vmatprep.subr.mxu0 0.0
  %2101 = vmatpush1.msra.mxu0 0.0
  %2102 = vmatprep.subr.mxu0 0.0
  %2103 = vmatpush1.msra.mxu0 0.0
  %2104 = vmatprep.subr.mxu0 0.0
  %2105 = vmatpush1.msra.mxu0 0.0
  %2106 = vmatprep.subr.mxu0 0.0
  %2107 = vmatpush1.msra.mxu0 0.0
  %2108 = vmatprep.subr.mxu0 0.0
  %2109 = vmatpush1.msra.mxu0 0.0
  %2110 = vmatprep.subr.mxu0 0.0
  %2111 = vmatpush1.msra.mxu0 0.0
  %2112 = vmatprep.subr.mxu0 0.0
  %2113 = vmatpush1.msra.mxu0 0.0
  %2114 = vmatprep.subr.mxu0 0.0
  %2115 = vmatpush1.msra.mxu0 0.0
  %2116 = vmatprep.subr.mxu0 0.0
  %2117 = vmatpush1.msra.mxu0 0.0
  %2118 = vmatprep.subr.mxu0 0.0
  %2119 = vmatpush1.msra.mxu0 0.0
  %2120 = vmatprep.subr.mxu0 0.0
  %2121 = vmatpush1.msra.mxu0 0.0
  %2122 = vmatprep.subr.mxu0 0.0
  %2123 = vmatpush1.msra.mxu0 0.0
  %2124 = vmatprep.subr.mxu0 0.0
  %2125 = vmatpush1.msra.mxu0 0.0
  %2126 = vmatprep.mubr.f32.mxu0 0.0
  %2127 = vmatmul.mubr.f32.gmra.mrb[0].mxu0 %v1745
  %v2128 = vpop.f32.mrb[0].mxu0
  %v2129 = vadd.f32 0.0, %v2128
  %v2130 = vpop.f32.mrb[0].mxu0
  %v2131 = vadd.f32 0.0, %v2130
  %2132 = vdwg.mxu0
  %2133 = vmatprep.subr.mxu0 %v414
  %2134 = vmatpush1.msra.mxu0 %v413
  %2135 = vmatprep.subr.mxu0 %v418
  %2136 = vmatpush1.msra.mxu0 %v417
  %2137 = vmatprep.subr.mxu0 %v422
  %2138 = vmatpush1.msra.mxu0 %v421
  %2139 = vmatprep.subr.mxu0 %v426
  %2140 = vmatpush1.msra.mxu0 %v425
  %2141 = vmatprep.subr.mxu0 %v430
  %2142 = vmatpush1.msra.mxu0 %v429
  %2143 = vmatprep.subr.mxu0 %v434
  %2144 = vmatpush1.msra.mxu0 %v433
  %2145 = vmatprep.subr.mxu0 %v438
  %2146 = vmatpush1.msra.mxu0 %v437
  %2147 = vmatprep.subr.mxu0 %v442
  %2148 = vmatpush1.msra.mxu0 %v441
  %2149 = vmatprep.subr.mxu0 %v446
  %2150 = vmatpush1.msra.mxu0 %v445
  %2151 = vmatprep.subr.mxu0 %v450
  %2152 = vmatpush1.msra.mxu0 %v449
  %2153 = vmatprep.subr.mxu0 %v454
  %2154 = vmatpush1.msra.mxu0 %v453
  %2155 = vmatprep.subr.mxu0 %v458
  %2156 = vmatpush1.msra.mxu0 %v457
  %2157 = vmatprep.subr.mxu0 %v462
  %2158 = vmatpush1.msra.mxu0 %v461
  %2159 = vmatprep.subr.mxu0 %v466
  %2160 = vmatpush1.msra.mxu0 %v465
  %2161 = vmatprep.subr.mxu0 %v470
  %2162 = vmatpush1.msra.mxu0 %v469
  %2163 = vmatprep.subr.mxu0 %v474
  %2164 = vmatpush1.msra.mxu0 %v473
  %2165 = vmatprep.subr.mxu0 0.0
  %2166 = vmatpush1.msra.mxu0 0.0
  %2167 = vmatprep.subr.mxu0 0.0
  %2168 = vmatpush1.msra.mxu0 0.0
  %2169 = vmatprep.subr.mxu0 0.0
  %2170 = vmatpush1.msra.mxu0 0.0
  %2171 = vmatprep.subr.mxu0 0.0
  %2172 = vmatpush1.msra.mxu0 0.0
  %2173 = vmatprep.subr.mxu0 0.0
  %2174 = vmatpush1.msra.mxu0 0.0
  %2175 = vmatprep.subr.mxu0 0.0
  %2176 = vmatpush1.msra.mxu0 0.0
  %2177 = vmatprep.subr.mxu0 0.0
  %2178 = vmatpush1.msra.mxu0 0.0
  %2179 = vmatprep.subr.mxu0 0.0
  %2180 = vmatpush1.msra.mxu0 0.0
  %2181 = vmatprep.subr.mxu0 0.0
  %2182 = vmatpush1.msra.mxu0 0.0
  %2183 = vmatprep.subr.mxu0 0.0
  %2184 = vmatpush1.msra.mxu0 0.0
  %2185 = vmatprep.subr.mxu0 0.0
  %2186 = vmatpush1.msra.mxu0 0.0
  %2187 = vmatprep.subr.mxu0 0.0
  %2188 = vmatpush1.msra.mxu0 0.0
  %2189 = vmatprep.subr.mxu0 0.0
  %2190 = vmatpush1.msra.mxu0 0.0
  %2191 = vmatprep.subr.mxu0 0.0
  %2192 = vmatpush1.msra.mxu0 0.0
  %2193 = vmatprep.subr.mxu0 0.0
  %2194 = vmatpush1.msra.mxu0 0.0
  %2195 = vmatprep.subr.mxu0 0.0
  %2196 = vmatpush1.msra.mxu0 0.0
  %2197 = vmatprep.mubr.f32.mxu0 0.0
  %2198 = vmatmul.mubr.f32.gmra.mrb[0].mxu0 %v1745
  %v2199 = vpop.f32.mrb[0].mxu0
  %v2200 = vadd.f32 0.0, %v2199
  %v2201 = vpop.f32.mrb[0].mxu0
  %v2202 = vadd.f32 0.0, %v2201
  %2203 = vdwg.mxu0
  %v2204 = vadd.f32 %v2058, %v2129
  %v2205 = vadd.f32 %v2059, %v2131
  %v2206 = vadd.f32 %v2060, %v2200
  %v2207 = vadd.f32 %v2061, %v2202
  %v2208 = vxor.u32 %v2204, 2147483648
  %v2209 = vxor.u32 %v2205, 2147483648
  %v2210 = vxor.u32 %v2206, 2147483648
  %v2211 = vmul.f32 %v2208, 1.442695
  %v2212 = vpow.pop %v2211
  %v2213 = vmul.f32 %v2209, 1.442695
  %v2214 = vpow.pop %v2213
  %v2215 = vmul.f32 %v2210, 1.442695
  %v2216 = vpow.pop %v2215
  %v2217 = vadd.f32 %v2212, 1.0
  %v2218 = vadd.f32 %v2214, 1.0
  %v2219 = vadd.f32 %v2216, 1.0
  %v2220 = vrcp.pop %v2217
  %v2221 = vmul.f32 1.0, %v2220
  %v2222 = vrcp.pop %v2218
  %v2223 = vmul.f32 1.0, %v2222
  %v2224 = vrcp.pop %v2219
  %v2225 = vmul.f32 1.0, %v2224
  %v2226 = vtanh.pop %v2207
  %v2227 = vmul.f32 %v2223, %v1743
  %v2228 = vmul.f32 %v2221, %v2226
  %v2229 = vadd.f32 %v2227, %v2228
  %v2230 = vtanh.pop %v2229
  %v2231 = vmul.f32 %v2225, %v2230
  %2232 = vmatprep.subr.mxu0 %v711
  %2233 = vmatpush1.msra.mxu0 %v710
  %2234 = vmatprep.subr.mxu0 %v715
  %2235 = vmatpush1.msra.mxu0 %v714
  %2236 = vmatprep.subr.mxu0 %v719
  %2237 = vmatpush1.msra.mxu0 %v718
  %2238 = vmatprep.subr.mxu0 %v723
  %2239 = vmatpush1.msra.mxu0 %v722
  %2240 = vmatprep.subr.mxu0 %v727
  %2241 = vmatpush1.msra.mxu0 %v726
  %2242 = vmatprep.subr.mxu0 %v731
  %2243 = vmatpush1.msra.mxu0 %v730
  %2244 = vmatprep.subr.mxu0 %v735
  %2245 = vmatpush1.msra.mxu0 %v734
  %2246 = vmatprep.subr.mxu0 %v739
  %2247 = vmatpush1.msra.mxu0 %v738
  %2248 = vmatprep.subr.mxu0 %v743
  %2249 = vmatpush1.msra.mxu0 %v742
  %2250 = vmatprep.subr.mxu0 %v747
  %2251 = vmatpush1.msra.mxu0 %v746
  %2252 = vmatprep.subr.mxu0 %v751
  %2253 = vmatpush1.msra.mxu0 %v750
  %2254 = vmatprep.subr.mxu0 %v755
  %2255 = vmatpush1.msra.mxu0 %v754
  %2256 = vmatprep.subr.mxu0 %v759
  %2257 = vmatpush1.msra.mxu0 %v758
  %2258 = vmatprep.subr.mxu0 %v763
  %2259 = vmatpush1.msra.mxu0 %v762
  %2260 = vmatprep.subr.mxu0 %v767
  %2261 = vmatpush1.msra.mxu0 %v766
  %2262 = vmatprep.subr.mxu0 %v771
  %2263 = vmatpush1.msra.mxu0 %v770
  %2264 = vmatprep.subr.mxu0 0.0
  %2265 = vmatpush1.msra.mxu0 0.0
  %2266 = vmatprep.subr.mxu0 0.0
  %2267 = vmatpush1.msra.mxu0 0.0
  %2268 = vmatprep.subr.mxu0 0.0
  %2269 = vmatpush1.msra.mxu0 0.0
  %2270 = vmatprep.subr.mxu0 0.0
  %2271 = vmatpush1.msra.mxu0 0.0
  %2272 = vmatprep.subr.mxu0 0.0
  %2273 = vmatpush1.msra.mxu0 0.0
  %2274 = vmatprep.subr.mxu0 0.0
  %2275 = vmatpush1.msra.mxu0 0.0
  %2276 = vmatprep.subr.mxu0 0.0
  %2277 = vmatpush1.msra.mxu0 0.0
  %2278 = vmatprep.subr.mxu0 0.0
  %2279 = vmatpush1.msra.mxu0 0.0
  %2280 = vmatprep.subr.mxu0 0.0
  %2281 = vmatpush1.msra.mxu0 0.0
  %2282 = vmatprep.subr.mxu0 0.0
  %2283 = vmatpush1.msra.mxu0 0.0
  %2284 = vmatprep.subr.mxu0 0.0
  %2285 = vmatpush1.msra.mxu0 0.0
  %2286 = vmatprep.subr.mxu0 0.0
  %2287 = vmatpush1.msra.mxu0 0.0
  %2288 = vmatprep.subr.mxu0 0.0
  %2289 = vmatpush1.msra.mxu0 0.0
  %2290 = vmatprep.subr.mxu0 0.0
  %2291 = vmatpush1.msra.mxu0 0.0
  %2292 = vmatprep.subr.mxu0 0.0
  %2293 = vmatpush1.msra.mxu0 0.0
  %2294 = vmatprep.subr.mxu0 0.0
  %2295 = vmatpush1.msra.mxu0 0.0
  %2296 = vmatprep.mubr.f32.mxu0 0.0
  %2297 = vmatmul.mubr.f32.gmra.mrb[0].mxu0 %v2057
  %v2298 = vpop.f32.mrb[0].mxu0
  %v2299 = vadd.f32 0.0, %v2298
  %v2300 = vpop.f32.mrb[0].mxu0
  %v2301 = vadd.f32 0.0, %v2300
  %2302 = vdwg.mxu0
  %2303 = vmatprep.subr.mxu0 %v713
  %2304 = vmatpush1.msra.mxu0 %v712
  %2305 = vmatprep.subr.mxu0 %v717
  %2306 = vmatpush1.msra.mxu0 %v716
  %2307 = vmatprep.subr.mxu0 %v721
  %2308 = vmatpush1.msra.mxu0 %v720
  %2309 = vmatprep.subr.mxu0 %v725
  %2310 = vmatpush1.msra.mxu0 %v724
  %2311 = vmatprep.subr.mxu0 %v729
  %2312 = vmatpush1.msra.mxu0 %v728
  %2313 = vmatprep.subr.mxu0 %v733
  %2314 = vmatpush1.msra.mxu0 %v732
  %2315 = vmatprep.subr.mxu0 %v737
  %2316 = vmatpush1.msra.mxu0 %v736
  %2317 = vmatprep.subr.mxu0 %v741
  %2318 = vmatpush1.msra.mxu0 %v740
  %2319 = vmatprep.subr.mxu0 %v745
  %2320 = vmatpush1.msra.mxu0 %v744
  %2321 = vmatprep.subr.mxu0 %v749
  %2322 = vmatpush1.msra.mxu0 %v748
  %2323 = vmatprep.subr.mxu0 %v753
  %2324 = vmatpush1.msra.mxu0 %v752
  %2325 = vmatprep.subr.mxu0 %v757
  %2326 = vmatpush1.msra.mxu0 %v756
  %2327 = vmatprep.subr.mxu0 %v761
  %2328 = vmatpush1.msra.mxu0 %v760
  %2329 = vmatprep.subr.mxu0 %v765
  %2330 = vmatpush1.msra.mxu0 %v764
  %2331 = vmatprep.subr.mxu0 %v769
  %2332 = vmatpush1.msra.mxu0 %v768
  %2333 = vmatprep.subr.mxu0 %v773
  %2334 = vmatpush1.msra.mxu0 %v772
  %2335 = vmatprep.subr.mxu0 0.0
  %2336 = vmatpush1.msra.mxu0 0.0
  %2337 = vmatprep.subr.mxu0 0.0
  %2338 = vmatpush1.msra.mxu0 0.0
  %2339 = vmatprep.subr.mxu0 0.0
  %2340 = vmatpush1.msra.mxu0 0.0
  %2341 = vmatprep.subr.mxu0 0.0
  %2342 = vmatpush1.msra.mxu0 0.0
  %2343 = vmatprep.subr.mxu0 0.0
  %2344 = vmatpush1.msra.mxu0 0.0
  %2345 = vmatprep.subr.mxu0 0.0
  %2346 = vmatpush1.msra.mxu0 0.0
  %2347 = vmatprep.subr.mxu0 0.0
  %2348 = vmatpush1.msra.mxu0 0.0
  %2349 = vmatprep.subr.mxu0 0.0
  %2350 = vmatpush1.msra.mxu0 0.0
  %2351 = vmatprep.subr.mxu0 0.0
  %2352 = vmatpush1.msra.mxu0 0.0
  %2353 = vmatprep.subr.mxu0 0.0
  %2354 = vmatpush1.msra.mxu0 0.0
  %2355 = vmatprep.subr.mxu0 0.0
  %2356 = vmatpush1.msra.mxu0 0.0
  %2357 = vmatprep.subr.mxu0 0.0
  %2358 = vmatpush1.msra.mxu0 0.0
  %2359 = vmatprep.subr.mxu0 0.0
  %2360 = vmatpush1.msra.mxu0 0.0
  %2361 = vmatprep.subr.mxu0 0.0
  %2362 = vmatpush1.msra.mxu0 0.0
  %2363 = vmatprep.subr.mxu0 0.0
  %2364 = vmatpush1.msra.mxu0 0.0
  %2365 = vmatprep.subr.mxu0 0.0
  %2366 = vmatpush1.msra.mxu0 0.0
  %2367 = vmatprep.mubr.f32.mxu0 0.0
  %2368 = vmatmul.mubr.f32.gmra.mrb[0].mxu0 %v2057
  %v2369 = vpop.f32.mrb[0].mxu0
  %v2370 = vadd.f32 0.0, %v2369
  %v2371 = vpop.f32.mrb[0].mxu0
  %v2372 = vadd.f32 0.0, %v2371
  %2373 = vdwg.mxu0
  %2374 = vmatprep.subr.mxu0 %v646
  %2375 = vmatpush1.msra.mxu0 %v645
  %2376 = vmatprep.subr.mxu0 %v650
  %2377 = vmatpush1.msra.mxu0 %v649
  %2378 = vmatprep.subr.mxu0 %v654
  %2379 = vmatpush1.msra.mxu0 %v653
  %2380 = vmatprep.subr.mxu0 %v658
  %2381 = vmatpush1.msra.mxu0 %v657
  %2382 = vmatprep.subr.mxu0 %v662
  %2383 = vmatpush1.msra.mxu0 %v661
  %2384 = vmatprep.subr.mxu0 %v666
  %2385 = vmatpush1.msra.mxu0 %v665
  %2386 = vmatprep.subr.mxu0 %v670
  %2387 = vmatpush1.msra.mxu0 %v669
  %2388 = vmatprep.subr.mxu0 %v674
  %2389 = vmatpush1.msra.mxu0 %v673
  %2390 = vmatprep.subr.mxu0 %v678
  %2391 = vmatpush1.msra.mxu0 %v677
  %2392 = vmatprep.subr.mxu0 %v682
  %2393 = vmatpush1.msra.mxu0 %v681
  %2394 = vmatprep.subr.mxu0 %v686
  %2395 = vmatpush1.msra.mxu0 %v685
  %2396 = vmatprep.subr.mxu0 %v690
  %2397 = vmatpush1.msra.mxu0 %v689
  %2398 = vmatprep.subr.mxu0 %v694
  %2399 = vmatpush1.msra.mxu0 %v693
  %2400 = vmatprep.subr.mxu0 %v698
  %2401 = vmatpush1.msra.mxu0 %v697
  %2402 = vmatprep.subr.mxu0 %v702
  %2403 = vmatpush1.msra.mxu0 %v701
  %2404 = vmatprep.subr.mxu0 %v706
  %2405 = vmatpush1.msra.mxu0 %v705
  %2406 = vmatprep.subr.mxu0 0.0
  %2407 = vmatpush1.msra.mxu0 0.0
  %2408 = vmatprep.subr.mxu0 0.0
  %2409 = vmatpush1.msra.mxu0 0.0
  %2410 = vmatprep.subr.mxu0 0.0
  %2411 = vmatpush1.msra.mxu0 0.0
  %2412 = vmatprep.subr.mxu0 0.0
  %2413 = vmatpush1.msra.mxu0 0.0
  %2414 = vmatprep.subr.mxu0 0.0
  %2415 = vmatpush1.msra.mxu0 0.0
  %2416 = vmatprep.subr.mxu0 0.0
  %2417 = vmatpush1.msra.mxu0 0.0
  %2418 = vmatprep.subr.mxu0 0.0
  %2419 = vmatpush1.msra.mxu0 0.0
  %2420 = vmatprep.subr.mxu0 0.0
  %2421 = vmatpush1.msra.mxu0 0.0
  %2422 = vmatprep.subr.mxu0 0.0
  %2423 = vmatpush1.msra.mxu0 0.0
  %2424 = vmatprep.subr.mxu0 0.0
  %2425 = vmatpush1.msra.mxu0 0.0
  %2426 = vmatprep.subr.mxu0 0.0
  %2427 = vmatpush1.msra.mxu0 0.0
  %2428 = vmatprep.subr.mxu0 0.0
  %2429 = vmatpush1.msra.mxu0 0.0
  %2430 = vmatprep.subr.mxu0 0.0
  %2431 = vmatpush1.msra.mxu0 0.0
  %2432 = vmatprep.subr.mxu0 0.0
  %2433 = vmatpush1.msra.mxu0 0.0
  %2434 = vmatprep.subr.mxu0 0.0
  %2435 = vmatpush1.msra.mxu0 0.0
  %2436 = vmatprep.subr.mxu0 0.0
  %2437 = vmatpush1.msra.mxu0 0.0
  %2438 = vmatprep.mubr.f32.mxu0 0.0
  %2439 = vmatmul.mubr.f32.gmra.mrb[0].mxu0 %v2231
  %v2440 = vpop.f32.mrb[0].mxu0
  %v2441 = vadd.f32 %v2299, %v2440
  %v2442 = vpop.f32.mrb[0].mxu0
  %v2443 = vadd.f32 %v2301, %v2442
  %2444 = vdwg.mxu0
  %2445 = vmatprep.subr.mxu0 %v648
  %2446 = vmatpush1.msra.mxu0 %v647
  %2447 = vmatprep.subr.mxu0 %v652
  %2448 = vmatpush1.msra.mxu0 %v651
  %2449 = vmatprep.subr.mxu0 %v656
  %2450 = vmatpush1.msra.mxu0 %v655
  %2451 = vmatprep.subr.mxu0 %v660
  %2452 = vmatpush1.msra.mxu0 %v659
  %2453 = vmatprep.subr.mxu0 %v664
  %2454 = vmatpush1.msra.mxu0 %v663
  %2455 = vmatprep.subr.mxu0 %v668
  %2456 = vmatpush1.msra.mxu0 %v667
  %2457 = vmatprep.subr.mxu0 %v672
  %2458 = vmatpush1.msra.mxu0 %v671
  %2459 = vmatprep.subr.mxu0 %v676
  %2460 = vmatpush1.msra.mxu0 %v675
  %2461 = vmatprep.subr.mxu0 %v680
  %2462 = vmatpush1.msra.mxu0 %v679
  %2463 = vmatprep.subr.mxu0 %v684
  %2464 = vmatpush1.msra.mxu0 %v683
  %2465 = vmatprep.subr.mxu0 %v688
  %2466 = vmatpush1.msra.mxu0 %v687
  %2467 = vmatprep.subr.mxu0 %v692
  %2468 = vmatpush1.msra.mxu0 %v691
  %2469 = vmatprep.subr.mxu0 %v696
  %2470 = vmatpush1.msra.mxu0 %v695
  %2471 = vmatprep.subr.mxu0 %v700
  %2472 = vmatpush1.msra.mxu0 %v699
  %2473 = vmatprep.subr.mxu0 %v704
  %2474 = vmatpush1.msra.mxu0 %v703
  %2475 = vmatprep.subr.mxu0 %v708
  %2476 = vmatpush1.msra.mxu0 %v707
  %2477 = vmatprep.subr.mxu0 0.0
  %2478 = vmatpush1.msra.mxu0 0.0
  %2479 = vmatprep.subr.mxu0 0.0
  %2480 = vmatpush1.msra.mxu0 0.0
  %2481 = vmatprep.subr.mxu0 0.0
  %2482 = vmatpush1.msra.mxu0 0.0
  %2483 = vmatprep.subr.mxu0 0.0
  %2484 = vmatpush1.msra.mxu0 0.0
  %2485 = vmatprep.subr.mxu0 0.0
  %2486 = vmatpush1.msra.mxu0 0.0
  %2487 = vmatprep.subr.mxu0 0.0
  %2488 = vmatpush1.msra.mxu0 0.0
  %2489 = vmatprep.subr.mxu0 0.0
  %2490 = vmatpush1.msra.mxu0 0.0
  %2491 = vmatprep.subr.mxu0 0.0
  %2492 = vmatpush1.msra.mxu0 0.0
  %2493 = vmatprep.subr.mxu0 0.0
  %2494 = vmatpush1.msra.mxu0 0.0
  %2495 = vmatprep.subr.mxu0 0.0
  %2496 = vmatpush1.msra.mxu0 0.0
  %2497 = vmatprep.subr.mxu0 0.0
  %2498 = vmatpush1.msra.mxu0 0.0
  %2499 = vmatprep.subr.mxu0 0.0
  %2500 = vmatpush1.msra.mxu0 0.0
  %2501 = vmatprep.subr.mxu0 0.0
  %2502 = vmatpush1.msra.mxu0 0.0
  %2503 = vmatprep.subr.mxu0 0.0
  %2504 = vmatpush1.msra.mxu0 0.0
  %2505 = vmatprep.subr.mxu0 0.0
  %2506 = vmatpush1.msra.mxu0 0.0
  %2507 = vmatprep.subr.mxu0 0.0
  %2508 = vmatpush1.msra.mxu0 0.0
  %2509 = vmatprep.mubr.f32.mxu0 0.0
  %2510 = vmatmul.mubr.f32.gmra.mrb[0].mxu0 %v2231
  %v2511 = vpop.f32.mrb[0].mxu0
  %v2512 = vadd.f32 %v2370, %v2511
  %v2513 = vpop.f32.mrb[0].mxu0
  %v2514 = vadd.f32 %v2372, %v2513
  %2515 = vdwg.mxu0
  %v2516 = vadd.f32 %v2441, %v390
  %v2517 = vadd.f32 %v2443, %v394
  %v2518 = vadd.f32 %v2512, %v398
  %v2519 = vadd.f32 %v2514, %v402
  %v2520 = vxor.u32 %v2516, 2147483648
  %v2521 = vxor.u32 %v2517, 2147483648
  %v2522 = vxor.u32 %v2518, 2147483648
  %v2523 = vmul.f32 %v2520, 1.442695
  %v2524 = vpow.pop %v2523
  %v2525 = vmul.f32 %v2521, 1.442695
  %v2526 = vpow.pop %v2525
  %v2527 = vmul.f32 %v2522, 1.442695
  %v2528 = vpow.pop %v2527
  %v2529 = vadd.f32 %v2524, 1.0
  %v2530 = vadd.f32 %v2526, 1.0
  %v2531 = vadd.f32 %v2528, 1.0
  %v2532 = vrcp.pop %v2529
  %v2533 = vmul.f32 1.0, %v2532
  %v2534 = vrcp.pop %v2530
  %v2535 = vmul.f32 1.0, %v2534
  %v2536 = vrcp.pop %v2531
  %v2537 = vmul.f32 1.0, %v2536
  %v2538 = vtanh.pop %v2519
  %v2539 = vmul.f32 %v2535, %v2055
  %v2540 = vmul.f32 %v2533, %v2538
  %v2541 = vadd.f32 %v2539, %v2540
  %v2542 = vtanh.pop %v2541
  %v2543 = vmul.f32 %v2537, %v2542
  %v2544 = vld [vmem:[#allocation2 + $0x80] sm:$0xff]
  %v2545 = vld [vmem:[#allocation2 + $0x88] sm:$0xff]
  %v2546 = vld [vmem:[#allocation2 + $0x90] sm:$0xff]
  %v2547 = vld [vmem:[#allocation2 + $0x98] sm:$0xff]
  %2548 = vmatprep.subr.mxu0 %v412
  %2549 = vmatpush1.msra.mxu0 %v411
  %2550 = vmatprep.subr.mxu0 %v416
  %2551 = vmatpush1.msra.mxu0 %v415
  %2552 = vmatprep.subr.mxu0 %v420
  %2553 = vmatpush1.msra.mxu0 %v419
  %2554 = vmatprep.subr.mxu0 %v424
  %2555 = vmatpush1.msra.mxu0 %v423
  %2556 = vmatprep.subr.mxu0 %v428
  %2557 = vmatpush1.msra.mxu0 %v427
  %2558 = vmatprep.subr.mxu0 %v432
  %2559 = vmatpush1.msra.mxu0 %v431
  %2560 = vmatprep.subr.mxu0 %v436
  %2561 = vmatpush1.msra.mxu0 %v435
  %2562 = vmatprep.subr.mxu0 %v440
  %2563 = vmatpush1.msra.mxu0 %v439
  %2564 = vmatprep.subr.mxu0 %v444
  %2565 = vmatpush1.msra.mxu0 %v443
  %2566 = vmatprep.subr.mxu0 %v448
  %2567 = vmatpush1.msra.mxu0 %v447
  %2568 = vmatprep.subr.mxu0 %v452
  %2569 = vmatpush1.msra.mxu0 %v451
  %2570 = vmatprep.subr.mxu0 %v456
  %2571 = vmatpush1.msra.mxu0 %v455
  %2572 = vmatprep.subr.mxu0 %v460
  %2573 = vmatpush1.msra.mxu0 %v459
  %2574 = vmatprep.subr.mxu0 %v464
  %2575 = vmatpush1.msra.mxu0 %v463
  %2576 = vmatprep.subr.mxu0 %v468
  %2577 = vmatpush1.msra.mxu0 %v467
  %2578 = vmatprep.subr.mxu0 %v472
  %2579 = vmatpush1.msra.mxu0 %v471
  %2580 = vmatprep.subr.mxu0 0.0
  %2581 = vmatpush1.msra.mxu0 0.0
  %2582 = vmatprep.subr.mxu0 0.0
  %2583 = vmatpush1.msra.mxu0 0.0
  %2584 = vmatprep.subr.mxu0 0.0
  %2585 = vmatpush1.msra.mxu0 0.0
  %2586 = vmatprep.subr.mxu0 0.0
  %2587 = vmatpush1.msra.mxu0 0.0
  %2588 = vmatprep.subr.mxu0 0.0
  %2589 = vmatpush1.msra.mxu0 0.0
  %2590 = vmatprep.subr.mxu0 0.0
  %2591 = vmatpush1.msra.mxu0 0.0
  %2592 = vmatprep.subr.mxu0 0.0
  %2593 = vmatpush1.msra.mxu0 0.0
  %2594 = vmatprep.subr.mxu0 0.0
  %2595 = vmatpush1.msra.mxu0 0.0
  %2596 = vmatprep.subr.mxu0 0.0
  %2597 = vmatpush1.msra.mxu0 0.0
  %2598 = vmatprep.subr.mxu0 0.0
  %2599 = vmatpush1.msra.mxu0 0.0
  %2600 = vmatprep.subr.mxu0 0.0
  %2601 = vmatpush1.msra.mxu0 0.0
  %2602 = vmatprep.subr.mxu0 0.0
  %2603 = vmatpush1.msra.mxu0 0.0
  %2604 = vmatprep.subr.mxu0 0.0
  %2605 = vmatpush1.msra.mxu0 0.0
  %2606 = vmatprep.subr.mxu0 0.0
  %2607 = vmatpush1.msra.mxu0 0.0
  %2608 = vmatprep.subr.mxu0 0.0
  %2609 = vmatpush1.msra.mxu0 0.0
  %2610 = vmatprep.subr.mxu0 0.0
  %2611 = vmatpush1.msra.mxu0 0.0
  %2612 = vmatprep.mubr.f32.mxu0 0.0
  %2613 = vmatmul.mubr.f32.gmra.mrb[0].mxu0 %v2231
  %v2614 = vpop.f32.mrb[0].mxu0
  %v2615 = vadd.f32 0.0, %v2614
  %v2616 = vpop.f32.mrb[0].mxu0
  %v2617 = vadd.f32 0.0, %v2616
  %2618 = vdwg.mxu0
  %2619 = vmatprep.subr.mxu0 %v414
  %2620 = vmatpush1.msra.mxu0 %v413
  %2621 = vmatprep.subr.mxu0 %v418
  %2622 = vmatpush1.msra.mxu0 %v417
  %2623 = vmatprep.subr.mxu0 %v422
  %2624 = vmatpush1.msra.mxu0 %v421
  %2625 = vmatprep.subr.mxu0 %v426
  %2626 = vmatpush1.msra.mxu0 %v425
  %2627 = vmatprep.subr.mxu0 %v430
  %2628 = vmatpush1.msra.mxu0 %v429
  %2629 = vmatprep.subr.mxu0 %v434
  %2630 = vmatpush1.msra.mxu0 %v433
  %2631 = vmatprep.subr.mxu0 %v438
  %2632 = vmatpush1.msra.mxu0 %v437
  %2633 = vmatprep.subr.mxu0 %v442
  %2634 = vmatpush1.msra.mxu0 %v441
  %2635 = vmatprep.subr.mxu0 %v446
  %2636 = vmatpush1.msra.mxu0 %v445
  %2637 = vmatprep.subr.mxu0 %v450
  %2638 = vmatpush1.msra.mxu0 %v449
  %2639 = vmatprep.subr.mxu0 %v454
  %2640 = vmatpush1.msra.mxu0 %v453
  %2641 = vmatprep.subr.mxu0 %v458
  %2642 = vmatpush1.msra.mxu0 %v457
  %2643 = vmatprep.subr.mxu0 %v462
  %2644 = vmatpush1.msra.mxu0 %v461
  %2645 = vmatprep.subr.mxu0 %v466
  %2646 = vmatpush1.msra.mxu0 %v465
  %2647 = vmatprep.subr.mxu0 %v470
  %2648 = vmatpush1.msra.mxu0 %v469
  %2649 = vmatprep.subr.mxu0 %v474
  %2650 = vmatpush1.msra.mxu0 %v473
  %2651 = vmatprep.subr.mxu0 0.0
  %2652 = vmatpush1.msra.mxu0 0.0
  %2653 = vmatprep.subr.mxu0 0.0
  %2654 = vmatpush1.msra.mxu0 0.0
  %2655 = vmatprep.subr.mxu0 0.0
  %2656 = vmatpush1.msra.mxu0 0.0
  %2657 = vmatprep.subr.mxu0 0.0
  %2658 = vmatpush1.msra.mxu0 0.0
  %2659 = vmatprep.subr.mxu0 0.0
  %2660 = vmatpush1.msra.mxu0 0.0
  %2661 = vmatprep.subr.mxu0 0.0
  %2662 = vmatpush1.msra.mxu0 0.0
  %2663 = vmatprep.subr.mxu0 0.0
  %2664 = vmatpush1.msra.mxu0 0.0
  %2665 = vmatprep.subr.mxu0 0.0
  %2666 = vmatpush1.msra.mxu0 0.0
  %2667 = vmatprep.subr.mxu0 0.0
  %2668 = vmatpush1.msra.mxu0 0.0
  %2669 = vmatprep.subr.mxu0 0.0
  %2670 = vmatpush1.msra.mxu0 0.0
  %2671 = vmatprep.subr.mxu0 0.0
  %2672 = vmatpush1.msra.mxu0 0.0
  %2673 = vmatprep.subr.mxu0 0.0
  %2674 = vmatpush1.msra.mxu0 0.0
  %2675 = vmatprep.subr.mxu0 0.0
  %2676 = vmatpush1.msra.mxu0 0.0
  %2677 = vmatprep.subr.mxu0 0.0
  %2678 = vmatpush1.msra.mxu0 0.0
  %2679 = vmatprep.subr.mxu0 0.0
  %2680 = vmatpush1.msra.mxu0 0.0
  %2681 = vmatprep.subr.mxu0 0.0
  %2682 = vmatpush1.msra.mxu0 0.0
  %2683 = vmatprep.mubr.f32.mxu0 0.0
  %2684 = vmatmul.mubr.f32.gmra.mrb[0].mxu0 %v2231
  %v2685 = vpop.f32.mrb[0].mxu0
  %v2686 = vadd.f32 0.0, %v2685
  %v2687 = vpop.f32.mrb[0].mxu0
  %v2688 = vadd.f32 0.0, %v2687
  %2689 = vdwg.mxu0
  %v2690 = vadd.f32 %v2544, %v2615
  %v2691 = vadd.f32 %v2545, %v2617
  %v2692 = vadd.f32 %v2546, %v2686
  %v2693 = vadd.f32 %v2547, %v2688
  %v2694 = vxor.u32 %v2690, 2147483648
  %v2695 = vxor.u32 %v2691, 2147483648
  %v2696 = vxor.u32 %v2692, 2147483648
  %v2697 = vmul.f32 %v2694, 1.442695
  %v2698 = vpow.pop %v2697
  %v2699 = vmul.f32 %v2695, 1.442695
  %v2700 = vpow.pop %v2699
  %v2701 = vmul.f32 %v2696, 1.442695
  %v2702 = vpow.pop %v2701
  %v2703 = vadd.f32 %v2698, 1.0
  %v2704 = vadd.f32 %v2700, 1.0
  %v2705 = vadd.f32 %v2702, 1.0
  %v2706 = vrcp.pop %v2703
  %v2707 = vmul.f32 1.0, %v2706
  %v2708 = vrcp.pop %v2704
  %v2709 = vmul.f32 1.0, %v2708
  %v2710 = vrcp.pop %v2705
  %v2711 = vmul.f32 1.0, %v2710
  %v2712 = vtanh.pop %v2693
  %v2713 = vmul.f32 %v2709, %v2229
  %v2714 = vmul.f32 %v2707, %v2712
  %v2715 = vadd.f32 %v2713, %v2714
  %v2716 = vtanh.pop %v2715
  %v2717 = vmul.f32 %v2711, %v2716
  %2718 = vmatprep.subr.mxu0 %v711
  %2719 = vmatpush1.msra.mxu0 %v710
  %2720 = vmatprep.subr.mxu0 %v715
  %2721 = vmatpush1.msra.mxu0 %v714
  %2722 = vmatprep.subr.mxu0 %v719
  %2723 = vmatpush1.msra.mxu0 %v718
  %2724 = vmatprep.subr.mxu0 %v723
  %2725 = vmatpush1.msra.mxu0 %v722
  %2726 = vmatprep.subr.mxu0 %v727
  %2727 = vmatpush1.msra.mxu0 %v726
  %2728 = vmatprep.subr.mxu0 %v731
  %2729 = vmatpush1.msra.mxu0 %v730
  %2730 = vmatprep.subr.mxu0 %v735
  %2731 = vmatpush1.msra.mxu0 %v734
  %2732 = vmatprep.subr.mxu0 %v739
  %2733 = vmatpush1.msra.mxu0 %v738
  %2734 = vmatprep.subr.mxu0 %v743
  %2735 = vmatpush1.msra.mxu0 %v742
  %2736 = vmatprep.subr.mxu0 %v747
  %2737 = vmatpush1.msra.mxu0 %v746
  %2738 = vmatprep.subr.mxu0 %v751
  %2739 = vmatpush1.msra.mxu0 %v750
  %2740 = vmatprep.subr.mxu0 %v755
  %2741 = vmatpush1.msra.mxu0 %v754
  %2742 = vmatprep.subr.mxu0 %v759
  %2743 = vmatpush1.msra.mxu0 %v758
  %2744 = vmatprep.subr.mxu0 %v763
  %2745 = vmatpush1.msra.mxu0 %v762
  %2746 = vmatprep.subr.mxu0 %v767
  %2747 = vmatpush1.msra.mxu0 %v766
  %2748 = vmatprep.subr.mxu0 %v771
  %2749 = vmatpush1.msra.mxu0 %v770
  %2750 = vmatprep.subr.mxu0 0.0
  %2751 = vmatpush1.msra.mxu0 0.0
  %2752 = vmatprep.subr.mxu0 0.0
  %2753 = vmatpush1.msra.mxu0 0.0
  %2754 = vmatprep.subr.mxu0 0.0
  %2755 = vmatpush1.msra.mxu0 0.0
  %2756 = vmatprep.subr.mxu0 0.0
  %2757 = vmatpush1.msra.mxu0 0.0
  %2758 = vmatprep.subr.mxu0 0.0
  %2759 = vmatpush1.msra.mxu0 0.0
  %2760 = vmatprep.subr.mxu0 0.0
  %2761 = vmatpush1.msra.mxu0 0.0
  %2762 = vmatprep.subr.mxu0 0.0
  %2763 = vmatpush1.msra.mxu0 0.0
  %2764 = vmatprep.subr.mxu0 0.0
  %2765 = vmatpush1.msra.mxu0 0.0
  %2766 = vmatprep.subr.mxu0 0.0
  %2767 = vmatpush1.msra.mxu0 0.0
  %2768 = vmatprep.subr.mxu0 0.0
  %2769 = vmatpush1.msra.mxu0 0.0
  %2770 = vmatprep.subr.mxu0 0.0
  %2771 = vmatpush1.msra.mxu0 0.0
  %2772 = vmatprep.subr.mxu0 0.0
  %2773 = vmatpush1.msra.mxu0 0.0
  %2774 = vmatprep.subr.mxu0 0.0
  %2775 = vmatpush1.msra.mxu0 0.0
  %2776 = vmatprep.subr.mxu0 0.0
  %2777 = vmatpush1.msra.mxu0 0.0
  %2778 = vmatprep.subr.mxu0 0.0
  %2779 = vmatpush1.msra.mxu0 0.0
  %2780 = vmatprep.subr.mxu0 0.0
  %2781 = vmatpush1.msra.mxu0 0.0
  %2782 = vmatprep.mubr.f32.mxu0 0.0
  %2783 = vmatmul.mubr.f32.gmra.mrb[0].mxu0 %v2543
  %v2784 = vpop.f32.mrb[0].mxu0
  %v2785 = vadd.f32 0.0, %v2784
  %v2786 = vpop.f32.mrb[0].mxu0
  %v2787 = vadd.f32 0.0, %v2786
  %2788 = vdwg.mxu0
  %2789 = vmatprep.subr.mxu0 %v713
  %2790 = vmatpush1.msra.mxu0 %v712
  %2791 = vmatprep.subr.mxu0 %v717
  %2792 = vmatpush1.msra.mxu0 %v716
  %2793 = vmatprep.subr.mxu0 %v721
  %2794 = vmatpush1.msra.mxu0 %v720
  %2795 = vmatprep.subr.mxu0 %v725
  %2796 = vmatpush1.msra.mxu0 %v724
  %2797 = vmatprep.subr.mxu0 %v729
  %2798 = vmatpush1.msra.mxu0 %v728
  %2799 = vmatprep.subr.mxu0 %v733
  %2800 = vmatpush1.msra.mxu0 %v732
  %2801 = vmatprep.subr.mxu0 %v737
  %2802 = vmatpush1.msra.mxu0 %v736
  %2803 = vmatprep.subr.mxu0 %v741
  %2804 = vmatpush1.msra.mxu0 %v740
  %2805 = vmatprep.subr.mxu0 %v745
  %2806 = vmatpush1.msra.mxu0 %v744
  %2807 = vmatprep.subr.mxu0 %v749
  %2808 = vmatpush1.msra.mxu0 %v748
  %2809 = vmatprep.subr.mxu0 %v753
  %2810 = vmatpush1.msra.mxu0 %v752
  %2811 = vmatprep.subr.mxu0 %v757
  %2812 = vmatpush1.msra.mxu0 %v756
  %2813 = vmatprep.subr.mxu0 %v761
  %2814 = vmatpush1.msra.mxu0 %v760
  %2815 = vmatprep.subr.mxu0 %v765
  %2816 = vmatpush1.msra.mxu0 %v764
  %2817 = vmatprep.subr.mxu0 %v769
  %2818 = vmatpush1.msra.mxu0 %v768
  %2819 = vmatprep.subr.mxu0 %v773
  %2820 = vmatpush1.msra.mxu0 %v772
  %2821 = vmatprep.subr.mxu0 0.0
  %2822 = vmatpush1.msra.mxu0 0.0
  %2823 = vmatprep.subr.mxu0 0.0
  %2824 = vmatpush1.msra.mxu0 0.0
  %2825 = vmatprep.subr.mxu0 0.0
  %2826 = vmatpush1.msra.mxu0 0.0
  %2827 = vmatprep.subr.mxu0 0.0
  %2828 = vmatpush1.msra.mxu0 0.0
  %2829 = vmatprep.subr.mxu0 0.0
  %2830 = vmatpush1.msra.mxu0 0.0
  %2831 = vmatprep.subr.mxu0 0.0
  %2832 = vmatpush1.msra.mxu0 0.0
  %2833 = vmatprep.subr.mxu0 0.0
  %2834 = vmatpush1.msra.mxu0 0.0
  %2835 = vmatprep.subr.mxu0 0.0
  %2836 = vmatpush1.msra.mxu0 0.0
  %2837 = vmatprep.subr.mxu0 0.0
  %2838 = vmatpush1.msra.mxu0 0.0
  %2839 = vmatprep.subr.mxu0 0.0
  %2840 = vmatpush1.msra.mxu0 0.0
  %2841 = vmatprep.subr.mxu0 0.0
  %2842 = vmatpush1.msra.mxu0 0.0
  %2843 = vmatprep.subr.mxu0 0.0
  %2844 = vmatpush1.msra.mxu0 0.0
  %2845 = vmatprep.subr.mxu0 0.0
  %2846 = vmatpush1.msra.mxu0 0.0
  %2847 = vmatprep.subr.mxu0 0.0
  %2848 = vmatpush1.msra.mxu0 0.0
  %2849 = vmatprep.subr.mxu0 0.0
  %2850 = vmatpush1.msra.mxu0 0.0
  %2851 = vmatprep.subr.mxu0 0.0
  %2852 = vmatpush1.msra.mxu0 0.0
  %2853 = vmatprep.mubr.f32.mxu0 0.0
  %2854 = vmatmul.mubr.f32.gmra.mrb[0].mxu0 %v2543
  %v2855 = vpop.f32.mrb[0].mxu0
  %v2856 = vadd.f32 0.0, %v2855
  %v2857 = vpop.f32.mrb[0].mxu0
  %v2858 = vadd.f32 0.0, %v2857
  %2859 = vdwg.mxu0
  %2860 = vmatprep.subr.mxu0 %v646
  %2861 = vmatpush1.msra.mxu0 %v645
  %2862 = vmatprep.subr.mxu0 %v650
  %2863 = vmatpush1.msra.mxu0 %v649
  %2864 = vmatprep.subr.mxu0 %v654
  %2865 = vmatpush1.msra.mxu0 %v653
  %2866 = vmatprep.subr.mxu0 %v658
  %2867 = vmatpush1.msra.mxu0 %v657
  %2868 = vmatprep.subr.mxu0 %v662
  %2869 = vmatpush1.msra.mxu0 %v661
  %2870 = vmatprep.subr.mxu0 %v666
  %2871 = vmatpush1.msra.mxu0 %v665
  %2872 = vmatprep.subr.mxu0 %v670
  %2873 = vmatpush1.msra.mxu0 %v669
  %2874 = vmatprep.subr.mxu0 %v674
  %2875 = vmatpush1.msra.mxu0 %v673
  %2876 = vmatprep.subr.mxu0 %v678
  %2877 = vmatpush1.msra.mxu0 %v677
  %2878 = vmatprep.subr.mxu0 %v682
  %2879 = vmatpush1.msra.mxu0 %v681
  %2880 = vmatprep.subr.mxu0 %v686
  %2881 = vmatpush1.msra.mxu0 %v685
  %2882 = vmatprep.subr.mxu0 %v690
  %2883 = vmatpush1.msra.mxu0 %v689
  %2884 = vmatprep.subr.mxu0 %v694
  %2885 = vmatpush1.msra.mxu0 %v693
  %2886 = vmatprep.subr.mxu0 %v698
  %2887 = vmatpush1.msra.mxu0 %v697
  %2888 = vmatprep.subr.mxu0 %v702
  %2889 = vmatpush1.msra.mxu0 %v701
  %2890 = vmatprep.subr.mxu0 %v706
  %2891 = vmatpush1.msra.mxu0 %v705
  %2892 = vmatprep.subr.mxu0 0.0
  %2893 = vmatpush1.msra.mxu0 0.0
  %2894 = vmatprep.subr.mxu0 0.0
  %2895 = vmatpush1.msra.mxu0 0.0
  %2896 = vmatprep.subr.mxu0 0.0
  %2897 = vmatpush1.msra.mxu0 0.0
  %2898 = vmatprep.subr.mxu0 0.0
  %2899 = vmatpush1.msra.mxu0 0.0
  %2900 = vmatprep.subr.mxu0 0.0
  %2901 = vmatpush1.msra.mxu0 0.0
  %2902 = vmatprep.subr.mxu0 0.0
  %2903 = vmatpush1.msra.mxu0 0.0
  %2904 = vmatprep.subr.mxu0 0.0
  %2905 = vmatpush1.msra.mxu0 0.0
  %2906 = vmatprep.subr.mxu0 0.0
  %2907 = vmatpush1.msra.mxu0 0.0
  %2908 = vmatprep.subr.mxu0 0.0
  %2909 = vmatpush1.msra.mxu0 0.0
  %2910 = vmatprep.subr.mxu0 0.0
  %2911 = vmatpush1.msra.mxu0 0.0
  %2912 = vmatprep.subr.mxu0 0.0
  %2913 = vmatpush1.msra.mxu0 0.0
  %2914 = vmatprep.subr.mxu0 0.0
  %2915 = vmatpush1.msra.mxu0 0.0
  %2916 = vmatprep.subr.mxu0 0.0
  %2917 = vmatpush1.msra.mxu0 0.0
  %2918 = vmatprep.subr.mxu0 0.0
  %2919 = vmatpush1.msra.mxu0 0.0
  %2920 = vmatprep.subr.mxu0 0.0
  %2921 = vmatpush1.msra.mxu0 0.0
  %2922 = vmatprep.subr.mxu0 0.0
  %2923 = vmatpush1.msra.mxu0 0.0
  %2924 = vmatprep.mubr.f32.mxu0 0.0
  %2925 = vmatmul.mubr.f32.gmra.mrb[0].mxu0 %v2717
  %v2926 = vpop.f32.mrb[0].mxu0
  %v2927 = vadd.f32 %v2785, %v2926
  %v2928 = vpop.f32.mrb[0].mxu0
  %v2929 = vadd.f32 %v2787, %v2928
  %2930 = vdwg.mxu0
  %2931 = vmatprep.subr.mxu0 %v648
  %2932 = vmatpush1.msra.mxu0 %v647
  %2933 = vmatprep.subr.mxu0 %v652
  %2934 = vmatpush1.msra.mxu0 %v651
  %2935 = vmatprep.subr.mxu0 %v656
  %2936 = vmatpush1.msra.mxu0 %v655
  %2937 = vmatprep.subr.mxu0 %v660
  %2938 = vmatpush1.msra.mxu0 %v659
  %2939 = vmatprep.subr.mxu0 %v664
  %2940 = vmatpush1.msra.mxu0 %v663
  %2941 = vmatprep.subr.mxu0 %v668
  %2942 = vmatpush1.msra.mxu0 %v667
  %2943 = vmatprep.subr.mxu0 %v672
  %2944 = vmatpush1.msra.mxu0 %v671
  %2945 = vmatprep.subr.mxu0 %v676
  %2946 = vmatpush1.msra.mxu0 %v675
  %2947 = vmatprep.subr.mxu0 %v680
  %2948 = vmatpush1.msra.mxu0 %v679
  %2949 = vmatprep.subr.mxu0 %v684
  %2950 = vmatpush1.msra.mxu0 %v683
  %2951 = vmatprep.subr.mxu0 %v688
  %2952 = vmatpush1.msra.mxu0 %v687
  %2953 = vmatprep.subr.mxu0 %v692
  %2954 = vmatpush1.msra.mxu0 %v691
  %2955 = vmatprep.subr.mxu0 %v696
  %2956 = vmatpush1.msra.mxu0 %v695
  %2957 = vmatprep.subr.mxu0 %v700
  %2958 = vmatpush1.msra.mxu0 %v699
  %2959 = vmatprep.subr.mxu0 %v704
  %2960 = vmatpush1.msra.mxu0 %v703
  %2961 = vmatprep.subr.mxu0 %v708
  %2962 = vmatpush1.msra.mxu0 %v707
  %2963 = vmatprep.subr.mxu0 0.0
  %2964 = vmatpush1.msra.mxu0 0.0
  %2965 = vmatprep.subr.mxu0 0.0
  %2966 = vmatpush1.msra.mxu0 0.0
  %2967 = vmatprep.subr.mxu0 0.0
  %2968 = vmatpush1.msra.mxu0 0.0
  %2969 = vmatprep.subr.mxu0 0.0
  %2970 = vmatpush1.msra.mxu0 0.0
  %2971 = vmatprep.subr.mxu0 0.0
  %2972 = vmatpush1.msra.mxu0 0.0
  %2973 = vmatprep.subr.mxu0 0.0
  %2974 = vmatpush1.msra.mxu0 0.0
  %2975 = vmatprep.subr.mxu0 0.0
  %2976 = vmatpush1.msra.mxu0 0.0
  %2977 = vmatprep.subr.mxu0 0.0
  %2978 = vmatpush1.msra.mxu0 0.0
  %2979 = vmatprep.subr.mxu0 0.0
  %2980 = vmatpush1.msra.mxu0 0.0
  %2981 = vmatprep.subr.mxu0 0.0
  %2982 = vmatpush1.msra.mxu0 0.0
  %2983 = vmatprep.subr.mxu0 0.0
  %2984 = vmatpush1.msra.mxu0 0.0
  %2985 = vmatprep.subr.mxu0 0.0
  %2986 = vmatpush1.msra.mxu0 0.0
  %2987 = vmatprep.subr.mxu0 0.0
  %2988 = vmatpush1.msra.mxu0 0.0
  %2989 = vmatprep.subr.mxu0 0.0
  %2990 = vmatpush1.msra.mxu0 0.0
  %2991 = vmatprep.subr.mxu0 0.0
  %2992 = vmatpush1.msra.mxu0 0.0
  %2993 = vmatprep.subr.mxu0 0.0
  %2994 = vmatpush1.msra.mxu0 0.0
  %2995 = vmatprep.mubr.f32.mxu0 0.0
  %2996 = vmatmul.mubr.f32.gmra.mrb[0].mxu0 %v2717
  %v2997 = vpop.f32.mrb[0].mxu0
  %v2998 = vadd.f32 %v2856, %v2997
  %v2999 = vpop.f32.mrb[0].mxu0
  %v3000 = vadd.f32 %v2858, %v2999
  %3001 = vdwg.mxu0
  %v3002 = vadd.f32 %v2927, %v390
  %v3003 = vadd.f32 %v2929, %v394
  %v3004 = vadd.f32 %v2998, %v398
  %v3005 = vadd.f32 %v3000, %v402
  %v3006 = vxor.u32 %v3002, 2147483648
  %v3007 = vxor.u32 %v3003, 2147483648
  %v3008 = vxor.u32 %v3004, 2147483648
  %v3009 = vmul.f32 %v3006, 1.442695
  %v3010 = vpow.pop %v3009
  %v3011 = vmul.f32 %v3007, 1.442695
  %v3012 = vpow.pop %v3011
  %v3013 = vmul.f32 %v3008, 1.442695
  %v3014 = vpow.pop %v3013
  %v3015 = vadd.f32 %v3010, 1.0
  %v3016 = vadd.f32 %v3012, 1.0
  %v3017 = vadd.f32 %v3014, 1.0
  %v3018 = vrcp.pop %v3015
  %v3019 = vmul.f32 1.0, %v3018
  %v3020 = vrcp.pop %v3016
  %v3021 = vmul.f32 1.0, %v3020
  %v3022 = vrcp.pop %v3017
  %v3023 = vmul.f32 1.0, %v3022
  %v3024 = vtanh.pop %v3005
  %v3025 = vmul.f32 %v3021, %v2541
  %v3026 = vmul.f32 %v3019, %v3024
  %v3027 = vadd.f32 %v3025, %v3026
  %v3028 = vtanh.pop %v3027
  %v3029 = vmul.f32 %v3023, %v3028
  %v3030 = vld [vmem:[#allocation2 + $0xa0] sm:$0xff]
  %v3031 = vld [vmem:[#allocation2 + $0xa8] sm:$0xff]
  %v3032 = vld [vmem:[#allocation2 + $0xb0] sm:$0xff]
  %v3033 = vld [vmem:[#allocation2 + $0xb8] sm:$0xff]
  %3034 = vmatprep.subr.mxu0 %v412
  %3035 = vmatpush1.msra.mxu0 %v411
  %3036 = vmatprep.subr.mxu0 %v416
  %3037 = vmatpush1.msra.mxu0 %v415
  %3038 = vmatprep.subr.mxu0 %v420
  %3039 = vmatpush1.msra.mxu0 %v419
  %3040 = vmatprep.subr.mxu0 %v424
  %3041 = vmatpush1.msra.mxu0 %v423
  %3042 = vmatprep.subr.mxu0 %v428
  %3043 = vmatpush1.msra.mxu0 %v427
  %3044 = vmatprep.subr.mxu0 %v432
  %3045 = vmatpush1.msra.mxu0 %v431
  %3046 = vmatprep.subr.mxu0 %v436
  %3047 = vmatpush1.msra.mxu0 %v435
  %3048 = vmatprep.subr.mxu0 %v440
  %3049 = vmatpush1.msra.mxu0 %v439
  %3050 = vmatprep.subr.mxu0 %v444
  %3051 = vmatpush1.msra.mxu0 %v443
  %3052 = vmatprep.subr.mxu0 %v448
  %3053 = vmatpush1.msra.mxu0 %v447
  %3054 = vmatprep.subr.mxu0 %v452
  %3055 = vmatpush1.msra.mxu0 %v451
  %3056 = vmatprep.subr.mxu0 %v456
  %3057 = vmatpush1.msra.mxu0 %v455
  %3058 = vmatprep.subr.mxu0 %v460
  %3059 = vmatpush1.msra.mxu0 %v459
  %3060 = vmatprep.subr.mxu0 %v464
  %3061 = vmatpush1.msra.mxu0 %v463
  %3062 = vmatprep.subr.mxu0 %v468
  %3063 = vmatpush1.msra.mxu0 %v467
  %3064 = vmatprep.subr.mxu0 %v472
  %3065 = vmatpush1.msra.mxu0 %v471
  %3066 = vmatprep.subr.mxu0 0.0
  %3067 = vmatpush1.msra.mxu0 0.0
  %3068 = vmatprep.subr.mxu0 0.0
  %3069 = vmatpush1.msra.mxu0 0.0
  %3070 = vmatprep.subr.mxu0 0.0
  %3071 = vmatpush1.msra.mxu0 0.0
  %3072 = vmatprep.subr.mxu0 0.0
  %3073 = vmatpush1.msra.mxu0 0.0
  %3074 = vmatprep.subr.mxu0 0.0
  %3075 = vmatpush1.msra.mxu0 0.0
  %3076 = vmatprep.subr.mxu0 0.0
  %3077 = vmatpush1.msra.mxu0 0.0
  %3078 = vmatprep.subr.mxu0 0.0
  %3079 = vmatpush1.msra.mxu0 0.0
  %3080 = vmatprep.subr.mxu0 0.0
  %3081 = vmatpush1.msra.mxu0 0.0
  %3082 = vmatprep.subr.mxu0 0.0
  %3083 = vmatpush1.msra.mxu0 0.0
  %3084 = vmatprep.subr.mxu0 0.0
  %3085 = vmatpush1.msra.mxu0 0.0
  %3086 = vmatprep.subr.mxu0 0.0
  %3087 = vmatpush1.msra.mxu0 0.0
  %3088 = vmatprep.subr.mxu0 0.0
  %3089 = vmatpush1.msra.mxu0 0.0
  %3090 = vmatprep.subr.mxu0 0.0
  %3091 = vmatpush1.msra.mxu0 0.0
  %3092 = vmatprep.subr.mxu0 0.0
  %3093 = vmatpush1.msra.mxu0 0.0
  %3094 = vmatprep.subr.mxu0 0.0
  %3095 = vmatpush1.msra.mxu0 0.0
  %3096 = vmatprep.subr.mxu0 0.0
  %3097 = vmatpush1.msra.mxu0 0.0
  %3098 = vmatprep.mubr.f32.mxu0 0.0
  %3099 = vmatmul.mubr.f32.gmra.mrb[0].mxu0 %v2717
  %v3100 = vpop.f32.mrb[0].mxu0
  %v3101 = vadd.f32 0.0, %v3100
  %v3102 = vpop.f32.mrb[0].mxu0
  %v3103 = vadd.f32 0.0, %v3102
  %3104 = vdwg.mxu0
  %3105 = vmatprep.subr.mxu0 %v414
  %3106 = vmatpush1.msra.mxu0 %v413
  %3107 = vmatprep.subr.mxu0 %v418
  %3108 = vmatpush1.msra.mxu0 %v417
  %3109 = vmatprep.subr.mxu0 %v422
  %3110 = vmatpush1.msra.mxu0 %v421
  %3111 = vmatprep.subr.mxu0 %v426
  %3112 = vmatpush1.msra.mxu0 %v425
  %3113 = vmatprep.subr.mxu0 %v430
  %3114 = vmatpush1.msra.mxu0 %v429
  %3115 = vmatprep.subr.mxu0 %v434
  %3116 = vmatpush1.msra.mxu0 %v433
  %3117 = vmatprep.subr.mxu0 %v438
  %3118 = vmatpush1.msra.mxu0 %v437
  %3119 = vmatprep.subr.mxu0 %v442
  %3120 = vmatpush1.msra.mxu0 %v441
  %3121 = vmatprep.subr.mxu0 %v446
  %3122 = vmatpush1.msra.mxu0 %v445
  %3123 = vmatprep.subr.mxu0 %v450
  %3124 = vmatpush1.msra.mxu0 %v449
  %3125 = vmatprep.subr.mxu0 %v454
  %3126 = vmatpush1.msra.mxu0 %v453
  %3127 = vmatprep.subr.mxu0 %v458
  %3128 = vmatpush1.msra.mxu0 %v457
  %3129 = vmatprep.subr.mxu0 %v462
  %3130 = vmatpush1.msra.mxu0 %v461
  %3131 = vmatprep.subr.mxu0 %v466
  %3132 = vmatpush1.msra.mxu0 %v465
  %3133 = vmatprep.subr.mxu0 %v470
  %3134 = vmatpush1.msra.mxu0 %v469
  %3135 = vmatprep.subr.mxu0 %v474
  %3136 = vmatpush1.msra.mxu0 %v473
  %3137 = vmatprep.subr.mxu0 0.0
  %3138 = vmatpush1.msra.mxu0 0.0
  %3139 = vmatprep.subr.mxu0 0.0
  %3140 = vmatpush1.msra.mxu0 0.0
  %3141 = vmatprep.subr.mxu0 0.0
  %3142 = vmatpush1.msra.mxu0 0.0
  %3143 = vmatprep.subr.mxu0 0.0
  %3144 = vmatpush1.msra.mxu0 0.0
  %3145 = vmatprep.subr.mxu0 0.0
  %3146 = vmatpush1.msra.mxu0 0.0
  %3147 = vmatprep.subr.mxu0 0.0
  %3148 = vmatpush1.msra.mxu0 0.0
  %3149 = vmatprep.subr.mxu0 0.0
  %3150 = vmatpush1.msra.mxu0 0.0
  %3151 = vmatprep.subr.mxu0 0.0
  %3152 = vmatpush1.msra.mxu0 0.0
  %3153 = vmatprep.subr.mxu0 0.0
  %3154 = vmatpush1.msra.mxu0 0.0
  %3155 = vmatprep.subr.mxu0 0.0
  %3156 = vmatpush1.msra.mxu0 0.0
  %3157 = vmatprep.subr.mxu0 0.0
  %3158 = vmatpush1.msra.mxu0 0.0
  %3159 = vmatprep.subr.mxu0 0.0
  %3160 = vmatpush1.msra.mxu0 0.0
  %3161 = vmatprep.subr.mxu0 0.0
  %3162 = vmatpush1.msra.mxu0 0.0
  %3163 = vmatprep.subr.mxu0 0.0
  %3164 = vmatpush1.msra.mxu0 0.0
  %3165 = vmatprep.subr.mxu0 0.0
  %3166 = vmatpush1.msra.mxu0 0.0
  %3167 = vmatprep.subr.mxu0 0.0
  %3168 = vmatpush1.msra.mxu0 0.0
  %3169 = vmatprep.mubr.f32.mxu0 0.0
  %3170 = vmatmul.mubr.f32.gmra.mrb[0].mxu0 %v2717
  %v3171 = vpop.f32.mrb[0].mxu0
  %v3172 = vadd.f32 0.0, %v3171
  %v3173 = vpop.f32.mrb[0].mxu0
  %v3174 = vadd.f32 0.0, %v3173
  %3175 = vdwg.mxu0
  %v3176 = vadd.f32 %v3030, %v3101
  %v3177 = vadd.f32 %v3031, %v3103
  %v3178 = vadd.f32 %v3032, %v3172
  %v3179 = vadd.f32 %v3033, %v3174
  %v3180 = vxor.u32 %v3176, 2147483648
  %v3181 = vxor.u32 %v3177, 2147483648
  %v3182 = vxor.u32 %v3178, 2147483648
  %v3183 = vmul.f32 %v3180, 1.442695
  %v3184 = vpow.pop %v3183
  %v3185 = vmul.f32 %v3181, 1.442695
  %v3186 = vpow.pop %v3185
  %v3187 = vmul.f32 %v3182, 1.442695
  %v3188 = vpow.pop %v3187
  %v3189 = vadd.f32 %v3184, 1.0
  %v3190 = vadd.f32 %v3186, 1.0
  %v3191 = vadd.f32 %v3188, 1.0
  %v3192 = vrcp.pop %v3189
  %v3193 = vmul.f32 1.0, %v3192
  %v3194 = vrcp.pop %v3190
  %v3195 = vmul.f32 1.0, %v3194
  %v3196 = vrcp.pop %v3191
  %v3197 = vmul.f32 1.0, %v3196
  %v3198 = vtanh.pop %v3179
  %v3199 = vmul.f32 %v3195, %v2715
  %v3200 = vmul.f32 %v3193, %v3198
  %v3201 = vadd.f32 %v3199, %v3200
  %v3202 = vtanh.pop %v3201
  %v3203 = vmul.f32 %v3197, %v3202
  %3204 = vmatprep.subr.mxu0 %v711
  %3205 = vmatpush1.msra.mxu0 %v710
  %3206 = vmatprep.subr.mxu0 %v715
  %3207 = vmatpush1.msra.mxu0 %v714
  %3208 = vmatprep.subr.mxu0 %v719
  %3209 = vmatpush1.msra.mxu0 %v718
  %3210 = vmatprep.subr.mxu0 %v723
  %3211 = vmatpush1.msra.mxu0 %v722
  %3212 = vmatprep.subr.mxu0 %v727
  %3213 = vmatpush1.msra.mxu0 %v726
  %3214 = vmatprep.subr.mxu0 %v731
  %3215 = vmatpush1.msra.mxu0 %v730
  %3216 = vmatprep.subr.mxu0 %v735
  %3217 = vmatpush1.msra.mxu0 %v734
  %3218 = vmatprep.subr.mxu0 %v739
  %3219 = vmatpush1.msra.mxu0 %v738
  %3220 = vmatprep.subr.mxu0 %v743
  %3221 = vmatpush1.msra.mxu0 %v742
  %3222 = vmatprep.subr.mxu0 %v747
  %3223 = vmatpush1.msra.mxu0 %v746
  %3224 = vmatprep.subr.mxu0 %v751
  %3225 = vmatpush1.msra.mxu0 %v750
  %3226 = vmatprep.subr.mxu0 %v755
  %3227 = vmatpush1.msra.mxu0 %v754
  %3228 = vmatprep.subr.mxu0 %v759
  %3229 = vmatpush1.msra.mxu0 %v758
  %3230 = vmatprep.subr.mxu0 %v763
  %3231 = vmatpush1.msra.mxu0 %v762
  %3232 = vmatprep.subr.mxu0 %v767
  %3233 = vmatpush1.msra.mxu0 %v766
  %3234 = vmatprep.subr.mxu0 %v771
  %3235 = vmatpush1.msra.mxu0 %v770
  %3236 = vmatprep.subr.mxu0 0.0
  %3237 = vmatpush1.msra.mxu0 0.0
  %3238 = vmatprep.subr.mxu0 0.0
  %3239 = vmatpush1.msra.mxu0 0.0
  %3240 = vmatprep.subr.mxu0 0.0
  %3241 = vmatpush1.msra.mxu0 0.0
  %3242 = vmatprep.subr.mxu0 0.0
  %3243 = vmatpush1.msra.mxu0 0.0
  %3244 = vmatprep.subr.mxu0 0.0
  %3245 = vmatpush1.msra.mxu0 0.0
  %3246 = vmatprep.subr.mxu0 0.0
  %3247 = vmatpush1.msra.mxu0 0.0
  %3248 = vmatprep.subr.mxu0 0.0
  %3249 = vmatpush1.msra.mxu0 0.0
  %3250 = vmatprep.subr.mxu0 0.0
  %3251 = vmatpush1.msra.mxu0 0.0
  %3252 = vmatprep.subr.mxu0 0.0
  %3253 = vmatpush1.msra.mxu0 0.0
  %3254 = vmatprep.subr.mxu0 0.0
  %3255 = vmatpush1.msra.mxu0 0.0
  %3256 = vmatprep.subr.mxu0 0.0
  %3257 = vmatpush1.msra.mxu0 0.0
  %3258 = vmatprep.subr.mxu0 0.0
  %3259 = vmatpush1.msra.mxu0 0.0
  %3260 = vmatprep.subr.mxu0 0.0
  %3261 = vmatpush1.msra.mxu0 0.0
  %3262 = vmatprep.subr.mxu0 0.0
  %3263 = vmatpush1.msra.mxu0 0.0
  %3264 = vmatprep.subr.mxu0 0.0
  %3265 = vmatpush1.msra.mxu0 0.0
  %3266 = vmatprep.subr.mxu0 0.0
  %3267 = vmatpush1.msra.mxu0 0.0
  %3268 = vmatprep.mubr.f32.mxu0 0.0
  %3269 = vmatmul.mubr.f32.gmra.mrb[0].mxu0 %v3029
  %v3270 = vpop.f32.mrb[0].mxu0
  %v3271 = vadd.f32 0.0, %v3270
  %v3272 = vpop.f32.mrb[0].mxu0
  %v3273 = vadd.f32 0.0, %v3272
  %3274 = vdwg.mxu0
  %3275 = vmatprep.subr.mxu0 %v713
  %3276 = vmatpush1.msra.mxu0 %v712
  %3277 = vmatprep.subr.mxu0 %v717
  %3278 = vmatpush1.msra.mxu0 %v716
  %3279 = vmatprep.subr.mxu0 %v721
  %3280 = vmatpush1.msra.mxu0 %v720
  %3281 = vmatprep.subr.mxu0 %v725
  %3282 = vmatpush1.msra.mxu0 %v724
  %3283 = vmatprep.subr.mxu0 %v729
  %3284 = vmatpush1.msra.mxu0 %v728
  %3285 = vmatprep.subr.mxu0 %v733
  %3286 = vmatpush1.msra.mxu0 %v732
  %3287 = vmatprep.subr.mxu0 %v737
  %3288 = vmatpush1.msra.mxu0 %v736
  %3289 = vmatprep.subr.mxu0 %v741
  %3290 = vmatpush1.msra.mxu0 %v740
  %3291 = vmatprep.subr.mxu0 %v745
  %3292 = vmatpush1.msra.mxu0 %v744
  %3293 = vmatprep.subr.mxu0 %v749
  %3294 = vmatpush1.msra.mxu0 %v748
  %3295 = vmatprep.subr.mxu0 %v753
  %3296 = vmatpush1.msra.mxu0 %v752
  %3297 = vmatprep.subr.mxu0 %v757
  %3298 = vmatpush1.msra.mxu0 %v756
  %3299 = vmatprep.subr.mxu0 %v761
  %3300 = vmatpush1.msra.mxu0 %v760
  %3301 = vmatprep.subr.mxu0 %v765
  %3302 = vmatpush1.msra.mxu0 %v764
  %3303 = vmatprep.subr.mxu0 %v769
  %3304 = vmatpush1.msra.mxu0 %v768
  %3305 = vmatprep.subr.mxu0 %v773
  %3306 = vmatpush1.msra.mxu0 %v772
  %3307 = vmatprep.subr.mxu0 0.0
  %3308 = vmatpush1.msra.mxu0 0.0
  %3309 = vmatprep.subr.mxu0 0.0
  %3310 = vmatpush1.msra.mxu0 0.0
  %3311 = vmatprep.subr.mxu0 0.0
  %3312 = vmatpush1.msra.mxu0 0.0
  %3313 = vmatprep.subr.mxu0 0.0
  %3314 = vmatpush1.msra.mxu0 0.0
  %3315 = vmatprep.subr.mxu0 0.0
  %3316 = vmatpush1.msra.mxu0 0.0
  %3317 = vmatprep.subr.mxu0 0.0
  %3318 = vmatpush1.msra.mxu0 0.0
  %3319 = vmatprep.subr.mxu0 0.0
  %3320 = vmatpush1.msra.mxu0 0.0
  %3321 = vmatprep.subr.mxu0 0.0
  %3322 = vmatpush1.msra.mxu0 0.0
  %3323 = vmatprep.subr.mxu0 0.0
  %3324 = vmatpush1.msra.mxu0 0.0
  %3325 = vmatprep.subr.mxu0 0.0
  %3326 = vmatpush1.msra.mxu0 0.0
  %3327 = vmatprep.subr.mxu0 0.0
  %3328 = vmatpush1.msra.mxu0 0.0
  %3329 = vmatprep.subr.mxu0 0.0
  %3330 = vmatpush1.msra.mxu0 0.0
  %3331 = vmatprep.subr.mxu0 0.0
  %3332 = vmatpush1.msra.mxu0 0.0
  %3333 = vmatprep.subr.mxu0 0.0
  %3334 = vmatpush1.msra.mxu0 0.0
  %3335 = vmatprep.subr.mxu0 0.0
  %3336 = vmatpush1.msra.mxu0 0.0
  %3337 = vmatprep.subr.mxu0 0.0
  %3338 = vmatpush1.msra.mxu0 0.0
  %3339 = vmatprep.mubr.f32.mxu0 0.0
  %3340 = vmatmul.mubr.f32.gmra.mrb[0].mxu0 %v3029
  %v3341 = vpop.f32.mrb[0].mxu0
  %v3342 = vadd.f32 0.0, %v3341
  %v3343 = vpop.f32.mrb[0].mxu0
  %v3344 = vadd.f32 0.0, %v3343
  %3345 = vdwg.mxu0
  %3346 = vmatprep.subr.mxu0 %v646
  %3347 = vmatpush1.msra.mxu0 %v645
  %3348 = vmatprep.subr.mxu0 %v650
  %3349 = vmatpush1.msra.mxu0 %v649
  %3350 = vmatprep.subr.mxu0 %v654
  %3351 = vmatpush1.msra.mxu0 %v653
  %3352 = vmatprep.subr.mxu0 %v658
  %3353 = vmatpush1.msra.mxu0 %v657
  %3354 = vmatprep.subr.mxu0 %v662
  %3355 = vmatpush1.msra.mxu0 %v661
  %3356 = vmatprep.subr.mxu0 %v666
  %3357 = vmatpush1.msra.mxu0 %v665
  %3358 = vmatprep.subr.mxu0 %v670
  %3359 = vmatpush1.msra.mxu0 %v669
  %3360 = vmatprep.subr.mxu0 %v674
  %3361 = vmatpush1.msra.mxu0 %v673
  %3362 = vmatprep.subr.mxu0 %v678
  %3363 = vmatpush1.msra.mxu0 %v677
  %3364 = vmatprep.subr.mxu0 %v682
  %3365 = vmatpush1.msra.mxu0 %v681
  %3366 = vmatprep.subr.mxu0 %v686
  %3367 = vmatpush1.msra.mxu0 %v685
  %3368 = vmatprep.subr.mxu0 %v690
  %3369 = vmatpush1.msra.mxu0 %v689
  %3370 = vmatprep.subr.mxu0 %v694
  %3371 = vmatpush1.msra.mxu0 %v693
  %3372 = vmatprep.subr.mxu0 %v698
  %3373 = vmatpush1.msra.mxu0 %v697
  %3374 = vmatprep.subr.mxu0 %v702
  %3375 = vmatpush1.msra.mxu0 %v701
  %3376 = vmatprep.subr.mxu0 %v706
  %3377 = vmatpush1.msra.mxu0 %v705
  %3378 = vmatprep.subr.mxu0 0.0
  %3379 = vmatpush1.msra.mxu0 0.0
  %3380 = vmatprep.subr.mxu0 0.0
  %3381 = vmatpush1.msra.mxu0 0.0
  %3382 = vmatprep.subr.mxu0 0.0
  %3383 = vmatpush1.msra.mxu0 0.0
  %3384 = vmatprep.subr.mxu0 0.0
  %3385 = vmatpush1.msra.mxu0 0.0
  %3386 = vmatprep.subr.mxu0 0.0
  %3387 = vmatpush1.msra.mxu0 0.0
  %3388 = vmatprep.subr.mxu0 0.0
  %3389 = vmatpush1.msra.mxu0 0.0
  %3390 = vmatprep.subr.mxu0 0.0
  %3391 = vmatpush1.msra.mxu0 0.0
  %3392 = vmatprep.subr.mxu0 0.0
  %3393 = vmatpush1.msra.mxu0 0.0
  %3394 = vmatprep.subr.mxu0 0.0
  %3395 = vmatpush1.msra.mxu0 0.0
  %3396 = vmatprep.subr.mxu0 0.0
  %3397 = vmatpush1.msra.mxu0 0.0
  %3398 = vmatprep.subr.mxu0 0.0
  %3399 = vmatpush1.msra.mxu0 0.0
  %3400 = vmatprep.subr.mxu0 0.0
  %3401 = vmatpush1.msra.mxu0 0.0
  %3402 = vmatprep.subr.mxu0 0.0
  %3403 = vmatpush1.msra.mxu0 0.0
  %3404 = vmatprep.subr.mxu0 0.0
  %3405 = vmatpush1.msra.mxu0 0.0
  %3406 = vmatprep.subr.mxu0 0.0
  %3407 = vmatpush1.msra.mxu0 0.0
  %3408 = vmatprep.subr.mxu0 0.0
  %3409 = vmatpush1.msra.mxu0 0.0
  %3410 = vmatprep.mubr.f32.mxu0 0.0
  %3411 = vmatmul.mubr.f32.gmra.mrb[0].mxu0 %v3203
  %v3412 = vpop.f32.mrb[0].mxu0
  %v3413 = vadd.f32 %v3271, %v3412
  %v3414 = vpop.f32.mrb[0].mxu0
  %v3415 = vadd.f32 %v3273, %v3414
  %3416 = vdwg.mxu0
  %3417 = vmatprep.subr.mxu0 %v648
  %3418 = vmatpush1.msra.mxu0 %v647
  %3419 = vmatprep.subr.mxu0 %v652
  %3420 = vmatpush1.msra.mxu0 %v651
  %3421 = vmatprep.subr.mxu0 %v656
  %3422 = vmatpush1.msra.mxu0 %v655
  %3423 = vmatprep.subr.mxu0 %v660
  %3424 = vmatpush1.msra.mxu0 %v659
  %3425 = vmatprep.subr.mxu0 %v664
  %3426 = vmatpush1.msra.mxu0 %v663
  %3427 = vmatprep.subr.mxu0 %v668
  %3428 = vmatpush1.msra.mxu0 %v667
  %3429 = vmatprep.subr.mxu0 %v672
  %3430 = vmatpush1.msra.mxu0 %v671
  %3431 = vmatprep.subr.mxu0 %v676
  %3432 = vmatpush1.msra.mxu0 %v675
  %3433 = vmatprep.subr.mxu0 %v680
  %3434 = vmatpush1.msra.mxu0 %v679
  %3435 = vmatprep.subr.mxu0 %v684
  %3436 = vmatpush1.msra.mxu0 %v683
  %3437 = vmatprep.subr.mxu0 %v688
  %3438 = vmatpush1.msra.mxu0 %v687
  %3439 = vmatprep.subr.mxu0 %v692
  %3440 = vmatpush1.msra.mxu0 %v691
  %3441 = vmatprep.subr.mxu0 %v696
  %3442 = vmatpush1.msra.mxu0 %v695
  %3443 = vmatprep.subr.mxu0 %v700
  %3444 = vmatpush1.msra.mxu0 %v699
  %3445 = vmatprep.subr.mxu0 %v704
  %3446 = vmatpush1.msra.mxu0 %v703
  %3447 = vmatprep.subr.mxu0 %v708
  %3448 = vmatpush1.msra.mxu0 %v707
  %3449 = vmatprep.subr.mxu0 0.0
  %3450 = vmatpush1.msra.mxu0 0.0
  %3451 = vmatprep.subr.mxu0 0.0
  %3452 = vmatpush1.msra.mxu0 0.0
  %3453 = vmatprep.subr.mxu0 0.0
  %3454 = vmatpush1.msra.mxu0 0.0
  %3455 = vmatprep.subr.mxu0 0.0
  %3456 = vmatpush1.msra.mxu0 0.0
  %3457 = vmatprep.subr.mxu0 0.0
  %3458 = vmatpush1.msra.mxu0 0.0
  %3459 = vmatprep.subr.mxu0 0.0
  %3460 = vmatpush1.msra.mxu0 0.0
  %3461 = vmatprep.subr.mxu0 0.0
  %3462 = vmatpush1.msra.mxu0 0.0
  %3463 = vmatprep.subr.mxu0 0.0
  %3464 = vmatpush1.msra.mxu0 0.0
  %3465 = vmatprep.subr.mxu0 0.0
  %3466 = vmatpush1.msra.mxu0 0.0
  %3467 = vmatprep.subr.mxu0 0.0
  %3468 = vmatpush1.msra.mxu0 0.0
  %3469 = vmatprep.subr.mxu0 0.0
  %3470 = vmatpush1.msra.mxu0 0.0
  %3471 = vmatprep.subr.mxu0 0.0
  %3472 = vmatpush1.msra.mxu0 0.0
  %3473 = vmatprep.subr.mxu0 0.0
  %3474 = vmatpush1.msra.mxu0 0.0
  %3475 = vmatprep.subr.mxu0 0.0
  %3476 = vmatpush1.msra.mxu0 0.0
  %3477 = vmatprep.subr.mxu0 0.0
  %3478 = vmatpush1.msra.mxu0 0.0
  %3479 = vmatprep.subr.mxu0 0.0
  %3480 = vmatpush1.msra.mxu0 0.0
  %3481 = vmatprep.mubr.f32.mxu0 0.0
  %3482 = vmatmul.mubr.f32.gmra.mrb[0].mxu0 %v3203
  %v3483 = vpop.f32.mrb[0].mxu0
  %v3484 = vadd.f32 %v3342, %v3483
  %v3485 = vpop.f32.mrb[0].mxu0
  %v3486 = vadd.f32 %v3344, %v3485
  %3487 = vdwg.mxu0
  %v3488 = vadd.f32 %v3413, %v390
  %v3489 = vadd.f32 %v3415, %v394
  %v3490 = vadd.f32 %v3484, %v398
  %v3491 = vadd.f32 %v3486, %v402
  %v3492 = vxor.u32 %v3488, 2147483648
  %v3493 = vxor.u32 %v3489, 2147483648
  %v3494 = vxor.u32 %v3490, 2147483648
  %v3495 = vmul.f32 %v3492, 1.442695
  %v3496 = vpow.pop %v3495
  %v3497 = vmul.f32 %v3493, 1.442695
  %v3498 = vpow.pop %v3497
  %v3499 = vmul.f32 %v3494, 1.442695
  %v3500 = vpow.pop %v3499
  %v3501 = vadd.f32 %v3496, 1.0
  %v3502 = vadd.f32 %v3498, 1.0
  %v3503 = vadd.f32 %v3500, 1.0
  %v3504 = vrcp.pop %v3501
  %v3505 = vmul.f32 1.0, %v3504
  %v3506 = vrcp.pop %v3502
  %v3507 = vmul.f32 1.0, %v3506
  %v3508 = vrcp.pop %v3503
  %v3509 = vmul.f32 1.0, %v3508
  %v3510 = vtanh.pop %v3491
  %v3511 = vmul.f32 %v3507, %v3027
  %v3512 = vmul.f32 %v3505, %v3510
  %v3513 = vadd.f32 %v3511, %v3512
  %v3514 = vtanh.pop %v3513
  %v3515 = vmul.f32 %v3509, %v3514
  %v3516 = vld [vmem:[#allocation2 + $0xc0] sm:$0xff]
  %v3517 = vld [vmem:[#allocation2 + $0xc8] sm:$0xff]
  %v3518 = vld [vmem:[#allocation2 + $0xd0] sm:$0xff]
  %v3519 = vld [vmem:[#allocation2 + $0xd8] sm:$0xff]
  %3520 = vmatprep.subr.mxu0 %v412
  %3521 = vmatpush1.msra.mxu0 %v411
  %3522 = vmatprep.subr.mxu0 %v416
  %3523 = vmatpush1.msra.mxu0 %v415
  %3524 = vmatprep.subr.mxu0 %v420
  %3525 = vmatpush1.msra.mxu0 %v419
  %3526 = vmatprep.subr.mxu0 %v424
  %3527 = vmatpush1.msra.mxu0 %v423
  %3528 = vmatprep.subr.mxu0 %v428
  %3529 = vmatpush1.msra.mxu0 %v427
  %3530 = vmatprep.subr.mxu0 %v432
  %3531 = vmatpush1.msra.mxu0 %v431
  %3532 = vmatprep.subr.mxu0 %v436
  %3533 = vmatpush1.msra.mxu0 %v435
  %3534 = vmatprep.subr.mxu0 %v440
  %3535 = vmatpush1.msra.mxu0 %v439
  %3536 = vmatprep.subr.mxu0 %v444
  %3537 = vmatpush1.msra.mxu0 %v443
  %3538 = vmatprep.subr.mxu0 %v448
  %3539 = vmatpush1.msra.mxu0 %v447
  %3540 = vmatprep.subr.mxu0 %v452
  %3541 = vmatpush1.msra.mxu0 %v451
  %3542 = vmatprep.subr.mxu0 %v456
  %3543 = vmatpush1.msra.mxu0 %v455
  %3544 = vmatprep.subr.mxu0 %v460
  %3545 = vmatpush1.msra.mxu0 %v459
  %3546 = vmatprep.subr.mxu0 %v464
  %3547 = vmatpush1.msra.mxu0 %v463
  %3548 = vmatprep.subr.mxu0 %v468
  %3549 = vmatpush1.msra.mxu0 %v467
  %3550 = vmatprep.subr.mxu0 %v472
  %3551 = vmatpush1.msra.mxu0 %v471
  %3552 = vmatprep.subr.mxu0 0.0
  %3553 = vmatpush1.msra.mxu0 0.0
  %3554 = vmatprep.subr.mxu0 0.0
  %3555 = vmatpush1.msra.mxu0 0.0
  %3556 = vmatprep.subr.mxu0 0.0
  %3557 = vmatpush1.msra.mxu0 0.0
  %3558 = vmatprep.subr.mxu0 0.0
  %3559 = vmatpush1.msra.mxu0 0.0
  %3560 = vmatprep.subr.mxu0 0.0
  %3561 = vmatpush1.msra.mxu0 0.0
  %3562 = vmatprep.subr.mxu0 0.0
  %3563 = vmatpush1.msra.mxu0 0.0
  %3564 = vmatprep.subr.mxu0 0.0
  %3565 = vmatpush1.msra.mxu0 0.0
  %3566 = vmatprep.subr.mxu0 0.0
  %3567 = vmatpush1.msra.mxu0 0.0
  %3568 = vmatprep.subr.mxu0 0.0
  %3569 = vmatpush1.msra.mxu0 0.0
  %3570 = vmatprep.subr.mxu0 0.0
  %3571 = vmatpush1.msra.mxu0 0.0
  %3572 = vmatprep.subr.mxu0 0.0
  %3573 = vmatpush1.msra.mxu0 0.0
  %3574 = vmatprep.subr.mxu0 0.0
  %3575 = vmatpush1.msra.mxu0 0.0
  %3576 = vmatprep.subr.mxu0 0.0
  %3577 = vmatpush1.msra.mxu0 0.0
  %3578 = vmatprep.subr.mxu0 0.0
  %3579 = vmatpush1.msra.mxu0 0.0
  %3580 = vmatprep.subr.mxu0 0.0
  %3581 = vmatpush1.msra.mxu0 0.0
  %3582 = vmatprep.subr.mxu0 0.0
  %3583 = vmatpush1.msra.mxu0 0.0
  %3584 = vmatprep.mubr.f32.mxu0 0.0
  %3585 = vmatmul.mubr.f32.gmra.mrb[0].mxu0 %v3203
  %v3586 = vpop.f32.mrb[0].mxu0
  %v3587 = vadd.f32 0.0, %v3586
  %v3588 = vpop.f32.mrb[0].mxu0
  %v3589 = vadd.f32 0.0, %v3588
  %3590 = vdwg.mxu0
  %3591 = vmatprep.subr.mxu0 %v414
  %3592 = vmatpush1.msra.mxu0 %v413
  %3593 = vmatprep.subr.mxu0 %v418
  %3594 = vmatpush1.msra.mxu0 %v417
  %3595 = vmatprep.subr.mxu0 %v422
  %3596 = vmatpush1.msra.mxu0 %v421
  %3597 = vmatprep.subr.mxu0 %v426
  %3598 = vmatpush1.msra.mxu0 %v425
  %3599 = vmatprep.subr.mxu0 %v430
  %3600 = vmatpush1.msra.mxu0 %v429
  %3601 = vmatprep.subr.mxu0 %v434
  %3602 = vmatpush1.msra.mxu0 %v433
  %3603 = vmatprep.subr.mxu0 %v438
  %3604 = vmatpush1.msra.mxu0 %v437
  %3605 = vmatprep.subr.mxu0 %v442
  %3606 = vmatpush1.msra.mxu0 %v441
  %3607 = vmatprep.subr.mxu0 %v446
  %3608 = vmatpush1.msra.mxu0 %v445
  %3609 = vmatprep.subr.mxu0 %v450
  %3610 = vmatpush1.msra.mxu0 %v449
  %3611 = vmatprep.subr.mxu0 %v454
  %3612 = vmatpush1.msra.mxu0 %v453
  %3613 = vmatprep.subr.mxu0 %v458
  %3614 = vmatpush1.msra.mxu0 %v457
  %3615 = vmatprep.subr.mxu0 %v462
  %3616 = vmatpush1.msra.mxu0 %v461
  %3617 = vmatprep.subr.mxu0 %v466
  %3618 = vmatpush1.msra.mxu0 %v465
  %3619 = vmatprep.subr.mxu0 %v470
  %3620 = vmatpush1.msra.mxu0 %v469
  %3621 = vmatprep.subr.mxu0 %v474
  %3622 = vmatpush1.msra.mxu0 %v473
  %3623 = vmatprep.subr.mxu0 0.0
  %3624 = vmatpush1.msra.mxu0 0.0
  %3625 = vmatprep.subr.mxu0 0.0
  %3626 = vmatpush1.msra.mxu0 0.0
  %3627 = vmatprep.subr.mxu0 0.0
  %3628 = vmatpush1.msra.mxu0 0.0
  %3629 = vmatprep.subr.mxu0 0.0
  %3630 = vmatpush1.msra.mxu0 0.0
  %3631 = vmatprep.subr.mxu0 0.0
  %3632 = vmatpush1.msra.mxu0 0.0
  %3633 = vmatprep.subr.mxu0 0.0
  %3634 = vmatpush1.msra.mxu0 0.0
  %3635 = vmatprep.subr.mxu0 0.0
  %3636 = vmatpush1.msra.mxu0 0.0
  %3637 = vmatprep.subr.mxu0 0.0
  %3638 = vmatpush1.msra.mxu0 0.0
  %3639 = vmatprep.subr.mxu0 0.0
  %3640 = vmatpush1.msra.mxu0 0.0
  %3641 = vmatprep.subr.mxu0 0.0
  %3642 = vmatpush1.msra.mxu0 0.0
  %3643 = vmatprep.subr.mxu0 0.0
  %3644 = vmatpush1.msra.mxu0 0.0
  %3645 = vmatprep.subr.mxu0 0.0
  %3646 = vmatpush1.msra.mxu0 0.0
  %3647 = vmatprep.subr.mxu0 0.0
  %3648 = vmatpush1.msra.mxu0 0.0
  %3649 = vmatprep.subr.mxu0 0.0
  %3650 = vmatpush1.msra.mxu0 0.0
  %3651 = vmatprep.subr.mxu0 0.0
  %3652 = vmatpush1.msra.mxu0 0.0
  %3653 = vmatprep.subr.mxu0 0.0
  %3654 = vmatpush1.msra.mxu0 0.0
  %3655 = vmatprep.mubr.f32.mxu0 0.0
  %3656 = vmatmul.mubr.f32.gmra.mrb[0].mxu0 %v3203
  %v3657 = vpop.f32.mrb[0].mxu0
  %v3658 = vadd.f32 0.0, %v3657
  %v3659 = vpop.f32.mrb[0].mxu0
  %v3660 = vadd.f32 0.0, %v3659
  %3661 = vdwg.mxu0
  %v3662 = vadd.f32 %v3516, %v3587
  %v3663 = vadd.f32 %v3517, %v3589
  %v3664 = vadd.f32 %v3518, %v3658
  %v3665 = vadd.f32 %v3519, %v3660
  %v3666 = vxor.u32 %v3662, 2147483648
  %v3667 = vxor.u32 %v3663, 2147483648
  %v3668 = vxor.u32 %v3664, 2147483648
  %v3669 = vmul.f32 %v3666, 1.442695
  %v3670 = vpow.pop %v3669
  %v3671 = vmul.f32 %v3667, 1.442695
  %v3672 = vpow.pop %v3671
  %v3673 = vmul.f32 %v3668, 1.442695
  %v3674 = vpow.pop %v3673
  %v3675 = vadd.f32 %v3670, 1.0
  %v3676 = vadd.f32 %v3672, 1.0
  %v3677 = vadd.f32 %v3674, 1.0
  %v3678 = vrcp.pop %v3675
  %v3679 = vmul.f32 1.0, %v3678
  %v3680 = vrcp.pop %v3676
  %v3681 = vmul.f32 1.0, %v3680
  %v3682 = vrcp.pop %v3677
  %v3683 = vmul.f32 1.0, %v3682
  %v3684 = vtanh.pop %v3665
  %v3685 = vmul.f32 %v3681, %v3201
  %v3686 = vmul.f32 %v3679, %v3684
  %v3687 = vadd.f32 %v3685, %v3686
  %v3688 = vtanh.pop %v3687
  %v3689 = vmul.f32 %v3683, %v3688
  %3690 = vmatprep.subr.mxu0 %v711
  %3691 = vmatpush1.msra.mxu0 %v710
  %3692 = vmatprep.subr.mxu0 %v715
  %3693 = vmatpush1.msra.mxu0 %v714
  %3694 = vmatprep.subr.mxu0 %v719
  %3695 = vmatpush1.msra.mxu0 %v718
  %3696 = vmatprep.subr.mxu0 %v723
  %3697 = vmatpush1.msra.mxu0 %v722
  %3698 = vmatprep.subr.mxu0 %v727
  %3699 = vmatpush1.msra.mxu0 %v726
  %3700 = vmatprep.subr.mxu0 %v731
  %3701 = vmatpush1.msra.mxu0 %v730
  %3702 = vmatprep.subr.mxu0 %v735
  %3703 = vmatpush1.msra.mxu0 %v734
  %3704 = vmatprep.subr.mxu0 %v739
  %3705 = vmatpush1.msra.mxu0 %v738
  %3706 = vmatprep.subr.mxu0 %v743
  %3707 = vmatpush1.msra.mxu0 %v742
  %3708 = vmatprep.subr.mxu0 %v747
  %3709 = vmatpush1.msra.mxu0 %v746
  %3710 = vmatprep.subr.mxu0 %v751
  %3711 = vmatpush1.msra.mxu0 %v750
  %3712 = vmatprep.subr.mxu0 %v755
  %3713 = vmatpush1.msra.mxu0 %v754
  %3714 = vmatprep.subr.mxu0 %v759
  %3715 = vmatpush1.msra.mxu0 %v758
  %3716 = vmatprep.subr.mxu0 %v763
  %3717 = vmatpush1.msra.mxu0 %v762
  %3718 = vmatprep.subr.mxu0 %v767
  %3719 = vmatpush1.msra.mxu0 %v766
  %3720 = vmatprep.subr.mxu0 %v771
  %3721 = vmatpush1.msra.mxu0 %v770
  %3722 = vmatprep.subr.mxu0 0.0
  %3723 = vmatpush1.msra.mxu0 0.0
  %3724 = vmatprep.subr.mxu0 0.0
  %3725 = vmatpush1.msra.mxu0 0.0
  %3726 = vmatprep.subr.mxu0 0.0
  %3727 = vmatpush1.msra.mxu0 0.0
  %3728 = vmatprep.subr.mxu0 0.0
  %3729 = vmatpush1.msra.mxu0 0.0
  %3730 = vmatprep.subr.mxu0 0.0
  %3731 = vmatpush1.msra.mxu0 0.0
  %3732 = vmatprep.subr.mxu0 0.0
  %3733 = vmatpush1.msra.mxu0 0.0
  %3734 = vmatprep.subr.mxu0 0.0
  %3735 = vmatpush1.msra.mxu0 0.0
  %3736 = vmatprep.subr.mxu0 0.0
  %3737 = vmatpush1.msra.mxu0 0.0
  %3738 = vmatprep.subr.mxu0 0.0
  %3739 = vmatpush1.msra.mxu0 0.0
  %3740 = vmatprep.subr.mxu0 0.0
  %3741 = vmatpush1.msra.mxu0 0.0
  %3742 = vmatprep.subr.mxu0 0.0
  %3743 = vmatpush1.msra.mxu0 0.0
  %3744 = vmatprep.subr.mxu0 0.0
  %3745 = vmatpush1.msra.mxu0 0.0
  %3746 = vmatprep.subr.mxu0 0.0
  %3747 = vmatpush1.msra.mxu0 0.0
  %3748 = vmatprep.subr.mxu0 0.0
  %3749 = vmatpush1.msra.mxu0 0.0
  %3750 = vmatprep.subr.mxu0 0.0
  %3751 = vmatpush1.msra.mxu0 0.0
  %3752 = vmatprep.subr.mxu0 0.0
  %3753 = vmatpush1.msra.mxu0 0.0
  %3754 = vmatprep.mubr.f32.mxu0 0.0
  %3755 = vmatmul.mubr.f32.gmra.mrb[0].mxu0 %v3515
  %v3756 = vpop.f32.mrb[0].mxu0
  %v3757 = vadd.f32 0.0, %v3756
  %v3758 = vpop.f32.mrb[0].mxu0
  %v3759 = vadd.f32 0.0, %v3758
  %3760 = vdwg.mxu0
  %3761 = vmatprep.subr.mxu0 %v713
  %3762 = vmatpush1.msra.mxu0 %v712
  %3763 = vmatprep.subr.mxu0 %v717
  %3764 = vmatpush1.msra.mxu0 %v716
  %3765 = vmatprep.subr.mxu0 %v721
  %3766 = vmatpush1.msra.mxu0 %v720
  %3767 = vmatprep.subr.mxu0 %v725
  %3768 = vmatpush1.msra.mxu0 %v724
  %3769 = vmatprep.subr.mxu0 %v729
  %3770 = vmatpush1.msra.mxu0 %v728
  %3771 = vmatprep.subr.mxu0 %v733
  %3772 = vmatpush1.msra.mxu0 %v732
  %3773 = vmatprep.subr.mxu0 %v737
  %3774 = vmatpush1.msra.mxu0 %v736
  %3775 = vmatprep.subr.mxu0 %v741
  %3776 = vmatpush1.msra.mxu0 %v740
  %3777 = vmatprep.subr.mxu0 %v745
  %3778 = vmatpush1.msra.mxu0 %v744
  %3779 = vmatprep.subr.mxu0 %v749
  %3780 = vmatpush1.msra.mxu0 %v748
  %3781 = vmatprep.subr.mxu0 %v753
  %3782 = vmatpush1.msra.mxu0 %v752
  %3783 = vmatprep.subr.mxu0 %v757
  %3784 = vmatpush1.msra.mxu0 %v756
  %3785 = vmatprep.subr.mxu0 %v761
  %3786 = vmatpush1.msra.mxu0 %v760
  %3787 = vmatprep.subr.mxu0 %v765
  %3788 = vmatpush1.msra.mxu0 %v764
  %3789 = vmatprep.subr.mxu0 %v769
  %3790 = vmatpush1.msra.mxu0 %v768
  %3791 = vmatprep.subr.mxu0 %v773
  %3792 = vmatpush1.msra.mxu0 %v772
  %3793 = vmatprep.subr.mxu0 0.0
  %3794 = vmatpush1.msra.mxu0 0.0
  %3795 = vmatprep.subr.mxu0 0.0
  %3796 = vmatpush1.msra.mxu0 0.0
  %3797 = vmatprep.subr.mxu0 0.0
  %3798 = vmatpush1.msra.mxu0 0.0
  %3799 = vmatprep.subr.mxu0 0.0
  %3800 = vmatpush1.msra.mxu0 0.0
  %3801 = vmatprep.subr.mxu0 0.0
  %3802 = vmatpush1.msra.mxu0 0.0
  %3803 = vmatprep.subr.mxu0 0.0
  %3804 = vmatpush1.msra.mxu0 0.0
  %3805 = vmatprep.subr.mxu0 0.0
  %3806 = vmatpush1.msra.mxu0 0.0
  %3807 = vmatprep.subr.mxu0 0.0
  %3808 = vmatpush1.msra.mxu0 0.0
  %3809 = vmatprep.subr.mxu0 0.0
  %3810 = vmatpush1.msra.mxu0 0.0
  %3811 = vmatprep.subr.mxu0 0.0
  %3812 = vmatpush1.msra.mxu0 0.0
  %3813 = vmatprep.subr.mxu0 0.0
  %3814 = vmatpush1.msra.mxu0 0.0
  %3815 = vmatprep.subr.mxu0 0.0
  %3816 = vmatpush1.msra.mxu0 0.0
  %3817 = vmatprep.subr.mxu0 0.0
  %3818 = vmatpush1.msra.mxu0 0.0
  %3819 = vmatprep.subr.mxu0 0.0
  %3820 = vmatpush1.msra.mxu0 0.0
  %3821 = vmatprep.subr.mxu0 0.0
  %3822 = vmatpush1.msra.mxu0 0.0
  %3823 = vmatprep.subr.mxu0 0.0
  %3824 = vmatpush1.msra.mxu0 0.0
  %3825 = vmatprep.mubr.f32.mxu0 0.0
  %3826 = vmatmul.mubr.f32.gmra.mrb[0].mxu0 %v3515
  %v3827 = vpop.f32.mrb[0].mxu0
  %v3828 = vadd.f32 0.0, %v3827
  %v3829 = vpop.f32.mrb[0].mxu0
  %v3830 = vadd.f32 0.0, %v3829
  %3831 = vdwg.mxu0
  %3832 = vmatprep.subr.mxu0 %v646
  %3833 = vmatpush1.msra.mxu0 %v645
  %3834 = vmatprep.subr.mxu0 %v650
  %3835 = vmatpush1.msra.mxu0 %v649
  %3836 = vmatprep.subr.mxu0 %v654
  %3837 = vmatpush1.msra.mxu0 %v653
  %3838 = vmatprep.subr.mxu0 %v658
  %3839 = vmatpush1.msra.mxu0 %v657
  %3840 = vmatprep.subr.mxu0 %v662
  %3841 = vmatpush1.msra.mxu0 %v661
  %3842 = vmatprep.subr.mxu0 %v666
  %3843 = vmatpush1.msra.mxu0 %v665
  %3844 = vmatprep.subr.mxu0 %v670
  %3845 = vmatpush1.msra.mxu0 %v669
  %3846 = vmatprep.subr.mxu0 %v674
  %3847 = vmatpush1.msra.mxu0 %v673
  %3848 = vmatprep.subr.mxu0 %v678
  %3849 = vmatpush1.msra.mxu0 %v677
  %3850 = vmatprep.subr.mxu0 %v682
  %3851 = vmatpush1.msra.mxu0 %v681
  %3852 = vmatprep.subr.mxu0 %v686
  %3853 = vmatpush1.msra.mxu0 %v685
  %3854 = vmatprep.subr.mxu0 %v690
  %3855 = vmatpush1.msra.mxu0 %v689
  %3856 = vmatprep.subr.mxu0 %v694
  %3857 = vmatpush1.msra.mxu0 %v693
  %3858 = vmatprep.subr.mxu0 %v698
  %3859 = vmatpush1.msra.mxu0 %v697
  %3860 = vmatprep.subr.mxu0 %v702
  %3861 = vmatpush1.msra.mxu0 %v701
  %3862 = vmatprep.subr.mxu0 %v706
  %3863 = vmatpush1.msra.mxu0 %v705
  %3864 = vmatprep.subr.mxu0 0.0
  %3865 = vmatpush1.msra.mxu0 0.0
  %3866 = vmatprep.subr.mxu0 0.0
  %3867 = vmatpush1.msra.mxu0 0.0
  %3868 = vmatprep.subr.mxu0 0.0
  %3869 = vmatpush1.msra.mxu0 0.0
  %3870 = vmatprep.subr.mxu0 0.0
  %3871 = vmatpush1.msra.mxu0 0.0
  %3872 = vmatprep.subr.mxu0 0.0
  %3873 = vmatpush1.msra.mxu0 0.0
  %3874 = vmatprep.subr.mxu0 0.0
  %3875 = vmatpush1.msra.mxu0 0.0
  %3876 = vmatprep.subr.mxu0 0.0
  %3877 = vmatpush1.msra.mxu0 0.0
  %3878 = vmatprep.subr.mxu0 0.0
  %3879 = vmatpush1.msra.mxu0 0.0
  %3880 = vmatprep.subr.mxu0 0.0
  %3881 = vmatpush1.msra.mxu0 0.0
  %3882 = vmatprep.subr.mxu0 0.0
  %3883 = vmatpush1.msra.mxu0 0.0
  %3884 = vmatprep.subr.mxu0 0.0
  %3885 = vmatpush1.msra.mxu0 0.0
  %3886 = vmatprep.subr.mxu0 0.0
  %3887 = vmatpush1.msra.mxu0 0.0
  %3888 = vmatprep.subr.mxu0 0.0
  %3889 = vmatpush1.msra.mxu0 0.0
  %3890 = vmatprep.subr.mxu0 0.0
  %3891 = vmatpush1.msra.mxu0 0.0
  %3892 = vmatprep.subr.mxu0 0.0
  %3893 = vmatpush1.msra.mxu0 0.0
  %3894 = vmatprep.subr.mxu0 0.0
  %3895 = vmatpush1.msra.mxu0 0.0
  %3896 = vmatprep.mubr.f32.mxu0 0.0
  %3897 = vmatmul.mubr.f32.gmra.mrb[0].mxu0 %v3689
  %v3898 = vpop.f32.mrb[0].mxu0
  %v3899 = vadd.f32 %v3757, %v3898
  %v3900 = vpop.f32.mrb[0].mxu0
  %v3901 = vadd.f32 %v3759, %v3900
  %3902 = vdwg.mxu0
  %3903 = vmatprep.subr.mxu0 %v648
  %3904 = vmatpush1.msra.mxu0 %v647
  %3905 = vmatprep.subr.mxu0 %v652
  %3906 = vmatpush1.msra.mxu0 %v651
  %3907 = vmatprep.subr.mxu0 %v656
  %3908 = vmatpush1.msra.mxu0 %v655
  %3909 = vmatprep.subr.mxu0 %v660
  %3910 = vmatpush1.msra.mxu0 %v659
  %3911 = vmatprep.subr.mxu0 %v664
  %3912 = vmatpush1.msra.mxu0 %v663
  %3913 = vmatprep.subr.mxu0 %v668
  %3914 = vmatpush1.msra.mxu0 %v667
  %3915 = vmatprep.subr.mxu0 %v672
  %3916 = vmatpush1.msra.mxu0 %v671
  %3917 = vmatprep.subr.mxu0 %v676
  %3918 = vmatpush1.msra.mxu0 %v675
  %3919 = vmatprep.subr.mxu0 %v680
  %3920 = vmatpush1.msra.mxu0 %v679
  %3921 = vmatprep.subr.mxu0 %v684
  %3922 = vmatpush1.msra.mxu0 %v683
  %3923 = vmatprep.subr.mxu0 %v688
  %3924 = vmatpush1.msra.mxu0 %v687
  %3925 = vmatprep.subr.mxu0 %v692
  %3926 = vmatpush1.msra.mxu0 %v691
  %3927 = vmatprep.subr.mxu0 %v696
  %3928 = vmatpush1.msra.mxu0 %v695
  %3929 = vmatprep.subr.mxu0 %v700
  %3930 = vmatpush1.msra.mxu0 %v699
  %3931 = vmatprep.subr.mxu0 %v704
  %3932 = vmatpush1.msra.mxu0 %v703
  %3933 = vmatprep.subr.mxu0 %v708
  %3934 = vmatpush1.msra.mxu0 %v707
  %3935 = vmatprep.subr.mxu0 0.0
  %3936 = vmatpush1.msra.mxu0 0.0
  %3937 = vmatprep.subr.mxu0 0.0
  %3938 = vmatpush1.msra.mxu0 0.0
  %3939 = vmatprep.subr.mxu0 0.0
  %3940 = vmatpush1.msra.mxu0 0.0
  %3941 = vmatprep.subr.mxu0 0.0
  %3942 = vmatpush1.msra.mxu0 0.0
  %3943 = vmatprep.subr.mxu0 0.0
  %3944 = vmatpush1.msra.mxu0 0.0
  %3945 = vmatprep.subr.mxu0 0.0
  %3946 = vmatpush1.msra.mxu0 0.0
  %3947 = vmatprep.subr.mxu0 0.0
  %3948 = vmatpush1.msra.mxu0 0.0
  %3949 = vmatprep.subr.mxu0 0.0
  %3950 = vmatpush1.msra.mxu0 0.0
  %3951 = vmatprep.subr.mxu0 0.0
  %3952 = vmatpush1.msra.mxu0 0.0
  %3953 = vmatprep.subr.mxu0 0.0
  %3954 = vmatpush1.msra.mxu0 0.0
  %3955 = vmatprep.subr.mxu0 0.0
  %3956 = vmatpush1.msra.mxu0 0.0
  %3957 = vmatprep.subr.mxu0 0.0
  %3958 = vmatpush1.msra.mxu0 0.0
  %3959 = vmatprep.subr.mxu0 0.0
  %3960 = vmatpush1.msra.mxu0 0.0
  %3961 = vmatprep.subr.mxu0 0.0
  %3962 = vmatpush1.msra.mxu0 0.0
  %3963 = vmatprep.subr.mxu0 0.0
  %3964 = vmatpush1.msra.mxu0 0.0
  %3965 = vmatprep.subr.mxu0 0.0
  %3966 = vmatpush1.msra.mxu0 0.0
  %3967 = vmatprep.mubr.f32.mxu0 0.0
  %3968 = vmatmul.mubr.f32.gmra.mrb[0].mxu0 %v3689
  %v3969 = vpop.f32.mrb[0].mxu0
  %v3970 = vadd.f32 %v3828, %v3969
  %v3971 = vpop.f32.mrb[0].mxu0
  %v3972 = vadd.f32 %v3830, %v3971
  %3973 = vdwg.mxu0
  %v3974 = vadd.f32 %v3899, %v390
  %v3975 = vadd.f32 %v3901, %v394
  %v3976 = vadd.f32 %v3970, %v398
  %v3977 = vadd.f32 %v3972, %v402
  %v3978 = vxor.u32 %v3974, 2147483648
  %v3979 = vxor.u32 %v3975, 2147483648
  %v3980 = vxor.u32 %v3976, 2147483648
  %v3981 = vmul.f32 %v3978, 1.442695
  %v3982 = vpow.pop %v3981
  %v3983 = vmul.f32 %v3979, 1.442695
  %v3984 = vpow.pop %v3983
  %v3985 = vmul.f32 %v3980, 1.442695
  %v3986 = vpow.pop %v3985
  %v3987 = vadd.f32 %v3982, 1.0
  %v3988 = vadd.f32 %v3984, 1.0
  %v3989 = vadd.f32 %v3986, 1.0
  %v3990 = vrcp.pop %v3987
  %v3991 = vmul.f32 1.0, %v3990
  %v3992 = vrcp.pop %v3988
  %v3993 = vmul.f32 1.0, %v3992
  %v3994 = vrcp.pop %v3989
  %v3995 = vmul.f32 1.0, %v3994
  %v3996 = vtanh.pop %v3977
  %v3997 = vmul.f32 %v3993, %v3513
  %v3998 = vmul.f32 %v3991, %v3996
  %v3999 = vadd.f32 %v3997, %v3998
  %v4000 = vtanh.pop %v3999
  %v4001 = vmul.f32 %v3995, %v4000
  %v4002 = vld [vmem:[#allocation2 + $0xe0] sm:$0xff]
  %v4003 = vld [vmem:[#allocation2 + $0xe8] sm:$0xff]
  %v4004 = vld [vmem:[#allocation2 + $0xf0] sm:$0xff]
  %v4005 = vld [vmem:[#allocation2 + $0xf8] sm:$0xff]
  %4006 = vmatprep.subr.mxu0 %v412
  %4007 = vmatpush1.msra.mxu0 %v411
  %4008 = vmatprep.subr.mxu0 %v416
  %4009 = vmatpush1.msra.mxu0 %v415
  %4010 = vmatprep.subr.mxu0 %v420
  %4011 = vmatpush1.msra.mxu0 %v419
  %4012 = vmatprep.subr.mxu0 %v424
  %4013 = vmatpush1.msra.mxu0 %v423
  %4014 = vmatprep.subr.mxu0 %v428
  %4015 = vmatpush1.msra.mxu0 %v427
  %4016 = vmatprep.subr.mxu0 %v432
  %4017 = vmatpush1.msra.mxu0 %v431
  %4018 = vmatprep.subr.mxu0 %v436
  %4019 = vmatpush1.msra.mxu0 %v435
  %4020 = vmatprep.subr.mxu0 %v440
  %4021 = vmatpush1.msra.mxu0 %v439
  %4022 = vmatprep.subr.mxu0 %v444
  %4023 = vmatpush1.msra.mxu0 %v443
  %4024 = vmatprep.subr.mxu0 %v448
  %4025 = vmatpush1.msra.mxu0 %v447
  %4026 = vmatprep.subr.mxu0 %v452
  %4027 = vmatpush1.msra.mxu0 %v451
  %4028 = vmatprep.subr.mxu0 %v456
  %4029 = vmatpush1.msra.mxu0 %v455
  %4030 = vmatprep.subr.mxu0 %v460
  %4031 = vmatpush1.msra.mxu0 %v459
  %4032 = vmatprep.subr.mxu0 %v464
  %4033 = vmatpush1.msra.mxu0 %v463
  %4034 = vmatprep.subr.mxu0 %v468
  %4035 = vmatpush1.msra.mxu0 %v467
  %4036 = vmatprep.subr.mxu0 %v472
  %4037 = vmatpush1.msra.mxu0 %v471
  %4038 = vmatprep.subr.mxu0 0.0
  %4039 = vmatpush1.msra.mxu0 0.0
  %4040 = vmatprep.subr.mxu0 0.0
  %4041 = vmatpush1.msra.mxu0 0.0
  %4042 = vmatprep.subr.mxu0 0.0
  %4043 = vmatpush1.msra.mxu0 0.0
  %4044 = vmatprep.subr.mxu0 0.0
  %4045 = vmatpush1.msra.mxu0 0.0
  %4046 = vmatprep.subr.mxu0 0.0
  %4047 = vmatpush1.msra.mxu0 0.0
  %4048 = vmatprep.subr.mxu0 0.0
  %4049 = vmatpush1.msra.mxu0 0.0
  %4050 = vmatprep.subr.mxu0 0.0
  %4051 = vmatpush1.msra.mxu0 0.0
  %4052 = vmatprep.subr.mxu0 0.0
  %4053 = vmatpush1.msra.mxu0 0.0
  %4054 = vmatprep.subr.mxu0 0.0
  %4055 = vmatpush1.msra.mxu0 0.0
  %4056 = vmatprep.subr.mxu0 0.0
  %4057 = vmatpush1.msra.mxu0 0.0
  %4058 = vmatprep.subr.mxu0 0.0
  %4059 = vmatpush1.msra.mxu0 0.0
  %4060 = vmatprep.subr.mxu0 0.0
  %4061 = vmatpush1.msra.mxu0 0.0
  %4062 = vmatprep.subr.mxu0 0.0
  %4063 = vmatpush1.msra.mxu0 0.0
  %4064 = vmatprep.subr.mxu0 0.0
  %4065 = vmatpush1.msra.mxu0 0.0
  %4066 = vmatprep.subr.mxu0 0.0
  %4067 = vmatpush1.msra.mxu0 0.0
  %4068 = vmatprep.subr.mxu0 0.0
  %4069 = vmatpush1.msra.mxu0 0.0
  %4070 = vmatprep.mubr.f32.mxu0 0.0
  %4071 = vmatmul.mubr.f32.gmra.mrb[0].mxu0 %v3689
  %v4072 = vpop.f32.mrb[0].mxu0
  %v4073 = vadd.f32 0.0, %v4072
  %v4074 = vpop.f32.mrb[0].mxu0
  %v4075 = vadd.f32 0.0, %v4074
  %4076 = vdwg.mxu0
  %4077 = vmatprep.subr.mxu0 %v414
  %4078 = vmatpush1.msra.mxu0 %v413
  %4079 = vmatprep.subr.mxu0 %v418
  %4080 = vmatpush1.msra.mxu0 %v417
  %4081 = vmatprep.subr.mxu0 %v422
  %4082 = vmatpush1.msra.mxu0 %v421
  %4083 = vmatprep.subr.mxu0 %v426
  %4084 = vmatpush1.msra.mxu0 %v425
  %4085 = vmatprep.subr.mxu0 %v430
  %4086 = vmatpush1.msra.mxu0 %v429
  %4087 = vmatprep.subr.mxu0 %v434
  %4088 = vmatpush1.msra.mxu0 %v433
  %4089 = vmatprep.subr.mxu0 %v438
  %4090 = vmatpush1.msra.mxu0 %v437
  %4091 = vmatprep.subr.mxu0 %v442
  %4092 = vmatpush1.msra.mxu0 %v441
  %4093 = vmatprep.subr.mxu0 %v446
  %4094 = vmatpush1.msra.mxu0 %v445
  %4095 = vmatprep.subr.mxu0 %v450
  %4096 = vmatpush1.msra.mxu0 %v449
  %4097 = vmatprep.subr.mxu0 %v454
  %4098 = vmatpush1.msra.mxu0 %v453
  %4099 = vmatprep.subr.mxu0 %v458
  %4100 = vmatpush1.msra.mxu0 %v457
  %4101 = vmatprep.subr.mxu0 %v462
  %4102 = vmatpush1.msra.mxu0 %v461
  %4103 = vmatprep.subr.mxu0 %v466
  %4104 = vmatpush1.msra.mxu0 %v465
  %4105 = vmatprep.subr.mxu0 %v470
  %4106 = vmatpush1.msra.mxu0 %v469
  %4107 = vmatprep.subr.mxu0 %v474
  %4108 = vmatpush1.msra.mxu0 %v473
  %4109 = vmatprep.subr.mxu0 0.0
  %4110 = vmatpush1.msra.mxu0 0.0
  %4111 = vmatprep.subr.mxu0 0.0
  %4112 = vmatpush1.msra.mxu0 0.0
  %4113 = vmatprep.subr.mxu0 0.0
  %4114 = vmatpush1.msra.mxu0 0.0
  %4115 = vmatprep.subr.mxu0 0.0
  %4116 = vmatpush1.msra.mxu0 0.0
  %4117 = vmatprep.subr.mxu0 0.0
  %4118 = vmatpush1.msra.mxu0 0.0
  %4119 = vmatprep.subr.mxu0 0.0
  %4120 = vmatpush1.msra.mxu0 0.0
  %4121 = vmatprep.subr.mxu0 0.0
  %4122 = vmatpush1.msra.mxu0 0.0
  %4123 = vmatprep.subr.mxu0 0.0
  %4124 = vmatpush1.msra.mxu0 0.0
  %4125 = vmatprep.subr.mxu0 0.0
  %4126 = vmatpush1.msra.mxu0 0.0
  %4127 = vmatprep.subr.mxu0 0.0
  %4128 = vmatpush1.msra.mxu0 0.0
  %4129 = vmatprep.subr.mxu0 0.0
  %4130 = vmatpush1.msra.mxu0 0.0
  %4131 = vmatprep.subr.mxu0 0.0
  %4132 = vmatpush1.msra.mxu0 0.0
  %4133 = vmatprep.subr.mxu0 0.0
  %4134 = vmatpush1.msra.mxu0 0.0
  %4135 = vmatprep.subr.mxu0 0.0
  %4136 = vmatpush1.msra.mxu0 0.0
  %4137 = vmatprep.subr.mxu0 0.0
  %4138 = vmatpush1.msra.mxu0 0.0
  %4139 = vmatprep.subr.mxu0 0.0
  %4140 = vmatpush1.msra.mxu0 0.0
  %4141 = vmatprep.mubr.f32.mxu0 0.0
  %4142 = vmatmul.mubr.f32.gmra.mrb[0].mxu0 %v3689
  %v4143 = vpop.f32.mrb[0].mxu0
  %v4144 = vadd.f32 0.0, %v4143
  %v4145 = vpop.f32.mrb[0].mxu0
  %v4146 = vadd.f32 0.0, %v4145
  %4147 = vdwg.mxu0
  %v4148 = vadd.f32 %v4002, %v4073
  %v4149 = vadd.f32 %v4003, %v4075
  %v4150 = vadd.f32 %v4004, %v4144
  %v4151 = vadd.f32 %v4005, %v4146
  %v4152 = vxor.u32 %v4148, 2147483648
  %v4153 = vxor.u32 %v4149, 2147483648
  %v4154 = vxor.u32 %v4150, 2147483648
  %v4155 = vmul.f32 %v4152, 1.442695
  %v4156 = vpow.pop %v4155
  %v4157 = vmul.f32 %v4153, 1.442695
  %v4158 = vpow.pop %v4157
  %v4159 = vmul.f32 %v4154, 1.442695
  %v4160 = vpow.pop %v4159
  %v4161 = vadd.f32 %v4156, 1.0
  %v4162 = vadd.f32 %v4158, 1.0
  %v4163 = vadd.f32 %v4160, 1.0
  %v4164 = vrcp.pop %v4161
  %v4165 = vmul.f32 1.0, %v4164
  %v4166 = vrcp.pop %v4162
  %v4167 = vmul.f32 1.0, %v4166
  %v4168 = vrcp.pop %v4163
  %v4169 = vmul.f32 1.0, %v4168
  %v4170 = vtanh.pop %v4151
  %v4171 = vmul.f32 %v4167, %v3687
  %v4172 = vmul.f32 %v4165, %v4170
  %v4173 = vadd.f32 %v4171, %v4172
  %v4174 = vtanh.pop %v4173
  %v4175 = vmul.f32 %v4169, %v4174
  %4176 = vmatprep.subr.mxu0 %v711
  %4177 = vmatpush1.msra.mxu0 %v710
  %4178 = vmatprep.subr.mxu0 %v715
  %4179 = vmatpush1.msra.mxu0 %v714
  %4180 = vmatprep.subr.mxu0 %v719
  %4181 = vmatpush1.msra.mxu0 %v718
  %4182 = vmatprep.subr.mxu0 %v723
  %4183 = vmatpush1.msra.mxu0 %v722
  %4184 = vmatprep.subr.mxu0 %v727
  %4185 = vmatpush1.msra.mxu0 %v726
  %4186 = vmatprep.subr.mxu0 %v731
  %4187 = vmatpush1.msra.mxu0 %v730
  %4188 = vmatprep.subr.mxu0 %v735
  %4189 = vmatpush1.msra.mxu0 %v734
  %4190 = vmatprep.subr.mxu0 %v739
  %4191 = vmatpush1.msra.mxu0 %v738
  %4192 = vmatprep.subr.mxu0 %v743
  %4193 = vmatpush1.msra.mxu0 %v742
  %4194 = vmatprep.subr.mxu0 %v747
  %4195 = vmatpush1.msra.mxu0 %v746
  %4196 = vmatprep.subr.mxu0 %v751
  %4197 = vmatpush1.msra.mxu0 %v750
  %4198 = vmatprep.subr.mxu0 %v755
  %4199 = vmatpush1.msra.mxu0 %v754
  %4200 = vmatprep.subr.mxu0 %v759
  %4201 = vmatpush1.msra.mxu0 %v758
  %4202 = vmatprep.subr.mxu0 %v763
  %4203 = vmatpush1.msra.mxu0 %v762
  %4204 = vmatprep.subr.mxu0 %v767
  %4205 = vmatpush1.msra.mxu0 %v766
  %4206 = vmatprep.subr.mxu0 %v771
  %4207 = vmatpush1.msra.mxu0 %v770
  %4208 = vmatprep.subr.mxu0 0.0
  %4209 = vmatpush1.msra.mxu0 0.0
  %4210 = vmatprep.subr.mxu0 0.0
  %4211 = vmatpush1.msra.mxu0 0.0
  %4212 = vmatprep.subr.mxu0 0.0
  %4213 = vmatpush1.msra.mxu0 0.0
  %4214 = vmatprep.subr.mxu0 0.0
  %4215 = vmatpush1.msra.mxu0 0.0
  %4216 = vmatprep.subr.mxu0 0.0
  %4217 = vmatpush1.msra.mxu0 0.0
  %4218 = vmatprep.subr.mxu0 0.0
  %4219 = vmatpush1.msra.mxu0 0.0
  %4220 = vmatprep.subr.mxu0 0.0
  %4221 = vmatpush1.msra.mxu0 0.0
  %4222 = vmatprep.subr.mxu0 0.0
  %4223 = vmatpush1.msra.mxu0 0.0
  %4224 = vmatprep.subr.mxu0 0.0
  %4225 = vmatpush1.msra.mxu0 0.0
  %4226 = vmatprep.subr.mxu0 0.0
  %4227 = vmatpush1.msra.mxu0 0.0
  %4228 = vmatprep.subr.mxu0 0.0
  %4229 = vmatpush1.msra.mxu0 0.0
  %4230 = vmatprep.subr.mxu0 0.0
  %4231 = vmatpush1.msra.mxu0 0.0
  %4232 = vmatprep.subr.mxu0 0.0
  %4233 = vmatpush1.msra.mxu0 0.0
  %4234 = vmatprep.subr.mxu0 0.0
  %4235 = vmatpush1.msra.mxu0 0.0
  %4236 = vmatprep.subr.mxu0 0.0
  %4237 = vmatpush1.msra.mxu0 0.0
  %4238 = vmatprep.subr.mxu0 0.0
  %4239 = vmatpush1.msra.mxu0 0.0
  %4240 = vmatprep.mubr.f32.mxu0 0.0
  %4241 = vmatmul.mubr.f32.gmra.mrb[0].mxu0 %v4001
  %v4242 = vpop.f32.mrb[0].mxu0
  %v4243 = vadd.f32 0.0, %v4242
  %v4244 = vpop.f32.mrb[0].mxu0
  %v4245 = vadd.f32 0.0, %v4244
  %4246 = vdwg.mxu0
  %4247 = vmatprep.subr.mxu0 %v713
  %4248 = vmatpush1.msra.mxu0 %v712
  %4249 = vmatprep.subr.mxu0 %v717
  %4250 = vmatpush1.msra.mxu0 %v716
  %4251 = vmatprep.subr.mxu0 %v721
  %4252 = vmatpush1.msra.mxu0 %v720
  %4253 = vmatprep.subr.mxu0 %v725
  %4254 = vmatpush1.msra.mxu0 %v724
  %4255 = vmatprep.subr.mxu0 %v729
  %4256 = vmatpush1.msra.mxu0 %v728
  %4257 = vmatprep.subr.mxu0 %v733
  %4258 = vmatpush1.msra.mxu0 %v732
  %4259 = vmatprep.subr.mxu0 %v737
  %4260 = vmatpush1.msra.mxu0 %v736
  %4261 = vmatprep.subr.mxu0 %v741
  %4262 = vmatpush1.msra.mxu0 %v740
  %4263 = vmatprep.subr.mxu0 %v745
  %4264 = vmatpush1.msra.mxu0 %v744
  %4265 = vmatprep.subr.mxu0 %v749
  %4266 = vmatpush1.msra.mxu0 %v748
  %4267 = vmatprep.subr.mxu0 %v753
  %4268 = vmatpush1.msra.mxu0 %v752
  %4269 = vmatprep.subr.mxu0 %v757
  %4270 = vmatpush1.msra.mxu0 %v756
  %4271 = vmatprep.subr.mxu0 %v761
  %4272 = vmatpush1.msra.mxu0 %v760
  %4273 = vmatprep.subr.mxu0 %v765
  %4274 = vmatpush1.msra.mxu0 %v764
  %4275 = vmatprep.subr.mxu0 %v769
  %4276 = vmatpush1.msra.mxu0 %v768
  %4277 = vmatprep.subr.mxu0 %v773
  %4278 = vmatpush1.msra.mxu0 %v772
  %4279 = vmatprep.subr.mxu0 0.0
  %4280 = vmatpush1.msra.mxu0 0.0
  %4281 = vmatprep.subr.mxu0 0.0
  %4282 = vmatpush1.msra.mxu0 0.0
  %4283 = vmatprep.subr.mxu0 0.0
  %4284 = vmatpush1.msra.mxu0 0.0
  %4285 = vmatprep.subr.mxu0 0.0
  %4286 = vmatpush1.msra.mxu0 0.0
  %4287 = vmatprep.subr.mxu0 0.0
  %4288 = vmatpush1.msra.mxu0 0.0
  %4289 = vmatprep.subr.mxu0 0.0
  %4290 = vmatpush1.msra.mxu0 0.0
  %4291 = vmatprep.subr.mxu0 0.0
  %4292 = vmatpush1.msra.mxu0 0.0
  %4293 = vmatprep.subr.mxu0 0.0
  %4294 = vmatpush1.msra.mxu0 0.0
  %4295 = vmatprep.subr.mxu0 0.0
  %4296 = vmatpush1.msra.mxu0 0.0
  %4297 = vmatprep.subr.mxu0 0.0
  %4298 = vmatpush1.msra.mxu0 0.0
  %4299 = vmatprep.subr.mxu0 0.0
  %4300 = vmatpush1.msra.mxu0 0.0
  %4301 = vmatprep.subr.mxu0 0.0
  %4302 = vmatpush1.msra.mxu0 0.0
  %4303 = vmatprep.subr.mxu0 0.0
  %4304 = vmatpush1.msra.mxu0 0.0
  %4305 = vmatprep.subr.mxu0 0.0
  %4306 = vmatpush1.msra.mxu0 0.0
  %4307 = vmatprep.subr.mxu0 0.0
  %4308 = vmatpush1.msra.mxu0 0.0
  %4309 = vmatprep.subr.mxu0 0.0
  %4310 = vmatpush1.msra.mxu0 0.0
  %4311 = vmatprep.mubr.f32.mxu0 0.0
  %4312 = vmatmul.mubr.f32.gmra.mrb[0].mxu0 %v4001
  %v4313 = vpop.f32.mrb[0].mxu0
  %v4314 = vadd.f32 0.0, %v4313
  %v4315 = vpop.f32.mrb[0].mxu0
  %v4316 = vadd.f32 0.0, %v4315
  %4317 = vdwg.mxu0
  %4318 = vmatprep.subr.mxu0 %v646
  %4319 = vmatpush1.msra.mxu0 %v645
  %4320 = vmatprep.subr.mxu0 %v650
  %4321 = vmatpush1.msra.mxu0 %v649
  %4322 = vmatprep.subr.mxu0 %v654
  %4323 = vmatpush1.msra.mxu0 %v653
  %4324 = vmatprep.subr.mxu0 %v658
  %4325 = vmatpush1.msra.mxu0 %v657
  %4326 = vmatprep.subr.mxu0 %v662
  %4327 = vmatpush1.msra.mxu0 %v661
  %4328 = vmatprep.subr.mxu0 %v666
  %4329 = vmatpush1.msra.mxu0 %v665
  %4330 = vmatprep.subr.mxu0 %v670
  %4331 = vmatpush1.msra.mxu0 %v669
  %4332 = vmatprep.subr.mxu0 %v674
  %4333 = vmatpush1.msra.mxu0 %v673
  %4334 = vmatprep.subr.mxu0 %v678
  %4335 = vmatpush1.msra.mxu0 %v677
  %4336 = vmatprep.subr.mxu0 %v682
  %4337 = vmatpush1.msra.mxu0 %v681
  %4338 = vmatprep.subr.mxu0 %v686
  %4339 = vmatpush1.msra.mxu0 %v685
  %4340 = vmatprep.subr.mxu0 %v690
  %4341 = vmatpush1.msra.mxu0 %v689
  %4342 = vmatprep.subr.mxu0 %v694
  %4343 = vmatpush1.msra.mxu0 %v693
  %4344 = vmatprep.subr.mxu0 %v698
  %4345 = vmatpush1.msra.mxu0 %v697
  %4346 = vmatprep.subr.mxu0 %v702
  %4347 = vmatpush1.msra.mxu0 %v701
  %4348 = vmatprep.subr.mxu0 %v706
  %4349 = vmatpush1.msra.mxu0 %v705
  %4350 = vmatprep.subr.mxu0 0.0
  %4351 = vmatpush1.msra.mxu0 0.0
  %4352 = vmatprep.subr.mxu0 0.0
  %4353 = vmatpush1.msra.mxu0 0.0
  %4354 = vmatprep.subr.mxu0 0.0
  %4355 = vmatpush1.msra.mxu0 0.0
  %4356 = vmatprep.subr.mxu0 0.0
  %4357 = vmatpush1.msra.mxu0 0.0
  %4358 = vmatprep.subr.mxu0 0.0
  %4359 = vmatpush1.msra.mxu0 0.0
  %4360 = vmatprep.subr.mxu0 0.0
  %4361 = vmatpush1.msra.mxu0 0.0
  %4362 = vmatprep.subr.mxu0 0.0
  %4363 = vmatpush1.msra.mxu0 0.0
  %4364 = vmatprep.subr.mxu0 0.0
  %4365 = vmatpush1.msra.mxu0 0.0
  %4366 = vmatprep.subr.mxu0 0.0
  %4367 = vmatpush1.msra.mxu0 0.0
  %4368 = vmatprep.subr.mxu0 0.0
  %4369 = vmatpush1.msra.mxu0 0.0
  %4370 = vmatprep.subr.mxu0 0.0
  %4371 = vmatpush1.msra.mxu0 0.0
  %4372 = vmatprep.subr.mxu0 0.0
  %4373 = vmatpush1.msra.mxu0 0.0
  %4374 = vmatprep.subr.mxu0 0.0
  %4375 = vmatpush1.msra.mxu0 0.0
  %4376 = vmatprep.subr.mxu0 0.0
  %4377 = vmatpush1.msra.mxu0 0.0
  %4378 = vmatprep.subr.mxu0 0.0
  %4379 = vmatpush1.msra.mxu0 0.0
  %4380 = vmatprep.subr.mxu0 0.0
  %4381 = vmatpush1.msra.mxu0 0.0
  %4382 = vmatprep.mubr.f32.mxu0 0.0
  %4383 = vmatmul.mubr.f32.gmra.mrb[0].mxu0 %v4175
  %v4384 = vpop.f32.mrb[0].mxu0
  %v4385 = vadd.f32 %v4243, %v4384
  %v4386 = vpop.f32.mrb[0].mxu0
  %v4387 = vadd.f32 %v4245, %v4386
  %4388 = vdwg.mxu0
  %4389 = vmatprep.subr.mxu0 %v648
  %4390 = vmatpush1.msra.mxu0 %v647
  %4391 = vmatprep.subr.mxu0 %v652
  %4392 = vmatpush1.msra.mxu0 %v651
  %4393 = vmatprep.subr.mxu0 %v656
  %4394 = vmatpush1.msra.mxu0 %v655
  %4395 = vmatprep.subr.mxu0 %v660
  %4396 = vmatpush1.msra.mxu0 %v659
  %4397 = vmatprep.subr.mxu0 %v664
  %4398 = vmatpush1.msra.mxu0 %v663
  %4399 = vmatprep.subr.mxu0 %v668
  %4400 = vmatpush1.msra.mxu0 %v667
  %4401 = vmatprep.subr.mxu0 %v672
  %4402 = vmatpush1.msra.mxu0 %v671
  %4403 = vmatprep.subr.mxu0 %v676
  %4404 = vmatpush1.msra.mxu0 %v675
  %4405 = vmatprep.subr.mxu0 %v680
  %4406 = vmatpush1.msra.mxu0 %v679
  %4407 = vmatprep.subr.mxu0 %v684
  %4408 = vmatpush1.msra.mxu0 %v683
  %4409 = vmatprep.subr.mxu0 %v688
  %4410 = vmatpush1.msra.mxu0 %v687
  %4411 = vmatprep.subr.mxu0 %v692
  %4412 = vmatpush1.msra.mxu0 %v691
  %4413 = vmatprep.subr.mxu0 %v696
  %4414 = vmatpush1.msra.mxu0 %v695
  %4415 = vmatprep.subr.mxu0 %v700
  %4416 = vmatpush1.msra.mxu0 %v699
  %4417 = vmatprep.subr.mxu0 %v704
  %4418 = vmatpush1.msra.mxu0 %v703
  %4419 = vmatprep.subr.mxu0 %v708
  %4420 = vmatpush1.msra.mxu0 %v707
  %4421 = vmatprep.subr.mxu0 0.0
  %4422 = vmatpush1.msra.mxu0 0.0
  %4423 = vmatprep.subr.mxu0 0.0
  %4424 = vmatpush1.msra.mxu0 0.0
  %4425 = vmatprep.subr.mxu0 0.0
  %4426 = vmatpush1.msra.mxu0 0.0
  %4427 = vmatprep.subr.mxu0 0.0
  %4428 = vmatpush1.msra.mxu0 0.0
  %4429 = vmatprep.subr.mxu0 0.0
  %4430 = vmatpush1.msra.mxu0 0.0
  %4431 = vmatprep.subr.mxu0 0.0
  %4432 = vmatpush1.msra.mxu0 0.0
  %4433 = vmatprep.subr.mxu0 0.0
  %4434 = vmatpush1.msra.mxu0 0.0
  %4435 = vmatprep.subr.mxu0 0.0
  %4436 = vmatpush1.msra.mxu0 0.0
  %4437 = vmatprep.subr.mxu0 0.0
  %4438 = vmatpush1.msra.mxu0 0.0
  %4439 = vmatprep.subr.mxu0 0.0
  %4440 = vmatpush1.msra.mxu0 0.0
  %4441 = vmatprep.subr.mxu0 0.0
  %4442 = vmatpush1.msra.mxu0 0.0
  %4443 = vmatprep.subr.mxu0 0.0
  %4444 = vmatpush1.msra.mxu0 0.0
  %4445 = vmatprep.subr.mxu0 0.0
  %4446 = vmatpush1.msra.mxu0 0.0
  %4447 = vmatprep.subr.mxu0 0.0
  %4448 = vmatpush1.msra.mxu0 0.0
  %4449 = vmatprep.subr.mxu0 0.0
  %4450 = vmatpush1.msra.mxu0 0.0
  %4451 = vmatprep.subr.mxu0 0.0
  %4452 = vmatpush1.msra.mxu0 0.0
  %4453 = vmatprep.mubr.f32.mxu0 0.0
  %4454 = vmatmul.mubr.f32.gmra.mrb[0].mxu0 %v4175
  %v4455 = vpop.f32.mrb[0].mxu0
  %v4456 = vadd.f32 %v4314, %v4455
  %v4457 = vpop.f32.mrb[0].mxu0
  %v4458 = vadd.f32 %v4316, %v4457
  %4459 = vdwg.mxu0
  %v4460 = vadd.f32 %v4385, %v390
  %v4461 = vadd.f32 %v4387, %v394
  %v4462 = vadd.f32 %v4456, %v398
  %v4463 = vadd.f32 %v4458, %v402
  %v4464 = vxor.u32 %v4460, 2147483648
  %v4465 = vxor.u32 %v4461, 2147483648
  %v4466 = vxor.u32 %v4462, 2147483648
  %v4467 = vmul.f32 %v4464, 1.442695
  %v4468 = vpow.pop %v4467
  %v4469 = vmul.f32 %v4465, 1.442695
  %v4470 = vpow.pop %v4469
  %v4471 = vmul.f32 %v4466, 1.442695
  %v4472 = vpow.pop %v4471
  %v4473 = vadd.f32 %v4468, 1.0
  %v4474 = vadd.f32 %v4470, 1.0
  %v4475 = vadd.f32 %v4472, 1.0
  %v4476 = vrcp.pop %v4473
  %v4477 = vmul.f32 1.0, %v4476
  %v4478 = vrcp.pop %v4474
  %v4479 = vmul.f32 1.0, %v4478
  %v4480 = vrcp.pop %v4475
  %v4481 = vmul.f32 1.0, %v4480
  %v4482 = vtanh.pop %v4463
  %v4483 = vmul.f32 %v4479, %v3999
  %v4484 = vmul.f32 %v4477, %v4482
  %v4485 = vadd.f32 %v4483, %v4484
  %v4486 = vtanh.pop %v4485
  %v4487 = vmul.f32 %v4481, %v4486
  %v4488 = vld [vmem:[%s5] sm:$0xff]
  %v4489 = vld [vmem:[%s5 + $0x8] sm:$0xff]
  %v4490 = vld [vmem:[%s5 + $0x10] sm:$0xff]
  %v4491 = vld [vmem:[%s5 + $0x18] sm:$0xff]
  %v4492 = vld [vmem:[%s5 + $0x20] sm:$0xff]
  %v4493 = vld [vmem:[%s5 + $0x28] sm:$0xff]
  %v4494 = vld [vmem:[%s5 + $0x30] sm:$0xff]
  %v4495 = vld [vmem:[%s5 + $0x38] sm:$0xff]
  %v4496 = vld [vmem:[%s5 + $0x40] sm:$0xff]
  %v4497 = vld [vmem:[%s5 + $0x48] sm:$0xff]
  %v4498 = vld [vmem:[%s5 + $0x50] sm:$0xff]
  %v4499 = vld [vmem:[%s5 + $0x58] sm:$0xff]
  %v4500 = vld [vmem:[%s5 + $0x60] sm:$0xff]
  %v4501 = vld [vmem:[%s5 + $0x68] sm:$0xff]
  %v4502 = vld [vmem:[%s5 + $0x70] sm:$0xff]
  %v4503 = vld [vmem:[%s5 + $0x78] sm:$0xff]
  %v4504 = vld [vmem:[%s6] sm:$0x1]
  %v4506 = vlaneseq
  %v4507 = vshrl.u32 %v4506, 7
  %v4508 = vsub.s32 0, %v4507
  %v4509 = vrot.slane %v4504, %v4508
  %4511 = vmatprep.subr.mxu0 0.0
  %4512 = vmatpush1.msra.mxu0 %v4488
  %4513 = vmatprep.subr.mxu0 0.0
  %4514 = vmatpush1.msra.mxu0 %v4489
  %4515 = vmatprep.subr.mxu0 0.0
  %4516 = vmatpush1.msra.mxu0 %v4490
  %4517 = vmatprep.subr.mxu0 0.0
  %4518 = vmatpush1.msra.mxu0 %v4491
  %4519 = vmatprep.subr.mxu0 0.0
  %4520 = vmatpush1.msra.mxu0 %v4492
  %4521 = vmatprep.subr.mxu0 0.0
  %4522 = vmatpush1.msra.mxu0 %v4493
  %4523 = vmatprep.subr.mxu0 0.0
  %4524 = vmatpush1.msra.mxu0 %v4494
  %4525 = vmatprep.subr.mxu0 0.0
  %4526 = vmatpush1.msra.mxu0 %v4495
  %4527 = vmatprep.subr.mxu0 0.0
  %4528 = vmatpush1.msra.mxu0 %v4496
  %4529 = vmatprep.subr.mxu0 0.0
  %4530 = vmatpush1.msra.mxu0 %v4497
  %4531 = vmatprep.subr.mxu0 0.0
  %4532 = vmatpush1.msra.mxu0 %v4498
  %4533 = vmatprep.subr.mxu0 0.0
  %4534 = vmatpush1.msra.mxu0 %v4499
  %4535 = vmatprep.subr.mxu0 0.0
  %4536 = vmatpush1.msra.mxu0 %v4500
  %4537 = vmatprep.subr.mxu0 0.0
  %4538 = vmatpush1.msra.mxu0 %v4501
  %4539 = vmatprep.subr.mxu0 0.0
  %4540 = vmatpush1.msra.mxu0 %v4502
  %4541 = vmatprep.subr.mxu0 0.0
  %4542 = vmatpush1.msra.mxu0 %v4503
  %4543 = vmatprep.subr.mxu0 0.0
  %4544 = vmatpush1.msra.mxu0 0.0
  %4545 = vmatprep.subr.mxu0 0.0
  %4546 = vmatpush1.msra.mxu0 0.0
  %4547 = vmatprep.subr.mxu0 0.0
  %4548 = vmatpush1.msra.mxu0 0.0
  %4549 = vmatprep.subr.mxu0 0.0
  %4550 = vmatpush1.msra.mxu0 0.0
  %4551 = vmatprep.subr.mxu0 0.0
  %4552 = vmatpush1.msra.mxu0 0.0
  %4553 = vmatprep.subr.mxu0 0.0
  %4554 = vmatpush1.msra.mxu0 0.0
  %4555 = vmatprep.subr.mxu0 0.0
  %4556 = vmatpush1.msra.mxu0 0.0
  %4557 = vmatprep.subr.mxu0 0.0
  %4558 = vmatpush1.msra.mxu0 0.0
  %4559 = vmatprep.subr.mxu0 0.0
  %4560 = vmatpush1.msra.mxu0 0.0
  %4561 = vmatprep.subr.mxu0 0.0
  %4562 = vmatpush1.msra.mxu0 0.0
  %4563 = vmatprep.subr.mxu0 0.0
  %4564 = vmatpush1.msra.mxu0 0.0
  %4565 = vmatprep.subr.mxu0 0.0
  %4566 = vmatpush1.msra.mxu0 0.0
  %4567 = vmatprep.subr.mxu0 0.0
  %4568 = vmatpush1.msra.mxu0 0.0
  %4569 = vmatprep.subr.mxu0 0.0
  %4570 = vmatpush1.msra.mxu0 0.0
  %4571 = vmatprep.subr.mxu0 0.0
  %4572 = vmatpush1.msra.mxu0 0.0
  %4573 = vmatprep.subr.mxu0 0.0
  %4574 = vmatpush1.msra.mxu0 0.0
  %4575 = vmatprep.mubr.f32.mxu0 0.0
  %4576 = vmatmul.mubr.f32.gmra.mrb[0].mxu0 %v4487
  %v4577 = vpop.f32.mrb[0].mxu0
  %v4578 = vadd.f32 %v4509, %v4577
  %v4579 = vpop.f32.mrb[0].mxu0
  %4580 = vdwg.mxu0
  %v4581 = vld [vmem:[%s7] sm:$0xff]
  %v4582 = vld [vmem:[%s7 + $0x8] sm:$0xff]
  %v4583 = vld [vmem:[%s7 + $0x10] sm:$0xff]
  %v4584 = vld [vmem:[%s7 + $0x18] sm:$0xff]
  %v4585 = vld [vmem:[%s7 + $0x20] sm:$0xff]
  %v4586 = vld [vmem:[%s7 + $0x28] sm:$0xff]
  %v4587 = vld [vmem:[%s7 + $0x30] sm:$0xff]
  %v4588 = vld [vmem:[%s7 + $0x38] sm:$0xff]
  %v4589 = vld [vmem:[%s7 + $0x40] sm:$0xff]
  %v4590 = vld [vmem:[%s7 + $0x48] sm:$0xff]
  %v4591 = vld [vmem:[%s7 + $0x50] sm:$0xff]
  %v4592 = vld [vmem:[%s7 + $0x58] sm:$0xff]
  %v4593 = vld [vmem:[%s7 + $0x60] sm:$0xff]
  %v4594 = vld [vmem:[%s7 + $0x68] sm:$0xff]
  %v4595 = vld [vmem:[%s7 + $0x70] sm:$0xff]
  %v4596 = vld [vmem:[%s7 + $0x78] sm:$0xff]
  %v4597 = vld [vmem:[%s8] sm:$0x1]
  %v4599 = vlaneseq
  %v4600 = vshrl.u32 %v4599, 7
  %v4601 = vsub.s32 0, %v4600
  %v4602 = vrot.slane %v4597, %v4601
  %4604 = vmatprep.subr.mxu0 0.0
  %4605 = vmatpush1.msra.mxu0 %v4581
  %4606 = vmatprep.subr.mxu0 0.0
  %4607 = vmatpush1.msra.mxu0 %v4582
  %4608 = vmatprep.subr.mxu0 0.0
  %4609 = vmatpush1.msra.mxu0 %v4583
  %4610 = vmatprep.subr.mxu0 0.0
  %4611 = vmatpush1.msra.mxu0 %v4584
  %4612 = vmatprep.subr.mxu0 0.0
  %4613 = vmatpush1.msra.mxu0 %v4585
  %4614 = vmatprep.subr.mxu0 0.0
  %4615 = vmatpush1.msra.mxu0 %v4586
  %4616 = vmatprep.subr.mxu0 0.0
  %4617 = vmatpush1.msra.mxu0 %v4587
  %4618 = vmatprep.subr.mxu0 0.0
  %4619 = vmatpush1.msra.mxu0 %v4588
  %4620 = vmatprep.subr.mxu0 0.0
  %4621 = vmatpush1.msra.mxu0 %v4589
  %4622 = vmatprep.subr.mxu0 0.0
  %4623 = vmatpush1.msra.mxu0 %v4590
  %4624 = vmatprep.subr.mxu0 0.0
  %4625 = vmatpush1.msra.mxu0 %v4591
  %4626 = vmatprep.subr.mxu0 0.0
  %4627 = vmatpush1.msra.mxu0 %v4592
  %4628 = vmatprep.subr.mxu0 0.0
  %4629 = vmatpush1.msra.mxu0 %v4593
  %4630 = vmatprep.subr.mxu0 0.0
  %4631 = vmatpush1.msra.mxu0 %v4594
  %4632 = vmatprep.subr.mxu0 0.0
  %4633 = vmatpush1.msra.mxu0 %v4595
  %4634 = vmatprep.subr.mxu0 0.0
  %4635 = vmatpush1.msra.mxu0 %v4596
  %4636 = vmatprep.subr.mxu0 0.0
  %4637 = vmatpush1.msra.mxu0 0.0
  %4638 = vmatprep.subr.mxu0 0.0
  %4639 = vmatpush1.msra.mxu0 0.0
  %4640 = vmatprep.subr.mxu0 0.0
  %4641 = vmatpush1.msra.mxu0 0.0
  %4642 = vmatprep.subr.mxu0 0.0
  %4643 = vmatpush1.msra.mxu0 0.0
  %4644 = vmatprep.subr.mxu0 0.0
  %4645 = vmatpush1.msra.mxu0 0.0
  %4646 = vmatprep.subr.mxu0 0.0
  %4647 = vmatpush1.msra.mxu0 0.0
  %4648 = vmatprep.subr.mxu0 0.0
  %4649 = vmatpush1.msra.mxu0 0.0
  %4650 = vmatprep.subr.mxu0 0.0
  %4651 = vmatpush1.msra.mxu0 0.0
  %4652 = vmatprep.subr.mxu0 0.0
  %4653 = vmatpush1.msra.mxu0 0.0
  %4654 = vmatprep.subr.mxu0 0.0
  %4655 = vmatpush1.msra.mxu0 0.0
  %4656 = vmatprep.subr.mxu0 0.0
  %4657 = vmatpush1.msra.mxu0 0.0
  %4658 = vmatprep.subr.mxu0 0.0
  %4659 = vmatpush1.msra.mxu0 0.0
  %4660 = vmatprep.subr.mxu0 0.0
  %4661 = vmatpush1.msra.mxu0 0.0
  %4662 = vmatprep.subr.mxu0 0.0
  %4663 = vmatpush1.msra.mxu0 0.0
  %4664 = vmatprep.subr.mxu0 0.0
  %4665 = vmatpush1.msra.mxu0 0.0
  %4666 = vmatprep.subr.mxu0 0.0
  %4667 = vmatpush1.msra.mxu0 0.0
  %4668 = vmatprep.mubr.f32.mxu0 0.0
  %4669 = vmatmul.mubr.f32.gmra.mrb[0].mxu0 %v4578
  %v4670 = vpop.f32.mrb[0].mxu0
  %v4671 = vadd.f32 %v4602, %v4670
  %v4672 = vpop.f32.mrb[0].mxu0
  %4673 = vdwg.mxu0
  %4674 = vst [vmem:[%s9] sm:$0xff] %v4671
  // Predicated region
  $region38: #{estimation_lstm_forward.1} parent=0 // pred_check
    _
  $region39: #{estimation_lstm_forward.1} parent=0 // pred_check_branch
    %4676 = sbr.rel (0) target = $region41
  $region40: #{estimation_lstm_forward.1} parent=0 // pred_region
    _
  $region41: #{estimation_lstm_forward.1} parent=0 // pred_fallthru
    _
  // Predicated region
  $region42: #{estimation_lstm_forward.1} parent=0 // pred_check
    _
  $region43: #{estimation_lstm_forward.1} parent=0 // pred_check_branch
    %4678 = sbr.rel (0) target = $region45
  $region44: #{estimation_lstm_forward.1} parent=0 // pred_region
    _
  $region45: #{estimation_lstm_forward.1} parent=0 // pred_fallthru
    _

</llo_original>
